<compile_context>
chip_gen: v5e
topology: v5e:2x2
jax: 0.10.0
libtpu: 0.0.40
codegen_flags: <defaults>
</compile_context>

<pallas_src>
import functools

import jax
import jax.numpy as jnp
from jax.experimental import pallas as pl
from jax.experimental.pallas import tpu as pltpu

# Logical / lane-padded dimensions.
IN_DIM, IN_PAD = 784, 896      # 7 * 128
HID, HID_PAD = 400, 512        # 4 * 128
LAT = 20
LAT_HALF = 64                  # mu lanes [0,64), logvar lanes [64,128)
LAT_SLAB = 2 * LAT_HALF        # 128-lane packed (mu || logvar) output slab
Z_PAD = LAT_HALF               # z / eps / W3-rows padded to 64


def vae_kernel(x_ref, eps_ref,
               w1_ref, b1_ref, w2_ref, b2_ref, w3_ref, b3_ref, w4_ref, b4_ref,
               recon_ref, lat_ref):
    x = x_ref[...]                                            # (TB, 896) bf16

    # ---- encode: fc1 + ReLU (bf16 MXU, f32 accumulate, f32 elementwise) ----
    h1 = jnp.dot(x, w1_ref[...], preferred_element_type=jnp.float32) + b1_ref[...]
    h1 = jnp.maximum(h1, 0.0)                                 # (TB, 512) f32

    # ---- fused fc21 || fc22 -> packed (TB, 128): lanes [0,64)=mu, [64,128)=logvar ----
    lat = jnp.dot(h1.astype(jnp.bfloat16), w2_ref[...],
                  preferred_element_type=jnp.float32) + b2_ref[...]   # (TB, 128) f32
    mu = lat[:, :LAT_HALF]                                    # (TB, 64)
    logvar = lat[:, LAT_HALF:]                                # (TB, 64)

    # ---- reparametrize: z = eps * exp(0.5*logvar) + mu  (f32 VPU/EUP) ----
    eps = eps_ref[...].astype(jnp.float32)                    # (TB, 64)
    z = eps * jnp.exp(0.5 * logvar) + mu                      # (TB, 64) f32

    # ---- decode: fc3 + ReLU ----
    h3 = jnp.dot(z.astype(jnp.bfloat16), w3_ref[...],
                 preferred_element_type=jnp.float32) + b3_ref[...]
    h3 = jnp.maximum(h3, 0.0)                                 # (TB, 512) f32

    # ---- fc4 + sigmoid, emitted bf16 (halves dominant output stream) ----
    logits = jnp.dot(h3.astype(jnp.bfloat16), w4_ref[...],
                     preferred_element_type=jnp.float32) + b4_ref[...]
    recon_ref[...] = jax.nn.sigmoid(logits).astype(jnp.bfloat16)      # (TB, 896)
    lat_ref[...] = lat                                        # (TB, 128) f32 mu||logvar


def _round_up(x, m):
    return ((x + m - 1) // m) * m


def init_params(key):
    """PyTorch-style init U(-1/sqrt(fan_in), 1/sqrt(fan_in)); weights (in, out), biases (1, out)."""
    dims = [(784, 400), (400, 20), (400, 20), (20, 400), (400, 784)]
    params = []
    for (fan_in, fan_out) in dims:
        key, kw, kb = jax.random.split(key, 3)
        bound = 1.0 / jnp.sqrt(float(fan_in))
        w = jax.random.uniform(kw, (fan_in, fan_out), jnp.float32, -bound, bound)
        b = jax.random.uniform(kb, (1, fan_out), jnp.float32, -bound, bound)
        params.extend([w, b])
    return tuple(params)


def pack_params(params):
    """Zero-pad to lane multiples, fuse fc21||fc22 into a 128-lane slab, cast
    weights to bf16 (biases stay f32).  Call ONCE at init and reuse."""
    w1, b1, w21, b21, w22, b22, w3, b3, w4, b4 = params
    f32, bf16 = jnp.float32, jnp.bfloat16

    def pad_w(w, rows, cols):
        return jnp.zeros((rows, cols), f32).at[:w.shape[0], :w.shape[1]].set(w)

    def pad_b(b, cols):
        return jnp.zeros((1, cols), f32).at[:, :b.shape[-1]].set(b.reshape(1, -1))

    W1 = pad_w(w1, IN_PAD, HID_PAD).astype(bf16)              # (896, 512)
    B1 = pad_b(b1, HID_PAD)                                   # (1, 512)

    # fc21 -> lanes [0,20), fc22 -> lanes [64,84) of a single 128-lane slab.
    W2 = jnp.zeros((HID_PAD, LAT_SLAB), f32)
    W2 = W2.at[:HID, :LAT].set(w21).at[:HID, LAT_HALF:LAT_HALF + LAT].set(w22)
    W2 = W2.astype(bf16)                                      # (512, 128)
    B2 = jnp.zeros((1, LAT_SLAB), f32)
    B2 = (B2.at[:, :LAT].set(b21.reshape(1, -1))
             .at[:, LAT_HALF:LAT_HALF + LAT].set(b22.reshape(1, -1)))

    W3 = pad_w(w3, Z_PAD, HID_PAD).astype(bf16)               # (64, 512)
    B3 = pad_b(b3, HID_PAD)                                   # (1, 512)
    W4 = pad_w(w4, HID_PAD, IN_PAD).astype(bf16)              # (512, 896)
    B4 = pad_b(b4, IN_PAD)                                    # (1, 896)
    return (W1, B1, W2, B2, W3, B3, W4, B4)


@functools.partial(jax.jit, static_argnames=("block_b",))
def vae_forward(x_img, eps, packed, *, block_b=512):
    """Forward pass with PRE-PACKED weights (see pack_params). block_b=256..1024
    in production; weights are amortized across all batch tiles of one call."""
    B = x_img.shape[0]

    # Batch tile: multiple of 16 (bf16 sublane packing), capped at the padded batch.
    block_b = max(16, min(_round_up(block_b, 16), _round_up(B, 16)))
    B_pad = _round_up(B, block_b)
    n_tiles = B_pad // block_b

    # x.view(-1, 784): cast to bf16 BEFORE padding (pad moves half the bytes),
    # zero-pad rows to B_pad and lanes to 896.
    x = x_img.reshape(B, IN_DIM).astype(jnp.bfloat16)
    x = jnp.pad(x, ((0, B_pad - B), (0, IN_PAD - IN_DIM)))
    # eps as bf16, padded to 64 lanes.
    eps_p = jnp.pad(eps.astype(jnp.bfloat16),
                    ((0, B_pad - B), (0, Z_PAD - LAT)))
    # TODO(synk): optionally generate eps in-kernel (pltpu.prng_seed +
    # pltpu.stateful_normal) to remove this input entirely; changes semantics
    # vs. externally supplied eps so it stays external here.

    row = lambda i: (i, 0)        # batch-tiled activations
    const = lambda i: (0, 0)      # weights: same block every step -> VMEM-resident
    # (On v7x with very large block_b, add pipeline_mode=pl.Buffered(1) to the
    #  weight specs to single-buffer the resident weights and save ~2 MiB VMEM.)

    in_specs = [
        pl.BlockSpec((block_b, IN_PAD), row),       # x
        pl.BlockSpec((block_b, Z_PAD), row),        # eps
    ]
    in_specs += [pl.BlockSpec(p.shape, const) for p in packed]

    out_shape = (
        jax.ShapeDtypeStruct((B_pad, IN_PAD), jnp.bfloat16),     # reconstruction (padded)
        jax.ShapeDtypeStruct((B_pad, LAT_SLAB), jnp.float32),    # mu||logvar slab (padded)
    )
    out_specs = (
        pl.BlockSpec((block_b, IN_PAD), row),
        pl.BlockSpec((block_b, LAT_SLAB), row),
    )

    recon_p, lat_p = pl.pallas_call(
        vae_kernel,
        out_shape=out_shape,
        grid=(n_tiles,),
        in_specs=in_specs,
        out_specs=out_specs,
        compiler_params=pltpu.CompilerParams(
            dimension_semantics=("parallel",),      # megacore sharding on v7x
            vmem_limit_bytes=32 << 20,              # footprint ~8 MiB at block_b=512
        ),
    )(x, eps_p, *packed)

    # Slice off padding (cheap under jit; downstream could consume padded slabs).
    recon = recon_p[:B, :IN_DIM]
    mu = lat_p[:B, :LAT]
    logvar = lat_p[:B, LAT_HALF:LAT_HALF + LAT]
    return recon, mu, logvar


def vae_reference(x_img, eps, params):
    """Pure-JAX f32 reference matching the PyTorch module."""
    w1, b1, w21, b21, w22, b22, w3, b3, w4, b4 = params
    x = x_img.reshape(x_img.shape[0], 784).astype(jnp.float32)
    h1 = jax.nn.relu(x @ w1 + b1)
    mu = h1 @ w21 + b21
    logvar = h1 @ w22 + b22
    z = eps * jnp.exp(0.5 * logvar) + mu
    h3 = jax.nn.relu(z @ w3 + b3)
    recon = jax.nn.sigmoid(h3 @ w4 + b4)
    return recon, mu, logvar


if __name__ == "__main__":
    key = jax.random.PRNGKey(0)
    k_x, k_eps, k_p = jax.random.split(key, 3)

    B = 32  # small demo batch; use 256+ (default block_b=512) in production
    x_img = jax.random.uniform(k_x, (B, 1, 28, 28), jnp.float32)   # MNIST-like NCHW
    eps = jax.random.normal(k_eps, (B, 20), jnp.float32)           # reparametrization noise
    params = init_params(k_p)
    packed = pack_params(params)   # pack ONCE, reuse every forward call

    # block_b=16 so the demo exercises a multi-tile grid with resident weights.
    recon, mu, logvar = vae_forward(x_img, eps, packed, block_b=16)
    jax.block_until_ready((recon, mu, logvar))

    assert recon.shape == (B, 784)
    assert mu.shape == (B, 20)
    assert logvar.shape == (B, 20)

    # Correctness vs. f32 reference (bf16 weights / bf16 recon => small deviation allowed).
    r_ref, mu_r, lv_r = vae_reference(x_img, eps, params)
    assert float(jnp.max(jnp.abs(recon.astype(jnp.float32) - r_ref))) < 5e-2
    assert float(jnp.max(jnp.abs(mu - mu_r))) < 5e-2
    assert float(jnp.max(jnp.abs(logvar - lv_r))) < 5e-2

    print("KERNEL_OK")
</pallas_src>

<mosaic_0001>
module attributes {stable_mosaic.version = 11 : i64} {
  func.func @vae_kernel(%arg0: i32, %arg1: memref<16x896xbf16, #tpu.memory_space<vmem>>, %arg2: memref<16x64xbf16, #tpu.memory_space<vmem>>, %arg3: memref<896x512xbf16, #tpu.memory_space<vmem>>, %arg4: memref<1x512xf32, #tpu.memory_space<vmem>>, %arg5: memref<512x128xbf16, #tpu.memory_space<vmem>>, %arg6: memref<1x128xf32, #tpu.memory_space<vmem>>, %arg7: memref<64x512xbf16, #tpu.memory_space<vmem>>, %arg8: memref<1x512xf32, #tpu.memory_space<vmem>>, %arg9: memref<512x896xbf16, #tpu.memory_space<vmem>>, %arg10: memref<1x896xf32, #tpu.memory_space<vmem>>, %arg11: memref<16x896xbf16, #tpu.memory_space<vmem>>, %arg12: memref<16x128xf32, #tpu.memory_space<vmem>>) attributes {dimension_semantics = [#tpu.dimension_semantics<parallel>], iteration_bounds = array<i64: 2>, scalar_prefetch = 0 : i64, scratch_operands = 0 : i64, tpu.core_type = #tpu.core_type<tc>, window_params = [{transform_indices = @transform_0, window_bounds = array<i64: 16, 896>}, {transform_indices = @transform_1, window_bounds = array<i64: 16, 64>}, {pipeline_mode = #tpu.pipeline_mode<synchronous>, transform_indices = @transform_2, window_bounds = array<i64: 896, 512>}, {pipeline_mode = #tpu.pipeline_mode<synchronous>, transform_indices = @transform_3, window_bounds = array<i64: 1, 512>}, {pipeline_mode = #tpu.pipeline_mode<synchronous>, transform_indices = @transform_4, window_bounds = array<i64: 512, 128>}, {pipeline_mode = #tpu.pipeline_mode<synchronous>, transform_indices = @transform_5, window_bounds = array<i64: 1, 128>}, {pipeline_mode = #tpu.pipeline_mode<synchronous>, transform_indices = @transform_6, window_bounds = array<i64: 64, 512>}, {pipeline_mode = #tpu.pipeline_mode<synchronous>, transform_indices = @transform_7, window_bounds = array<i64: 1, 512>}, {pipeline_mode = #tpu.pipeline_mode<synchronous>, transform_indices = @transform_8, window_bounds = array<i64: 512, 896>}, {pipeline_mode = #tpu.pipeline_mode<synchronous>, transform_indices = @transform_9, window_bounds = array<i64: 1, 896>}, {transform_indices = @transform_10, window_bounds = array<i64: 16, 896>}, {transform_indices = @transform_11, window_bounds = array<i64: 16, 128>}]} {
    %c0 = arith.constant 0 : index
    %c0_0 = arith.constant 0 : index
    %0 = vector.load %arg1[%c0, %c0_0] : memref<16x896xbf16, #tpu.memory_space<vmem>>, vector<16x896xbf16>
    %c0_1 = arith.constant 0 : index
    %c0_2 = arith.constant 0 : index
    %1 = vector.load %arg3[%c0_1, %c0_2] : memref<896x512xbf16, #tpu.memory_space<vmem>>, vector<896x512xbf16>
    %cst = arith.constant dense<0.000000e+00> : vector<16x512xf32>
    %2 = tpu.matmul %0, %1, %cst {dimension_numbers = #tpu.dot_dimension_numbers<[1], [0], [0], [1], [0, 0, 1, 1], [], []>} : vector<16x896xbf16>, vector<896x512xbf16>, vector<16x512xf32> -> vector<16x512xf32>
    %c0_3 = arith.constant 0 : index
    %c0_4 = arith.constant 0 : index
    %3 = vector.load %arg4[%c0_3, %c0_4] : memref<1x512xf32, #tpu.memory_space<vmem>>, vector<1x512xf32>
    %4 = vector.broadcast %3 : vector<1x512xf32> to vector<16x512xf32>
    %5 = arith.addf %2, %4 : vector<16x512xf32>
    %cst_5 = arith.constant 0.000000e+00 : f32
    %6 = vector.broadcast %cst_5 : f32 to vector<16x512xf32>
    %7 = arith.maximumf %5, %6 : vector<16x512xf32>
    %8 = arith.truncf %7 : vector<16x512xf32> to vector<16x512xbf16>
    %c0_6 = arith.constant 0 : index
    %c0_7 = arith.constant 0 : index
    %9 = vector.load %arg5[%c0_6, %c0_7] : memref<512x128xbf16, #tpu.memory_space<vmem>>, vector<512x128xbf16>
    %cst_8 = arith.constant dense<0.000000e+00> : vector<16x128xf32>
    %10 = tpu.matmul %8, %9, %cst_8 {dimension_numbers = #tpu.dot_dimension_numbers<[1], [0], [0], [1], [0, 0, 1, 1], [], []>} : vector<16x512xbf16>, vector<512x128xbf16>, vector<16x128xf32> -> vector<16x128xf32>
    %c0_9 = arith.constant 0 : index
    %c0_10 = arith.constant 0 : index
    %11 = vector.load %arg6[%c0_9, %c0_10] : memref<1x128xf32, #tpu.memory_space<vmem>>, vector<1x128xf32>
    %12 = vector.broadcast %11 : vector<1x128xf32> to vector<16x128xf32>
    %13 = arith.addf %10, %12 : vector<16x128xf32>
    %14 = vector.extract_strided_slice %13 {offsets = [0, 0], sizes = [16, 64], strides = [1, 1]} : vector<16x128xf32> to vector<16x64xf32>
    %15 = vector.extract_strided_slice %13 {offsets = [0, 64], sizes = [16, 64], strides = [1, 1]} : vector<16x128xf32> to vector<16x64xf32>
    %c0_11 = arith.constant 0 : index
    %c0_12 = arith.constant 0 : index
    %16 = vector.load %arg2[%c0_11, %c0_12] : memref<16x64xbf16, #tpu.memory_space<vmem>>, vector<16x64xbf16>
    %17 = arith.extf %16 : vector<16x64xbf16> to vector<16x64xf32>
    %cst_13 = arith.constant 5.000000e-01 : f32
    %18 = vector.broadcast %cst_13 : f32 to vector<16x64xf32>
    %19 = arith.mulf %18, %15 : vector<16x64xf32>
    %20 = math.exp %19 : vector<16x64xf32>
    %21 = arith.mulf %17, %20 : vector<16x64xf32>
    %22 = arith.addf %21, %14 : vector<16x64xf32>
    %23 = arith.truncf %22 : vector<16x64xf32> to vector<16x64xbf16>
    %c0_14 = arith.constant 0 : index
    %c0_15 = arith.constant 0 : index
    %24 = vector.load %arg7[%c0_14, %c0_15] : memref<64x512xbf16, #tpu.memory_space<vmem>>, vector<64x512xbf16>
    %cst_16 = arith.constant dense<0.000000e+00> : vector<16x512xf32>
    %25 = tpu.matmul %23, %24, %cst_16 {dimension_numbers = #tpu.dot_dimension_numbers<[1], [0], [0], [1], [0, 0, 1, 1], [], []>} : vector<16x64xbf16>, vector<64x512xbf16>, vector<16x512xf32> -> vector<16x512xf32>
    %c0_17 = arith.constant 0 : index
    %c0_18 = arith.constant 0 : index
    %26 = vector.load %arg8[%c0_17, %c0_18] : memref<1x512xf32, #tpu.memory_space<vmem>>, vector<1x512xf32>
    %27 = vector.broadcast %26 : vector<1x512xf32> to vector<16x512xf32>
    %28 = arith.addf %25, %27 : vector<16x512xf32>
    %cst_19 = arith.constant 0.000000e+00 : f32
    %29 = vector.broadcast %cst_19 : f32 to vector<16x512xf32>
    %30 = arith.maximumf %28, %29 : vector<16x512xf32>
    %31 = arith.truncf %30 : vector<16x512xf32> to vector<16x512xbf16>
    %c0_20 = arith.constant 0 : index
    %c0_21 = arith.constant 0 : index
    %32 = vector.load %arg9[%c0_20, %c0_21] : memref<512x896xbf16, #tpu.memory_space<vmem>>, vector<512x896xbf16>
    %cst_22 = arith.constant dense<0.000000e+00> : vector<16x896xf32>
    %33 = tpu.matmul %31, %32, %cst_22 {dimension_numbers = #tpu.dot_dimension_numbers<[1], [0], [0], [1], [0, 0, 1, 1], [], []>} : vector<16x512xbf16>, vector<512x896xbf16>, vector<16x896xf32> -> vector<16x896xf32>
    %c0_23 = arith.constant 0 : index
    %c0_24 = arith.constant 0 : index
    %34 = vector.load %arg10[%c0_23, %c0_24] : memref<1x896xf32, #tpu.memory_space<vmem>>, vector<1x896xf32>
    %35 = vector.broadcast %34 : vector<1x896xf32> to vector<16x896xf32>
    %36 = arith.addf %33, %35 : vector<16x896xf32>
    %37 = arith.negf %36 : vector<16x896xf32>
    %38 = math.exp %37 : vector<16x896xf32>
    %cst_25 = arith.constant 1.000000e+00 : f32
    %39 = vector.broadcast %cst_25 : f32 to vector<16x896xf32>
    %40 = arith.addf %39, %38 : vector<16x896xf32>
    %41 = arith.divf %39, %40 : vector<16x896xf32>
    %42 = arith.truncf %41 : vector<16x896xf32> to vector<16x896xbf16>
    %c0_26 = arith.constant 0 : index
    %c0_27 = arith.constant 0 : index
    %43 = vector.load %arg11[%c0_26, %c0_27] : memref<16x896xbf16, #tpu.memory_space<vmem>>, vector<16x896xbf16>
    tpu.vector_store %arg11[%c0_26, %c0_27], %42 {strides = array<i32>} : memref<16x896xbf16, #tpu.memory_space<vmem>>, vector<16x896xbf16>,
    %c0_28 = arith.constant 0 : index
    %c0_29 = arith.constant 0 : index
    %44 = vector.load %arg12[%c0_28, %c0_29] : memref<16x128xf32, #tpu.memory_space<vmem>>, vector<16x128xf32>
    tpu.vector_store %arg12[%c0_28, %c0_29], %13 {strides = array<i32>} : memref<16x128xf32, #tpu.memory_space<vmem>>, vector<16x128xf32>,
    return
  }
  func.func @transform_0(%arg0: i32) -> (i32, i32) {
    %c0_i32 = arith.constant 0 : i32
    %c0_i32_0 = arith.constant 0 : i32
    return %arg0, %c0_i32 : i32, i32
  }
  func.func @transform_1(%arg0: i32) -> (i32, i32) {
    %c0_i32 = arith.constant 0 : i32
    %c0_i32_0 = arith.constant 0 : i32
    return %arg0, %c0_i32 : i32, i32
  }
  func.func @transform_2(%arg0: i32) -> (i32, i32) {
    %c0_i32 = arith.constant 0 : i32
    %c0_i32_0 = arith.constant 0 : i32
    %c0_i32_1 = arith.constant 0 : i32
    return %c0_i32, %c0_i32_0 : i32, i32
  }
  func.func @transform_3(%arg0: i32) -> (i32, i32) {
    %c0_i32 = arith.constant 0 : i32
    %c0_i32_0 = arith.constant 0 : i32
    %c0_i32_1 = arith.constant 0 : i32
    return %c0_i32, %c0_i32_0 : i32, i32
  }
  func.func @transform_4(%arg0: i32) -> (i32, i32) {
    %c0_i32 = arith.constant 0 : i32
    %c0_i32_0 = arith.constant 0 : i32
    %c0_i32_1 = arith.constant 0 : i32
    return %c0_i32, %c0_i32_0 : i32, i32
  }
  func.func @transform_5(%arg0: i32) -> (i32, i32) {
    %c0_i32 = arith.constant 0 : i32
    %c0_i32_0 = arith.constant 0 : i32
    %c0_i32_1 = arith.constant 0 : i32
    return %c0_i32, %c0_i32_0 : i32, i32
  }
  func.func @transform_6(%arg0: i32) -> (i32, i32) {
    %c0_i32 = arith.constant 0 : i32
    %c0_i32_0 = arith.constant 0 : i32
    %c0_i32_1 = arith.constant 0 : i32
    return %c0_i32, %c0_i32_0 : i32, i32
  }
  func.func @transform_7(%arg0: i32) -> (i32, i32) {
    %c0_i32 = arith.constant 0 : i32
    %c0_i32_0 = arith.constant 0 : i32
    %c0_i32_1 = arith.constant 0 : i32
    return %c0_i32, %c0_i32_0 : i32, i32
  }
  func.func @transform_8(%arg0: i32) -> (i32, i32) {
    %c0_i32 = arith.constant 0 : i32
    %c0_i32_0 = arith.constant 0 : i32
    %c0_i32_1 = arith.constant 0 : i32
    return %c0_i32, %c0_i32_0 : i32, i32
  }
  func.func @transform_9(%arg0: i32) -> (i32, i32) {
    %c0_i32 = arith.constant 0 : i32
    %c0_i32_0 = arith.constant 0 : i32
    %c0_i32_1 = arith.constant 0 : i32
    return %c0_i32, %c0_i32_0 : i32, i32
  }
  func.func @transform_10(%arg0: i32) -> (i32, i32) {
    %c0_i32 = arith.constant 0 : i32
    %c0_i32_0 = arith.constant 0 : i32
    return %arg0, %c0_i32 : i32, i32
  }
  func.func @transform_11(%arg0: i32) -> (i32, i32) {
    %c0_i32 = arith.constant 0 : i32
    %c0_i32_0 = arith.constant 0 : i32
    return %arg0, %c0_i32 : i32, i32
  }
}

</mosaic_0001>

<llo_original>
// kernel: vae_forward.1
$region0: #{vae_forward.1}
  #allocation0 [shape = 'u32[]', space=smem, size = 0x4, offset = 0x4, fixed_abs, tag = 'smem constant byte address 0x4 - core index']
  #allocation1 [shape = 'u32[72,128]{1,0:T(1,128)}', space=vmem, size = 0x9000, scoped, tag = 'internal scratch']
  %s0 = inlined_call_operand.vmem [shape: bf16[32,896], index: 0, kind: input, shape index: {}]
  %s1 = inlined_call_operand.vmem [shape: bf16[32,64], index: 1, kind: input, shape index: {}]
  %s2 = inlined_call_operand.vmem [shape: bf16[896,512], index: 2, kind: input, shape index: {}]
  %s3 = inlined_call_operand.vmem [shape: f32[1,512], index: 3, kind: input, shape index: {}]
  %s4 = inlined_call_operand.vmem [shape: bf16[512,128], index: 4, kind: input, shape index: {}]
  %s5 = inlined_call_operand.vmem [shape: f32[1,128], index: 5, kind: input, shape index: {}]
  %s6 = inlined_call_operand.vmem [shape: bf16[64,512], index: 6, kind: input, shape index: {}]
  %s7 = inlined_call_operand.vmem [shape: f32[1,512], index: 7, kind: input, shape index: {}]
  %s8 = inlined_call_operand.hbm [shape: bf16[512,896], index: 8, kind: input, shape index: {}]
  %s9 = inlined_call_operand.vmem [shape: f32[1,896], index: 9, kind: input, shape index: {}]
  %s10 = inlined_call_operand.hbm [shape: bf16[32,896], index: 10, kind: output, shape index: {0}]
  %s11 = inlined_call_operand.vmem [shape: f32[32,128], index: 11, kind: output, shape index: {1}]
  %12 = xla_tuple %s10, %s11
  %s13 = sld [smem:[#allocation0]]
  $region85: #{vae_forward.1} parent=0
    _
  %s15 = ssub.s32 1, %s13
  %s16 = scalar_select 0, %s15, %s13
  $region1: #{vae_forward.1} parent=0
    #allocation2 [shape = 'u8[917504]{0}', space=vmem, size = 0xe0000, scoped, tag = 'input window, operand 8, single buffered']
    #allocation3 [shape = 's32[2]{0}', space=sflag, size = 0x8, scoped, tag = 'scoped memory for vae_forward.1']
    #allocation4 [shape = 's32[2]{0}', space=sflag, size = 0x8, scoped, tag = 'scoped memory for vae_forward.1']
    #allocation5 [shape = 'u8[57344]{0}', space=vmem, size = 0xe000, scoped, tag = 'output window, operand 0']
    %17 = vsyncpa [#allocation3], 0
    %18 = vsyncpa [#allocation4], 0
    %s19 = scalar_lea.sflag [#allocation4], 1
    %20 = vsyncpa %s19, 0
    loop: start=0, step=1, limit=4
    $region2: #{vae_forward.1} parent=1 // loop_pre_header
      _
    $region3: #{vae_forward.1} parent=1 // loop_header
      %s22 = sphi 0, %s26
      %p23 = scmp.ge.s32.totalorder %s22, 4
      %s32 = sphi 0, %s34
      %s35 = sphi 0, %s32
      %s36 = sphi 0, %s35
      %s52 = sphi 0, %s36
      %s58 = sphi 0, %s60
      %s61 = sphi 0, %s58
      %s62 = sphi 0, %s61
      %s78 = sphi 0, %s62
      %s82 = sphi 0, %s82
      %s84 = sphi 0, %s82
      %s85 = sphi 0, %s84
      %s99 = sphi 0, %s85
      %s103 = sphi 0, %s103
      %s105 = sphi 0, %s103
      %s106 = sphi 0, %s105
      %s120 = sphi 0, %s106
      %s124 = sphi 0, %s124
      %s126 = sphi 0, %s124
      %s127 = sphi 0, %s126
      %s141 = sphi 0, %s127
      %s145 = sphi 0, %s145
      %s147 = sphi 0, %s145
      %s148 = sphi 0, %s147
      %s162 = sphi 0, %s148
      %s166 = sphi 0, %s166
      %s168 = sphi 0, %s166
      %s169 = sphi 0, %s168
      %s183 = sphi 0, %s169
      %s187 = sphi 0, %s187
      %s189 = sphi 0, %s187
      %s190 = sphi 0, %s189
      %s204 = sphi 0, %s190
      %s208 = sphi 0, %s208
      %s210 = sphi 0, %s208
      %s211 = sphi 0, %s210
      %s225 = sphi 0, %s211
      %s229 = sphi 0, %s229
      %s231 = sphi 0, %s229
      %s232 = sphi 0, %s231
      %s246 = sphi 0, %s232
      %s252 = sphi 0, %s254
      %s255 = sphi 0, %s252
      %s256 = sphi 0, %s255
      %s272 = sphi 0, %s256
      %s278 = sphi 0, %s280
      %s281 = sphi 0, %s278
      %s282 = sphi 0, %s281
      %s298 = sphi 0, %s282
    $region4: #{vae_forward.1} parent=1 // loop_header_branch
      %25 = sbr.rel (%p23) target = $region8
    $region5: #{vae_forward.1} parent=1 // loop_body
      %s27 = ssub.s32 %s22, 1
      %s28 = ssub.s32 %s22, 2
      %s29 = sadd.s32 %s22, 1
      %s30 = ssub.s32 %s22, %s29
      %p31 = scmp.eq.s32.totalorder %s30, 0
      %s33 = sadd.s32 %s32, 1
      %s34 = scalar_select %p31, %s32, %s33
      %p37 = pneg %p31
      %p38 = scmp.eq.s32.totalorder %s22, 1
      %p39 = por %p37, %p38
      %p40 = scmp.ne.s32.totalorder %s32, %s35
      %p41 = scmp.eq.s32.totalorder %s22, 0
      %p42 = por %p40, %p41
      %p43 = scmp.ne.s32.totalorder %s32, %s35
      %p44 = scmp.eq.s32.totalorder %s27, 1
      %p45 = por %p43, %p44
      %p46 = scmp.ne.s32.totalorder %s35, %s36
      %p47 = scmp.eq.s32.totalorder %s27, 0
      %p48 = por %p46, %p47
      %p49 = scmp.ne.s32.totalorder %s35, %s36
      %p50 = scmp.eq.s32.totalorder %s28, 1
      %p51 = por %p49, %p50
      %p53 = scmp.ne.s32.totalorder %s36, %s52
      %p54 = scmp.eq.s32.totalorder %s28, 0
      %p55 = por %p53, %p54
      %s56 = ssub.s32 %s22, %s29
      %p57 = scmp.eq.s32.totalorder %s56, 0
      %s59 = sadd.s32 %s58, 1
      %s60 = scalar_select %p57, %s58, %s59
      %p63 = pneg %p57
      %p64 = scmp.eq.s32.totalorder %s22, 1
      %p65 = por %p63, %p64
      %p66 = scmp.ne.s32.totalorder %s58, %s61
      %p67 = scmp.eq.s32.totalorder %s22, 0
      %p68 = por %p66, %p67
      %p69 = scmp.ne.s32.totalorder %s58, %s61
      %p70 = scmp.eq.s32.totalorder %s27, 1
      %p71 = por %p69, %p70
      %p72 = scmp.ne.s32.totalorder %s61, %s62
      %p73 = scmp.eq.s32.totalorder %s27, 0
      %p74 = por %p72, %p73
      %p75 = scmp.ne.s32.totalorder %s61, %s62
      %p76 = scmp.eq.s32.totalorder %s28, 1
      %p77 = por %p75, %p76
      %p79 = scmp.ne.s32.totalorder %s62, %s78
      %p80 = scmp.eq.s32.totalorder %s28, 0
      %p81 = por %p79, %p80
      %s83 = sadd.s32 %s82, 1
      %p86 = scmp.eq.s32.totalorder %s22, 1
      %p87 = scmp.ne.s32.totalorder %s82, %s84
      %p88 = scmp.eq.s32.totalorder %s22, 0
      %p89 = por %p87, %p88
      %p90 = scmp.ne.s32.totalorder %s82, %s84
      %p91 = scmp.eq.s32.totalorder %s27, 1
      %p92 = por %p90, %p91
      %p93 = scmp.ne.s32.totalorder %s84, %s85
      %p94 = scmp.eq.s32.totalorder %s27, 0
      %p95 = por %p93, %p94
      %p96 = scmp.ne.s32.totalorder %s84, %s85
      %p97 = scmp.eq.s32.totalorder %s28, 1
      %p98 = por %p96, %p97
      %p100 = scmp.ne.s32.totalorder %s85, %s99
      %p101 = scmp.eq.s32.totalorder %s28, 0
      %p102 = por %p100, %p101
      %s104 = sadd.s32 %s103, 1
      %p107 = scmp.eq.s32.totalorder %s22, 1
      %p108 = scmp.ne.s32.totalorder %s103, %s105
      %p109 = scmp.eq.s32.totalorder %s22, 0
      %p110 = por %p108, %p109
      %p111 = scmp.ne.s32.totalorder %s103, %s105
      %p112 = scmp.eq.s32.totalorder %s27, 1
      %p113 = por %p111, %p112
      %p114 = scmp.ne.s32.totalorder %s105, %s106
      %p115 = scmp.eq.s32.totalorder %s27, 0
      %p116 = por %p114, %p115
      %p117 = scmp.ne.s32.totalorder %s105, %s106
      %p118 = scmp.eq.s32.totalorder %s28, 1
      %p119 = por %p117, %p118
      %p121 = scmp.ne.s32.totalorder %s106, %s120
      %p122 = scmp.eq.s32.totalorder %s28, 0
      %p123 = por %p121, %p122
      %s125 = sadd.s32 %s124, 1
      %p128 = scmp.eq.s32.totalorder %s22, 1
      %p129 = scmp.ne.s32.totalorder %s124, %s126
      %p130 = scmp.eq.s32.totalorder %s22, 0
      %p131 = por %p129, %p130
      %p132 = scmp.ne.s32.totalorder %s124, %s126
      %p133 = scmp.eq.s32.totalorder %s27, 1
      %p134 = por %p132, %p133
      %p135 = scmp.ne.s32.totalorder %s126, %s127
      %p136 = scmp.eq.s32.totalorder %s27, 0
      %p137 = por %p135, %p136
      %p138 = scmp.ne.s32.totalorder %s126, %s127
      %p139 = scmp.eq.s32.totalorder %s28, 1
      %p140 = por %p138, %p139
      %p142 = scmp.ne.s32.totalorder %s127, %s141
      %p143 = scmp.eq.s32.totalorder %s28, 0
      %p144 = por %p142, %p143
      %s146 = sadd.s32 %s145, 1
      %p149 = scmp.eq.s32.totalorder %s22, 1
      %p150 = scmp.ne.s32.totalorder %s145, %s147
      %p151 = scmp.eq.s32.totalorder %s22, 0
      %p152 = por %p150, %p151
      %p153 = scmp.ne.s32.totalorder %s145, %s147
      %p154 = scmp.eq.s32.totalorder %s27, 1
      %p155 = por %p153, %p154
      %p156 = scmp.ne.s32.totalorder %s147, %s148
      %p157 = scmp.eq.s32.totalorder %s27, 0
      %p158 = por %p156, %p157
      %p159 = scmp.ne.s32.totalorder %s147, %s148
      %p160 = scmp.eq.s32.totalorder %s28, 1
      %p161 = por %p159, %p160
      %p163 = scmp.ne.s32.totalorder %s148, %s162
      %p164 = scmp.eq.s32.totalorder %s28, 0
      %p165 = por %p163, %p164
      %s167 = sadd.s32 %s166, 1
      %p170 = scmp.eq.s32.totalorder %s22, 1
      %p171 = scmp.ne.s32.totalorder %s166, %s168
      %p172 = scmp.eq.s32.totalorder %s22, 0
      %p173 = por %p171, %p172
      %p174 = scmp.ne.s32.totalorder %s166, %s168
      %p175 = scmp.eq.s32.totalorder %s27, 1
      %p176 = por %p174, %p175
      %p177 = scmp.ne.s32.totalorder %s168, %s169
      %p178 = scmp.eq.s32.totalorder %s27, 0
      %p179 = por %p177, %p178
      %p180 = scmp.ne.s32.totalorder %s168, %s169
      %p181 = scmp.eq.s32.totalorder %s28, 1
      %p182 = por %p180, %p181
      %p184 = scmp.ne.s32.totalorder %s169, %s183
      %p185 = scmp.eq.s32.totalorder %s28, 0
      %p186 = por %p184, %p185
      %s188 = sadd.s32 %s187, 1
      %p191 = scmp.eq.s32.totalorder %s22, 1
      %p192 = scmp.ne.s32.totalorder %s187, %s189
      %p193 = scmp.eq.s32.totalorder %s22, 0
      %p194 = por %p192, %p193
      %p195 = scmp.ne.s32.totalorder %s187, %s189
      %p196 = scmp.eq.s32.totalorder %s27, 1
      %p197 = por %p195, %p196
      %p198 = scmp.ne.s32.totalorder %s189, %s190
      %p199 = scmp.eq.s32.totalorder %s27, 0
      %p200 = por %p198, %p199
      %p201 = scmp.ne.s32.totalorder %s189, %s190
      %p202 = scmp.eq.s32.totalorder %s28, 1
      %p203 = por %p201, %p202
      %p205 = scmp.ne.s32.totalorder %s190, %s204
      %p206 = scmp.eq.s32.totalorder %s28, 0
      %p207 = por %p205, %p206
      %s209 = sadd.s32 %s208, 1
      %p212 = scmp.eq.s32.totalorder %s22, 1
      %p213 = scmp.ne.s32.totalorder %s208, %s210
      %p214 = scmp.eq.s32.totalorder %s22, 0
      %p215 = por %p213, %p214
      %p216 = scmp.ne.s32.totalorder %s208, %s210
      %p217 = scmp.eq.s32.totalorder %s27, 1
      %p218 = por %p216, %p217
      %p219 = scmp.ne.s32.totalorder %s210, %s211
      %p220 = scmp.eq.s32.totalorder %s27, 0
      %p221 = por %p219, %p220
      %p222 = scmp.ne.s32.totalorder %s210, %s211
      %p223 = scmp.eq.s32.totalorder %s28, 1
      %p224 = por %p222, %p223
      %p226 = scmp.ne.s32.totalorder %s211, %s225
      %p227 = scmp.eq.s32.totalorder %s28, 0
      %p228 = por %p226, %p227
      %s230 = sadd.s32 %s229, 1
      %p233 = scmp.eq.s32.totalorder %s22, 1
      %p234 = scmp.ne.s32.totalorder %s229, %s231
      %p235 = scmp.eq.s32.totalorder %s22, 0
      %p236 = por %p234, %p235
      %p237 = scmp.ne.s32.totalorder %s229, %s231
      %p238 = scmp.eq.s32.totalorder %s27, 1
      %p239 = por %p237, %p238
      %p240 = scmp.ne.s32.totalorder %s231, %s232
      %p241 = scmp.eq.s32.totalorder %s27, 0
      %p242 = por %p240, %p241
      %p243 = scmp.ne.s32.totalorder %s231, %s232
      %p244 = scmp.eq.s32.totalorder %s28, 1
      %p245 = por %p243, %p244
      %p247 = scmp.ne.s32.totalorder %s232, %s246
      %p248 = scmp.eq.s32.totalorder %s28, 0
      %p249 = por %p247, %p248
      %s250 = ssub.s32 %s22, %s29
      %p251 = scmp.eq.s32.totalorder %s250, 0
      %s253 = sadd.s32 %s252, 1
      %s254 = scalar_select %p251, %s252, %s253
      %p257 = pneg %p251
      %p258 = scmp.eq.s32.totalorder %s22, 1
      %p259 = por %p257, %p258
      %p260 = scmp.ne.s32.totalorder %s252, %s255
      %p261 = scmp.eq.s32.totalorder %s22, 0
      %p262 = por %p260, %p261
      %p263 = scmp.ne.s32.totalorder %s252, %s255
      %p264 = scmp.eq.s32.totalorder %s27, 1
      %p265 = por %p263, %p264
      %p266 = scmp.ne.s32.totalorder %s255, %s256
      %p267 = scmp.eq.s32.totalorder %s27, 0
      %p268 = por %p266, %p267
      %p269 = scmp.ne.s32.totalorder %s255, %s256
      %p270 = scmp.eq.s32.totalorder %s28, 1
      %p271 = por %p269, %p270
      %p273 = scmp.ne.s32.totalorder %s256, %s272
      %p274 = scmp.eq.s32.totalorder %s28, 0
      %p275 = por %p273, %p274
      %s276 = ssub.s32 %s22, %s29
      %p277 = scmp.eq.s32.totalorder %s276, 0
      %s279 = sadd.s32 %s278, 1
      %s280 = scalar_select %p277, %s278, %s279
      %p283 = pneg %p277
      %p284 = scmp.eq.s32.totalorder %s22, 1
      %p285 = por %p283, %p284
      %p286 = scmp.ne.s32.totalorder %s278, %s281
      %p287 = scmp.eq.s32.totalorder %s22, 0
      %p288 = por %p286, %p287
      %p289 = scmp.ne.s32.totalorder %s278, %s281
      %p290 = scmp.eq.s32.totalorder %s27, 1
      %p291 = por %p289, %p290
      %p292 = scmp.ne.s32.totalorder %s281, %s282
      %p293 = scmp.eq.s32.totalorder %s27, 0
      %p294 = por %p292, %p293
      %p295 = scmp.ne.s32.totalorder %s281, %s282
      %p296 = scmp.eq.s32.totalorder %s28, 1
      %p297 = por %p295, %p296
      %p299 = scmp.ne.s32.totalorder %s282, %s298
      %p300 = scmp.eq.s32.totalorder %s28, 0
      %p301 = por %p299, %p300
      %p302 = scmp.le.s32.totalorder 1, %s22
      %p303 = scmp.lt.s32.totalorder %s22, 3
      %p304 = pnand %p302, %p303
      %p305 = pneg %p304
      // Predicated region
      $region9: #{vae_forward.1} parent=5 // pred_check
        _
      $region10: #{vae_forward.1} parent=5 // pred_check_branch
        %307 = sbr.rel (%p304) target = $region12
      $region11: #{vae_forward.1} parent=5 // pred_region
        %s308 = ssub.s32 %s22, 1
        // Predicated region
        $region13: #{vae_forward.1} parent=11 // pred_check
          %p309 = pneg %p95
        $region14: #{vae_forward.1} parent=11 // pred_check_branch
          %311 = sbr.rel (%p309) target = $region16
        $region15: #{vae_forward.1} parent=11 // pred_region
          _
        $region16: #{vae_forward.1} parent=11 // pred_fallthru
          _
        // Predicated region
        $region17: #{vae_forward.1} parent=11 // pred_check
          %p312 = pneg %p116
        $region18: #{vae_forward.1} parent=11 // pred_check_branch
          %314 = sbr.rel (%p312) target = $region20
        $region19: #{vae_forward.1} parent=11 // pred_region
          _
        $region20: #{vae_forward.1} parent=11 // pred_fallthru
          _
        // Predicated region
        $region21: #{vae_forward.1} parent=11 // pred_check
          %p315 = pneg %p137
        $region22: #{vae_forward.1} parent=11 // pred_check_branch
          %317 = sbr.rel (%p315) target = $region24
        $region23: #{vae_forward.1} parent=11 // pred_region
          _
        $region24: #{vae_forward.1} parent=11 // pred_fallthru
          _
        // Predicated region
        $region25: #{vae_forward.1} parent=11 // pred_check
          %p318 = pneg %p158
        $region26: #{vae_forward.1} parent=11 // pred_check_branch
          %320 = sbr.rel (%p318) target = $region28
        $region27: #{vae_forward.1} parent=11 // pred_region
          _
        $region28: #{vae_forward.1} parent=11 // pred_fallthru
          _
        // Predicated region
        $region29: #{vae_forward.1} parent=11 // pred_check
          %p321 = pneg %p179
        $region30: #{vae_forward.1} parent=11 // pred_check_branch
          %323 = sbr.rel (%p321) target = $region32
        $region31: #{vae_forward.1} parent=11 // pred_region
          _
        $region32: #{vae_forward.1} parent=11 // pred_fallthru
          _
        // Predicated region
        $region33: #{vae_forward.1} parent=11 // pred_check
          %p324 = pneg %p200
        $region34: #{vae_forward.1} parent=11 // pred_check_branch
          %326 = sbr.rel (%p324) target = $region36
        $region35: #{vae_forward.1} parent=11 // pred_region
          _
        $region36: #{vae_forward.1} parent=11 // pred_fallthru
          _
        // Predicated region
        $region37: #{vae_forward.1} parent=11 // pred_check
          %p327 = pneg %p221
        $region38: #{vae_forward.1} parent=11 // pred_check_branch
          %329 = sbr.rel (%p327) target = $region40
        $region39: #{vae_forward.1} parent=11 // pred_region
          %331 = vsyncadd [#allocation3], 0
          %s332 = sshll.u32 %s8, 4
          %s333 = int_to_ptr.hbm [resolvable:$true] %s332
          %s334 = sshll.u32 [#allocation2], 4
          %s335 = int_to_ptr.vmem [resolvable:$true] %s334
          %340 = dma.hbm_to_vmem [thread:$0]  %s333, 28672, %s335, [#allocation3], 448, 448, 28
        $region40: #{vae_forward.1} parent=11 // pred_fallthru
          _
        // Predicated region
        $region41: #{vae_forward.1} parent=11 // pred_check
          %p341 = pneg %p242
        $region42: #{vae_forward.1} parent=11 // pred_check_branch
          %343 = sbr.rel (%p341) target = $region44
        $region43: #{vae_forward.1} parent=11 // pred_region
          _
        $region44: #{vae_forward.1} parent=11 // pred_fallthru
          _
      $region12: #{vae_forward.1} parent=5 // pred_fallthru
        _
      %p344 = scmp.lt.s32.totalorder %s22, 2
      // Predicated region
      $region45: #{vae_forward.1} parent=5 // pred_check
        %p345 = pneg %p344
      $region46: #{vae_forward.1} parent=5 // pred_check_branch
        %347 = sbr.rel (%p345) target = $region48
      $region47: #{vae_forward.1} parent=5 // pred_region
        // Predicated region
        $region49: #{vae_forward.1} parent=47 // pred_check
          %p348 = pneg %p42
        $region50: #{vae_forward.1} parent=47 // pred_check_branch
          %350 = sbr.rel (%p348) target = $region52
        $region51: #{vae_forward.1} parent=47 // pred_region
          %s351 = smul.u32 2, %s22
          %p352 = scmp.lt.s32.totalorder %s351, 3
          %s353 = scalar_select %p352, %s351, 3
          %s354 = smul.addr %s353, 7
          %s355 = smul.addr %s354, 4
          %s356 = scalar_lea.vmem %s0, %s355
          %s357 = smul.u32 2, %s22
        $region52: #{vae_forward.1} parent=47 // pred_fallthru
          _
        // Predicated region
        $region53: #{vae_forward.1} parent=47 // pred_check
          %p358 = pneg %p68
        $region54: #{vae_forward.1} parent=47 // pred_check_branch
          %360 = sbr.rel (%p358) target = $region56
        $region55: #{vae_forward.1} parent=47 // pred_region
          %s361 = smul.u32 2, %s22
          %p362 = scmp.lt.s32.totalorder %s361, 3
          %s363 = scalar_select %p362, %s361, 3
          %s364 = smul.addr %s363, 4
          %s365 = scalar_lea.vmem %s1, %s364
          %s366 = smul.u32 2, %s22
        $region56: #{vae_forward.1} parent=47 // pred_fallthru
          _
      $region48: #{vae_forward.1} parent=5 // pred_fallthru
        _
      %p367 = scmp.le.s32.totalorder 1, %s22
      %p368 = scmp.lt.s32.totalorder %s22, 3
      %p369 = pnand %p367, %p368
      %p370 = pneg %p369
      // Predicated region
      $region57: #{vae_forward.1} parent=5 // pred_check
        _
      $region58: #{vae_forward.1} parent=5 // pred_check_branch
        %372 = sbr.rel (%p369) target = $region60
      $region59: #{vae_forward.1} parent=5 // pred_region
        %s373 = ssub.s32 %s22, 1
        // Predicated region
        $region61: #{vae_forward.1} parent=59 // pred_check
          %p374 = pneg %p221
        $region62: #{vae_forward.1} parent=59 // pred_check_branch
          %376 = sbr.rel (%p374) target = $region64
        $region63: #{vae_forward.1} parent=59 // pred_region
          %378 = dma.done [#allocation3], 28672
        $region64: #{vae_forward.1} parent=59 // pred_fallthru
          _
        %s379 = smul.u32 2, %s27
        %p380 = scmp.lt.s32.totalorder %s379, 3
        %s381 = scalar_select %p380, %s379, 3
        %s382 = smul.addr %s381, 7
        %s383 = smul.addr %s382, 4
        %s384 = scalar_lea.vmem %s0, %s383
        %p385 = pneg %p48
        %p386 = pneg %p45
        %s387 = smul.u32 2, %s27
        %p388 = scmp.lt.s32.totalorder %s387, 3
        %s389 = scalar_select %p388, %s387, 3
        %s390 = smul.addr %s389, 4
        %s391 = scalar_lea.vmem %s1, %s390
        %p392 = pneg %p74
        %p393 = pneg %p71
        %p394 = pneg %p95
        %p395 = pneg %p92
        %p396 = pneg %p116
        %p397 = pneg %p113
        %p398 = pneg %p137
        %p399 = pneg %p134
        %p400 = pneg %p158
        %p401 = pneg %p155
        %p402 = pneg %p179
        %p403 = pneg %p176
        %p404 = pneg %p200
        %p405 = pneg %p197
        %p406 = pneg %p221
        %p407 = pneg %p218
        %p408 = pneg %p242
        %p409 = pneg %p239
        %p410 = pneg %p268
        %p411 = pneg %p265
        %s412 = sand.u32 %s255, 1
        %s413 = scalar_lea.sflag [#allocation4], %s412
        %s414 = sand.u32 %s255, 1
        %s415 = smul.addr %s414, 56
        %s416 = scalar_lea.vmem [#allocation5], %s415
        %p417 = pneg %p294
        %p418 = pneg %p291
        %s419 = smul.u32 2, %s27
        %p420 = scmp.lt.s32.totalorder %s419, 3
        %s421 = scalar_select %p420, %s419, 3
        %s422 = smul.addr %s421, 8
        %s423 = scalar_lea.vmem %s11, %s422
        %s424 = smul.u32 2, %s27
        %p425 = scmp.lt.s32.totalorder %s424, 3
        %s426 = scalar_select %p425, %s424, 3
        %s427 = smul.addr %s426, 7
        %s428 = smul.addr %s427, 4
        %s429 = scalar_lea.vmem %s0, %s428
        %s430 = smul.u32 2, %s27
        %s431 = smul.u32 2, %s27
        %p432 = scmp.lt.s32.totalorder %s431, 3
        %s433 = scalar_select %p432, %s431, 3
        %s434 = smul.addr %s433, 4
        %s435 = scalar_lea.vmem %s1, %s434
        %s436 = smul.u32 2, %s27
        %s437 = smul.u32 2, %s27
        %s438 = smul.u32 2, %s27
        %p439 = scmp.lt.s32.totalorder %s438, 3
        %s440 = scalar_select %p439, %s438, 3
        %s441 = smul.addr %s440, 8
        %s442 = scalar_lea.vmem %s11, %s441
        %s443 = smul.u32 2, %s27
        %v445 = vld [vmem:[%s429] sm:$0xff]
        %v446 = vld [vmem:[%s429 + $0x8] sm:$0xff]
        %v447 = vld [vmem:[%s429 + $0x10] sm:$0xff]
        %v448 = vld [vmem:[%s429 + $0x18] sm:$0xf]
        %v449 = vld [vmem:[%s429 + $0x1c] sm:$0xff]
        %v450 = vld [vmem:[%s429 + $0x24] sm:$0xff]
        %v451 = vld [vmem:[%s429 + $0x2c] sm:$0xff]
        %v452 = vld [vmem:[%s429 + $0x34] sm:$0xf]
        %v453 = vld [vmem:[%s2] sm:$0xff]
        %v454 = vld [vmem:[%s2 + $0x8] sm:$0xff]
        %v455 = vld [vmem:[%s2 + $0x10] sm:$0xff]
        %v456 = vld [vmem:[%s2 + $0x18] sm:$0xff]
        %v457 = vld [vmem:[%s2 + $0x20] sm:$0xff]
        %v458 = vld [vmem:[%s2 + $0x28] sm:$0xff]
        %v459 = vld [vmem:[%s2 + $0x30] sm:$0xff]
        %v460 = vld [vmem:[%s2 + $0x38] sm:$0xff]
        %v461 = vld [vmem:[%s2 + $0x40] sm:$0xff]
        %v462 = vld [vmem:[%s2 + $0x48] sm:$0xff]
        %v463 = vld [vmem:[%s2 + $0x50] sm:$0xff]
        %v464 = vld [vmem:[%s2 + $0x58] sm:$0xff]
        %v465 = vld [vmem:[%s2 + $0x60] sm:$0xff]
        %v466 = vld [vmem:[%s2 + $0x68] sm:$0xff]
        %v467 = vld [vmem:[%s2 + $0x70] sm:$0xff]
        %v468 = vld [vmem:[%s2 + $0x78] sm:$0xff]
        %v469 = vld [vmem:[%s2 + $0x80] sm:$0xff]
        %v470 = vld [vmem:[%s2 + $0x88] sm:$0xff]
        %v471 = vld [vmem:[%s2 + $0x90] sm:$0xff]
        %v472 = vld [vmem:[%s2 + $0x98] sm:$0xff]
        %v473 = vld [vmem:[%s2 + $0xa0] sm:$0xff]
        %v474 = vld [vmem:[%s2 + $0xa8] sm:$0xff]
        %v475 = vld [vmem:[%s2 + $0xb0] sm:$0xff]
        %v476 = vld [vmem:[%s2 + $0xb8] sm:$0xff]
        %v477 = vld [vmem:[%s2 + $0xc0] sm:$0xff]
        %v478 = vld [vmem:[%s2 + $0xc8] sm:$0xff]
        %v479 = vld [vmem:[%s2 + $0xd0] sm:$0xff]
        %v480 = vld [vmem:[%s2 + $0xd8] sm:$0xff]
        %v481 = vld [vmem:[%s2 + $0xe0] sm:$0xff]
        %v482 = vld [vmem:[%s2 + $0xe8] sm:$0xff]
        %v483 = vld [vmem:[%s2 + $0xf0] sm:$0xff]
        %v484 = vld [vmem:[%s2 + $0xf8] sm:$0xff]
        %v485 = vld [vmem:[%s2 + $0x100] sm:$0xff]
        %v486 = vld [vmem:[%s2 + $0x108] sm:$0xff]
        %v487 = vld [vmem:[%s2 + $0x110] sm:$0xff]
        %v488 = vld [vmem:[%s2 + $0x118] sm:$0xff]
        %v489 = vld [vmem:[%s2 + $0x120] sm:$0xff]
        %v490 = vld [vmem:[%s2 + $0x128] sm:$0xff]
        %v491 = vld [vmem:[%s2 + $0x130] sm:$0xff]
        %v492 = vld [vmem:[%s2 + $0x138] sm:$0xff]
        %v493 = vld [vmem:[%s2 + $0x140] sm:$0xff]
        %v494 = vld [vmem:[%s2 + $0x148] sm:$0xff]
        %v495 = vld [vmem:[%s2 + $0x150] sm:$0xff]
        %v496 = vld [vmem:[%s2 + $0x158] sm:$0xff]
        %v497 = vld [vmem:[%s2 + $0x160] sm:$0xff]
        %v498 = vld [vmem:[%s2 + $0x168] sm:$0xff]
        %v499 = vld [vmem:[%s2 + $0x170] sm:$0xff]
        %v500 = vld [vmem:[%s2 + $0x178] sm:$0xff]
        %v501 = vld [vmem:[%s2 + $0x180] sm:$0xff]
        %v502 = vld [vmem:[%s2 + $0x188] sm:$0xff]
        %v503 = vld [vmem:[%s2 + $0x190] sm:$0xff]
        %v504 = vld [vmem:[%s2 + $0x198] sm:$0xff]
        %v505 = vld [vmem:[%s2 + $0x1a0] sm:$0xff]
        %v506 = vld [vmem:[%s2 + $0x1a8] sm:$0xff]
        %v507 = vld [vmem:[%s2 + $0x1b0] sm:$0xff]
        %v508 = vld [vmem:[%s2 + $0x1b8] sm:$0xff]
        %v509 = vld [vmem:[%s2 + $0x1c0] sm:$0xff]
        %v510 = vld [vmem:[%s2 + $0x1c8] sm:$0xff]
        %v511 = vld [vmem:[%s2 + $0x1d0] sm:$0xff]
        %v512 = vld [vmem:[%s2 + $0x1d8] sm:$0xff]
        %v513 = vld [vmem:[%s2 + $0x1e0] sm:$0xff]
        %v514 = vld [vmem:[%s2 + $0x1e8] sm:$0xff]
        %v515 = vld [vmem:[%s2 + $0x1f0] sm:$0xff]
        %v516 = vld [vmem:[%s2 + $0x1f8] sm:$0xff]
        %v517 = vld [vmem:[%s2 + $0x200] sm:$0xff]
        %v518 = vld [vmem:[%s2 + $0x208] sm:$0xff]
        %v519 = vld [vmem:[%s2 + $0x210] sm:$0xff]
        %v520 = vld [vmem:[%s2 + $0x218] sm:$0xff]
        %v521 = vld [vmem:[%s2 + $0x220] sm:$0xff]
        %v522 = vld [vmem:[%s2 + $0x228] sm:$0xff]
        %v523 = vld [vmem:[%s2 + $0x230] sm:$0xff]
        %v524 = vld [vmem:[%s2 + $0x238] sm:$0xff]
        %v525 = vld [vmem:[%s2 + $0x240] sm:$0xff]
        %v526 = vld [vmem:[%s2 + $0x248] sm:$0xff]
        %v527 = vld [vmem:[%s2 + $0x250] sm:$0xff]
        %v528 = vld [vmem:[%s2 + $0x258] sm:$0xff]
        %v529 = vld [vmem:[%s2 + $0x260] sm:$0xff]
        %v530 = vld [vmem:[%s2 + $0x268] sm:$0xff]
        %v531 = vld [vmem:[%s2 + $0x270] sm:$0xff]
        %v532 = vld [vmem:[%s2 + $0x278] sm:$0xff]
        %v533 = vld [vmem:[%s2 + $0x280] sm:$0xff]
        %v534 = vld [vmem:[%s2 + $0x288] sm:$0xff]
        %v535 = vld [vmem:[%s2 + $0x290] sm:$0xff]
        %v536 = vld [vmem:[%s2 + $0x298] sm:$0xff]
        %v537 = vld [vmem:[%s2 + $0x2a0] sm:$0xff]
        %v538 = vld [vmem:[%s2 + $0x2a8] sm:$0xff]
        %v539 = vld [vmem:[%s2 + $0x2b0] sm:$0xff]
        %v540 = vld [vmem:[%s2 + $0x2b8] sm:$0xff]
        %v541 = vld [vmem:[%s2 + $0x2c0] sm:$0xff]
        %v542 = vld [vmem:[%s2 + $0x2c8] sm:$0xff]
        %v543 = vld [vmem:[%s2 + $0x2d0] sm:$0xff]
        %v544 = vld [vmem:[%s2 + $0x2d8] sm:$0xff]
        %v545 = vld [vmem:[%s2 + $0x2e0] sm:$0xff]
        %v546 = vld [vmem:[%s2 + $0x2e8] sm:$0xff]
        %v547 = vld [vmem:[%s2 + $0x2f0] sm:$0xff]
        %v548 = vld [vmem:[%s2 + $0x2f8] sm:$0xff]
        %v549 = vld [vmem:[%s2 + $0x300] sm:$0xff]
        %v550 = vld [vmem:[%s2 + $0x308] sm:$0xff]
        %v551 = vld [vmem:[%s2 + $0x310] sm:$0xff]
        %v552 = vld [vmem:[%s2 + $0x318] sm:$0xff]
        %v553 = vld [vmem:[%s2 + $0x320] sm:$0xff]
        %v554 = vld [vmem:[%s2 + $0x328] sm:$0xff]
        %v555 = vld [vmem:[%s2 + $0x330] sm:$0xff]
        %v556 = vld [vmem:[%s2 + $0x338] sm:$0xff]
        %v557 = vld [vmem:[%s2 + $0x340] sm:$0xff]
        %v558 = vld [vmem:[%s2 + $0x348] sm:$0xff]
        %v559 = vld [vmem:[%s2 + $0x350] sm:$0xff]
        %v560 = vld [vmem:[%s2 + $0x358] sm:$0xff]
        %v561 = vld [vmem:[%s2 + $0x360] sm:$0xff]
        %v562 = vld [vmem:[%s2 + $0x368] sm:$0xff]
        %v563 = vld [vmem:[%s2 + $0x370] sm:$0xff]
        %v564 = vld [vmem:[%s2 + $0x378] sm:$0xff]
        %v565 = vld [vmem:[%s2 + $0x380] sm:$0xff]
        %v566 = vld [vmem:[%s2 + $0x388] sm:$0xff]
        %v567 = vld [vmem:[%s2 + $0x390] sm:$0xff]
        %v568 = vld [vmem:[%s2 + $0x398] sm:$0xff]
        %v569 = vld [vmem:[%s2 + $0x3a0] sm:$0xff]
        %v570 = vld [vmem:[%s2 + $0x3a8] sm:$0xff]
        %v571 = vld [vmem:[%s2 + $0x3b0] sm:$0xff]
        %v572 = vld [vmem:[%s2 + $0x3b8] sm:$0xff]
        %v573 = vld [vmem:[%s2 + $0x3c0] sm:$0xff]
        %v574 = vld [vmem:[%s2 + $0x3c8] sm:$0xff]
        %v575 = vld [vmem:[%s2 + $0x3d0] sm:$0xff]
        %v576 = vld [vmem:[%s2 + $0x3d8] sm:$0xff]
        %v577 = vld [vmem:[%s2 + $0x3e0] sm:$0xff]
        %v578 = vld [vmem:[%s2 + $0x3e8] sm:$0xff]
        %v579 = vld [vmem:[%s2 + $0x3f0] sm:$0xff]
        %v580 = vld [vmem:[%s2 + $0x3f8] sm:$0xff]
        %v581 = vld [vmem:[%s2 + $0x400] sm:$0xff]
        %v582 = vld [vmem:[%s2 + $0x408] sm:$0xff]
        %v583 = vld [vmem:[%s2 + $0x410] sm:$0xff]
        %v584 = vld [vmem:[%s2 + $0x418] sm:$0xff]
        %v585 = vld [vmem:[%s2 + $0x420] sm:$0xff]
        %v586 = vld [vmem:[%s2 + $0x428] sm:$0xff]
        %v587 = vld [vmem:[%s2 + $0x430] sm:$0xff]
        %v588 = vld [vmem:[%s2 + $0x438] sm:$0xff]
        %v589 = vld [vmem:[%s2 + $0x440] sm:$0xff]
        %v590 = vld [vmem:[%s2 + $0x448] sm:$0xff]
        %v591 = vld [vmem:[%s2 + $0x450] sm:$0xff]
        %v592 = vld [vmem:[%s2 + $0x458] sm:$0xff]
        %v593 = vld [vmem:[%s2 + $0x460] sm:$0xff]
        %v594 = vld [vmem:[%s2 + $0x468] sm:$0xff]
        %v595 = vld [vmem:[%s2 + $0x470] sm:$0xff]
        %v596 = vld [vmem:[%s2 + $0x478] sm:$0xff]
        %v597 = vld [vmem:[%s2 + $0x480] sm:$0xff]
        %v598 = vld [vmem:[%s2 + $0x488] sm:$0xff]
        %v599 = vld [vmem:[%s2 + $0x490] sm:$0xff]
        %v600 = vld [vmem:[%s2 + $0x498] sm:$0xff]
        %v601 = vld [vmem:[%s2 + $0x4a0] sm:$0xff]
        %v602 = vld [vmem:[%s2 + $0x4a8] sm:$0xff]
        %v603 = vld [vmem:[%s2 + $0x4b0] sm:$0xff]
        %v604 = vld [vmem:[%s2 + $0x4b8] sm:$0xff]
        %v605 = vld [vmem:[%s2 + $0x4c0] sm:$0xff]
        %v606 = vld [vmem:[%s2 + $0x4c8] sm:$0xff]
        %v607 = vld [vmem:[%s2 + $0x4d0] sm:$0xff]
        %v608 = vld [vmem:[%s2 + $0x4d8] sm:$0xff]
        %v609 = vld [vmem:[%s2 + $0x4e0] sm:$0xff]
        %v610 = vld [vmem:[%s2 + $0x4e8] sm:$0xff]
        %v611 = vld [vmem:[%s2 + $0x4f0] sm:$0xff]
        %v612 = vld [vmem:[%s2 + $0x4f8] sm:$0xff]
        %v613 = vld [vmem:[%s2 + $0x500] sm:$0xff]
        %v614 = vld [vmem:[%s2 + $0x508] sm:$0xff]
        %v615 = vld [vmem:[%s2 + $0x510] sm:$0xff]
        %v616 = vld [vmem:[%s2 + $0x518] sm:$0xff]
        %v617 = vld [vmem:[%s2 + $0x520] sm:$0xff]
        %v618 = vld [vmem:[%s2 + $0x528] sm:$0xff]
        %v619 = vld [vmem:[%s2 + $0x530] sm:$0xff]
        %v620 = vld [vmem:[%s2 + $0x538] sm:$0xff]
        %v621 = vld [vmem:[%s2 + $0x540] sm:$0xff]
        %v622 = vld [vmem:[%s2 + $0x548] sm:$0xff]
        %v623 = vld [vmem:[%s2 + $0x550] sm:$0xff]
        %v624 = vld [vmem:[%s2 + $0x558] sm:$0xff]
        %v625 = vld [vmem:[%s2 + $0x560] sm:$0xff]
        %v626 = vld [vmem:[%s2 + $0x568] sm:$0xff]
        %v627 = vld [vmem:[%s2 + $0x570] sm:$0xff]
        %v628 = vld [vmem:[%s2 + $0x578] sm:$0xff]
        %v629 = vld [vmem:[%s2 + $0x580] sm:$0xff]
        %v630 = vld [vmem:[%s2 + $0x588] sm:$0xff]
        %v631 = vld [vmem:[%s2 + $0x590] sm:$0xff]
        %v632 = vld [vmem:[%s2 + $0x598] sm:$0xff]
        %v633 = vld [vmem:[%s2 + $0x5a0] sm:$0xff]
        %v634 = vld [vmem:[%s2 + $0x5a8] sm:$0xff]
        %v635 = vld [vmem:[%s2 + $0x5b0] sm:$0xff]
        %v636 = vld [vmem:[%s2 + $0x5b8] sm:$0xff]
        %v637 = vld [vmem:[%s2 + $0x5c0] sm:$0xff]
        %v638 = vld [vmem:[%s2 + $0x5c8] sm:$0xff]
        %v639 = vld [vmem:[%s2 + $0x5d0] sm:$0xff]
        %v640 = vld [vmem:[%s2 + $0x5d8] sm:$0xff]
        %v641 = vld [vmem:[%s2 + $0x5e0] sm:$0xff]
        %v642 = vld [vmem:[%s2 + $0x5e8] sm:$0xff]
        %v643 = vld [vmem:[%s2 + $0x5f0] sm:$0xff]
        %v644 = vld [vmem:[%s2 + $0x5f8] sm:$0xff]
        %v645 = vld [vmem:[%s2 + $0x600] sm:$0xff]
        %v646 = vld [vmem:[%s2 + $0x608] sm:$0xff]
        %v647 = vld [vmem:[%s2 + $0x610] sm:$0xff]
        %v648 = vld [vmem:[%s2 + $0x618] sm:$0xff]
        %v649 = vld [vmem:[%s2 + $0x620] sm:$0xff]
        %v650 = vld [vmem:[%s2 + $0x628] sm:$0xff]
        %v651 = vld [vmem:[%s2 + $0x630] sm:$0xff]
        %v652 = vld [vmem:[%s2 + $0x638] sm:$0xff]
        %v653 = vld [vmem:[%s2 + $0x640] sm:$0xff]
        %v654 = vld [vmem:[%s2 + $0x648] sm:$0xff]
        %v655 = vld [vmem:[%s2 + $0x650] sm:$0xff]
        %v656 = vld [vmem:[%s2 + $0x658] sm:$0xff]
        %v657 = vld [vmem:[%s2 + $0x660] sm:$0xff]
        %v658 = vld [vmem:[%s2 + $0x668] sm:$0xff]
        %v659 = vld [vmem:[%s2 + $0x670] sm:$0xff]
        %v660 = vld [vmem:[%s2 + $0x678] sm:$0xff]
        %v661 = vld [vmem:[%s2 + $0x680] sm:$0xff]
        %v662 = vld [vmem:[%s2 + $0x688] sm:$0xff]
        %v663 = vld [vmem:[%s2 + $0x690] sm:$0xff]
        %v664 = vld [vmem:[%s2 + $0x698] sm:$0xff]
        %v665 = vld [vmem:[%s2 + $0x6a0] sm:$0xff]
        %v666 = vld [vmem:[%s2 + $0x6a8] sm:$0xff]
        %v667 = vld [vmem:[%s2 + $0x6b0] sm:$0xff]
        %v668 = vld [vmem:[%s2 + $0x6b8] sm:$0xff]
        %v669 = vld [vmem:[%s2 + $0x6c0] sm:$0xff]
        %v670 = vld [vmem:[%s2 + $0x6c8] sm:$0xff]
        %v671 = vld [vmem:[%s2 + $0x6d0] sm:$0xff]
        %v672 = vld [vmem:[%s2 + $0x6d8] sm:$0xff]
        %v673 = vld [vmem:[%s2 + $0x6e0] sm:$0xff]
        %v674 = vld [vmem:[%s2 + $0x6e8] sm:$0xff]
        %v675 = vld [vmem:[%s2 + $0x6f0] sm:$0xff]
        %v676 = vld [vmem:[%s2 + $0x6f8] sm:$0xff]
        %v677 = vld [vmem:[%s3] sm:$0xf]
        %v679 = vperm.slane %v677, 0
        %v680 = vperm.slane %v677, 1
        %v681 = vperm.slane %v677, 2
        %v682 = vperm.slane %v677, 3
        %v695 = vunpack.c.l.b16 %v445
        %v696 = vunpack.c.h.b16 %v445
        %v697 = vunpack.c.l.b16 %v446
        %v698 = vunpack.c.h.b16 %v446
        %v699 = vunpack.c.l.b16 %v447
        %v700 = vunpack.c.h.b16 %v447
        %v701 = vunpack.c.l.b16 %v448
        %v702 = vunpack.c.l.b16 %v449
        %v703 = vunpack.c.h.b16 %v449
        %v704 = vunpack.c.l.b16 %v450
        %v705 = vunpack.c.h.b16 %v450
        %v706 = vunpack.c.l.b16 %v451
        %v707 = vunpack.c.h.b16 %v451
        %v708 = vunpack.c.l.b16 %v452
        %v709 = vpack.c.b16 %v702, %v695
        %v710 = vpack.c.b16 %v703, %v696
        %v711 = vpack.c.b16 %v704, %v697
        %v712 = vpack.c.b16 %v705, %v698
        %v713 = vpack.c.b16 %v706, %v699
        %v714 = vpack.c.b16 %v707, %v700
        %v715 = vpack.c.b16 %v708, %v701
        %v947 = vunpack.c.l.b16 %v453
        %v948 = vunpack.c.h.b16 %v453
        %v949 = vunpack.c.l.b16 %v454
        %v950 = vunpack.c.h.b16 %v454
        %v951 = vunpack.c.l.b16 %v455
        %v952 = vunpack.c.h.b16 %v455
        %v953 = vunpack.c.l.b16 %v456
        %v954 = vunpack.c.h.b16 %v456
        %v955 = vunpack.c.l.b16 %v457
        %v956 = vunpack.c.h.b16 %v457
        %v957 = vunpack.c.l.b16 %v458
        %v958 = vunpack.c.h.b16 %v458
        %v959 = vunpack.c.l.b16 %v459
        %v960 = vunpack.c.h.b16 %v459
        %v961 = vunpack.c.l.b16 %v460
        %v962 = vunpack.c.h.b16 %v460
        %v963 = vunpack.c.l.b16 %v461
        %v964 = vunpack.c.h.b16 %v461
        %v965 = vunpack.c.l.b16 %v462
        %v966 = vunpack.c.h.b16 %v462
        %v967 = vunpack.c.l.b16 %v463
        %v968 = vunpack.c.h.b16 %v463
        %v969 = vunpack.c.l.b16 %v464
        %v970 = vunpack.c.h.b16 %v464
        %v971 = vunpack.c.l.b16 %v465
        %v972 = vunpack.c.h.b16 %v465
        %v973 = vunpack.c.l.b16 %v466
        %v974 = vunpack.c.h.b16 %v466
        %v975 = vunpack.c.l.b16 %v467
        %v976 = vunpack.c.h.b16 %v467
        %v977 = vunpack.c.l.b16 %v468
        %v978 = vunpack.c.h.b16 %v468
        %v979 = vunpack.c.l.b16 %v469
        %v980 = vunpack.c.h.b16 %v469
        %v981 = vunpack.c.l.b16 %v470
        %v982 = vunpack.c.h.b16 %v470
        %v983 = vunpack.c.l.b16 %v471
        %v984 = vunpack.c.h.b16 %v471
        %v985 = vunpack.c.l.b16 %v472
        %v986 = vunpack.c.h.b16 %v472
        %v987 = vunpack.c.l.b16 %v473
        %v988 = vunpack.c.h.b16 %v473
        %v989 = vunpack.c.l.b16 %v474
        %v990 = vunpack.c.h.b16 %v474
        %v991 = vunpack.c.l.b16 %v475
        %v992 = vunpack.c.h.b16 %v475
        %v993 = vunpack.c.l.b16 %v476
        %v994 = vunpack.c.h.b16 %v476
        %v995 = vunpack.c.l.b16 %v477
        %v996 = vunpack.c.h.b16 %v477
        %v997 = vunpack.c.l.b16 %v478
        %v998 = vunpack.c.h.b16 %v478
        %v999 = vunpack.c.l.b16 %v479
        %v1000 = vunpack.c.h.b16 %v479
        %v1001 = vunpack.c.l.b16 %v480
        %v1002 = vunpack.c.h.b16 %v480
        %v1003 = vunpack.c.l.b16 %v481
        %v1004 = vunpack.c.h.b16 %v481
        %v1005 = vunpack.c.l.b16 %v482
        %v1006 = vunpack.c.h.b16 %v482
        %v1007 = vunpack.c.l.b16 %v483
        %v1008 = vunpack.c.h.b16 %v483
        %v1009 = vunpack.c.l.b16 %v484
        %v1010 = vunpack.c.h.b16 %v484
        %v1011 = vunpack.c.l.b16 %v485
        %v1012 = vunpack.c.h.b16 %v485
        %v1013 = vunpack.c.l.b16 %v486
        %v1014 = vunpack.c.h.b16 %v486
        %v1015 = vunpack.c.l.b16 %v487
        %v1016 = vunpack.c.h.b16 %v487
        %v1017 = vunpack.c.l.b16 %v488
        %v1018 = vunpack.c.h.b16 %v488
        %v1019 = vunpack.c.l.b16 %v489
        %v1020 = vunpack.c.h.b16 %v489
        %v1021 = vunpack.c.l.b16 %v490
        %v1022 = vunpack.c.h.b16 %v490
        %v1023 = vunpack.c.l.b16 %v491
        %v1024 = vunpack.c.h.b16 %v491
        %v1025 = vunpack.c.l.b16 %v492
        %v1026 = vunpack.c.h.b16 %v492
        %v1027 = vunpack.c.l.b16 %v493
        %v1028 = vunpack.c.h.b16 %v493
        %v1029 = vunpack.c.l.b16 %v494
        %v1030 = vunpack.c.h.b16 %v494
        %v1031 = vunpack.c.l.b16 %v495
        %v1032 = vunpack.c.h.b16 %v495
        %v1033 = vunpack.c.l.b16 %v496
        %v1034 = vunpack.c.h.b16 %v496
        %v1035 = vunpack.c.l.b16 %v497
        %v1036 = vunpack.c.h.b16 %v497
        %v1037 = vunpack.c.l.b16 %v498
        %v1038 = vunpack.c.h.b16 %v498
        %v1039 = vunpack.c.l.b16 %v499
        %v1040 = vunpack.c.h.b16 %v499
        %v1041 = vunpack.c.l.b16 %v500
        %v1042 = vunpack.c.h.b16 %v500
        %v1043 = vunpack.c.l.b16 %v501
        %v1044 = vunpack.c.h.b16 %v501
        %v1045 = vunpack.c.l.b16 %v502
        %v1046 = vunpack.c.h.b16 %v502
        %v1047 = vunpack.c.l.b16 %v503
        %v1048 = vunpack.c.h.b16 %v503
        %v1049 = vunpack.c.l.b16 %v504
        %v1050 = vunpack.c.h.b16 %v504
        %v1051 = vunpack.c.l.b16 %v505
        %v1052 = vunpack.c.h.b16 %v505
        %v1053 = vunpack.c.l.b16 %v506
        %v1054 = vunpack.c.h.b16 %v506
        %v1055 = vunpack.c.l.b16 %v507
        %v1056 = vunpack.c.h.b16 %v507
        %v1057 = vunpack.c.l.b16 %v508
        %v1058 = vunpack.c.h.b16 %v508
        %v1059 = vunpack.c.l.b16 %v509
        %v1060 = vunpack.c.h.b16 %v509
        %v1061 = vunpack.c.l.b16 %v510
        %v1062 = vunpack.c.h.b16 %v510
        %v1063 = vunpack.c.l.b16 %v511
        %v1064 = vunpack.c.h.b16 %v511
        %v1065 = vunpack.c.l.b16 %v512
        %v1066 = vunpack.c.h.b16 %v512
        %v1067 = vunpack.c.l.b16 %v513
        %v1068 = vunpack.c.h.b16 %v513
        %v1069 = vunpack.c.l.b16 %v514
        %v1070 = vunpack.c.h.b16 %v514
        %v1071 = vunpack.c.l.b16 %v515
        %v1072 = vunpack.c.h.b16 %v515
        %v1073 = vunpack.c.l.b16 %v516
        %v1074 = vunpack.c.h.b16 %v516
        %v1075 = vunpack.c.l.b16 %v517
        %v1076 = vunpack.c.h.b16 %v517
        %v1077 = vunpack.c.l.b16 %v518
        %v1078 = vunpack.c.h.b16 %v518
        %v1079 = vunpack.c.l.b16 %v519
        %v1080 = vunpack.c.h.b16 %v519
        %v1081 = vunpack.c.l.b16 %v520
        %v1082 = vunpack.c.h.b16 %v520
        %v1083 = vunpack.c.l.b16 %v521
        %v1084 = vunpack.c.h.b16 %v521
        %v1085 = vunpack.c.l.b16 %v522
        %v1086 = vunpack.c.h.b16 %v522
        %v1087 = vunpack.c.l.b16 %v523
        %v1088 = vunpack.c.h.b16 %v523
        %v1089 = vunpack.c.l.b16 %v524
        %v1090 = vunpack.c.h.b16 %v524
        %v1091 = vunpack.c.l.b16 %v525
        %v1092 = vunpack.c.h.b16 %v525
        %v1093 = vunpack.c.l.b16 %v526
        %v1094 = vunpack.c.h.b16 %v526
        %v1095 = vunpack.c.l.b16 %v527
        %v1096 = vunpack.c.h.b16 %v527
        %v1097 = vunpack.c.l.b16 %v528
        %v1098 = vunpack.c.h.b16 %v528
        %v1099 = vunpack.c.l.b16 %v529
        %v1100 = vunpack.c.h.b16 %v529
        %v1101 = vunpack.c.l.b16 %v530
        %v1102 = vunpack.c.h.b16 %v530
        %v1103 = vunpack.c.l.b16 %v531
        %v1104 = vunpack.c.h.b16 %v531
        %v1105 = vunpack.c.l.b16 %v532
        %v1106 = vunpack.c.h.b16 %v532
        %v1107 = vunpack.c.l.b16 %v533
        %v1108 = vunpack.c.h.b16 %v533
        %v1109 = vunpack.c.l.b16 %v534
        %v1110 = vunpack.c.h.b16 %v534
        %v1111 = vunpack.c.l.b16 %v535
        %v1112 = vunpack.c.h.b16 %v535
        %v1113 = vunpack.c.l.b16 %v536
        %v1114 = vunpack.c.h.b16 %v536
        %v1115 = vunpack.c.l.b16 %v537
        %v1116 = vunpack.c.h.b16 %v537
        %v1117 = vunpack.c.l.b16 %v538
        %v1118 = vunpack.c.h.b16 %v538
        %v1119 = vunpack.c.l.b16 %v539
        %v1120 = vunpack.c.h.b16 %v539
        %v1121 = vunpack.c.l.b16 %v540
        %v1122 = vunpack.c.h.b16 %v540
        %v1123 = vunpack.c.l.b16 %v541
        %v1124 = vunpack.c.h.b16 %v541
        %v1125 = vunpack.c.l.b16 %v542
        %v1126 = vunpack.c.h.b16 %v542
        %v1127 = vunpack.c.l.b16 %v543
        %v1128 = vunpack.c.h.b16 %v543
        %v1129 = vunpack.c.l.b16 %v544
        %v1130 = vunpack.c.h.b16 %v544
        %v1131 = vunpack.c.l.b16 %v545
        %v1132 = vunpack.c.h.b16 %v545
        %v1133 = vunpack.c.l.b16 %v546
        %v1134 = vunpack.c.h.b16 %v546
        %v1135 = vunpack.c.l.b16 %v547
        %v1136 = vunpack.c.h.b16 %v547
        %v1137 = vunpack.c.l.b16 %v548
        %v1138 = vunpack.c.h.b16 %v548
        %v1139 = vunpack.c.l.b16 %v549
        %v1140 = vunpack.c.h.b16 %v549
        %v1141 = vunpack.c.l.b16 %v550
        %v1142 = vunpack.c.h.b16 %v550
        %v1143 = vunpack.c.l.b16 %v551
        %v1144 = vunpack.c.h.b16 %v551
        %v1145 = vunpack.c.l.b16 %v552
        %v1146 = vunpack.c.h.b16 %v552
        %v1147 = vunpack.c.l.b16 %v553
        %v1148 = vunpack.c.h.b16 %v553
        %v1149 = vunpack.c.l.b16 %v554
        %v1150 = vunpack.c.h.b16 %v554
        %v1151 = vunpack.c.l.b16 %v555
        %v1152 = vunpack.c.h.b16 %v555
        %v1153 = vunpack.c.l.b16 %v556
        %v1154 = vunpack.c.h.b16 %v556
        %v1155 = vunpack.c.l.b16 %v557
        %v1156 = vunpack.c.h.b16 %v557
        %v1157 = vunpack.c.l.b16 %v558
        %v1158 = vunpack.c.h.b16 %v558
        %v1159 = vunpack.c.l.b16 %v559
        %v1160 = vunpack.c.h.b16 %v559
        %v1161 = vunpack.c.l.b16 %v560
        %v1162 = vunpack.c.h.b16 %v560
        %v1163 = vunpack.c.l.b16 %v561
        %v1164 = vunpack.c.h.b16 %v561
        %v1165 = vunpack.c.l.b16 %v562
        %v1166 = vunpack.c.h.b16 %v562
        %v1167 = vunpack.c.l.b16 %v563
        %v1168 = vunpack.c.h.b16 %v563
        %v1169 = vunpack.c.l.b16 %v564
        %v1170 = vunpack.c.h.b16 %v564
        %v1171 = vunpack.c.l.b16 %v565
        %v1172 = vunpack.c.h.b16 %v565
        %v1173 = vunpack.c.l.b16 %v566
        %v1174 = vunpack.c.h.b16 %v566
        %v1175 = vunpack.c.l.b16 %v567
        %v1176 = vunpack.c.h.b16 %v567
        %v1177 = vunpack.c.l.b16 %v568
        %v1178 = vunpack.c.h.b16 %v568
        %v1179 = vunpack.c.l.b16 %v569
        %v1180 = vunpack.c.h.b16 %v569
        %v1181 = vunpack.c.l.b16 %v570
        %v1182 = vunpack.c.h.b16 %v570
        %v1183 = vunpack.c.l.b16 %v571
        %v1184 = vunpack.c.h.b16 %v571
        %v1185 = vunpack.c.l.b16 %v572
        %v1186 = vunpack.c.h.b16 %v572
        %v1187 = vunpack.c.l.b16 %v573
        %v1188 = vunpack.c.h.b16 %v573
        %v1189 = vunpack.c.l.b16 %v574
        %v1190 = vunpack.c.h.b16 %v574
        %v1191 = vunpack.c.l.b16 %v575
        %v1192 = vunpack.c.h.b16 %v575
        %v1193 = vunpack.c.l.b16 %v576
        %v1194 = vunpack.c.h.b16 %v576
        %v1195 = vunpack.c.l.b16 %v577
        %v1196 = vunpack.c.h.b16 %v577
        %v1197 = vunpack.c.l.b16 %v578
        %v1198 = vunpack.c.h.b16 %v578
        %v1199 = vunpack.c.l.b16 %v579
        %v1200 = vunpack.c.h.b16 %v579
        %v1201 = vunpack.c.l.b16 %v580
        %v1202 = vunpack.c.h.b16 %v580
        %v1203 = vunpack.c.l.b16 %v581
        %v1204 = vunpack.c.h.b16 %v581
        %v1205 = vunpack.c.l.b16 %v582
        %v1206 = vunpack.c.h.b16 %v582
        %v1207 = vunpack.c.l.b16 %v583
        %v1208 = vunpack.c.h.b16 %v583
        %v1209 = vunpack.c.l.b16 %v584
        %v1210 = vunpack.c.h.b16 %v584
        %v1211 = vunpack.c.l.b16 %v585
        %v1212 = vunpack.c.h.b16 %v585
        %v1213 = vunpack.c.l.b16 %v586
        %v1214 = vunpack.c.h.b16 %v586
        %v1215 = vunpack.c.l.b16 %v587
        %v1216 = vunpack.c.h.b16 %v587
        %v1217 = vunpack.c.l.b16 %v588
        %v1218 = vunpack.c.h.b16 %v588
        %v1219 = vunpack.c.l.b16 %v589
        %v1220 = vunpack.c.h.b16 %v589
        %v1221 = vunpack.c.l.b16 %v590
        %v1222 = vunpack.c.h.b16 %v590
        %v1223 = vunpack.c.l.b16 %v591
        %v1224 = vunpack.c.h.b16 %v591
        %v1225 = vunpack.c.l.b16 %v592
        %v1226 = vunpack.c.h.b16 %v592
        %v1227 = vunpack.c.l.b16 %v593
        %v1228 = vunpack.c.h.b16 %v593
        %v1229 = vunpack.c.l.b16 %v594
        %v1230 = vunpack.c.h.b16 %v594
        %v1231 = vunpack.c.l.b16 %v595
        %v1232 = vunpack.c.h.b16 %v595
        %v1233 = vunpack.c.l.b16 %v596
        %v1234 = vunpack.c.h.b16 %v596
        %v1235 = vunpack.c.l.b16 %v597
        %v1236 = vunpack.c.h.b16 %v597
        %v1237 = vunpack.c.l.b16 %v598
        %v1238 = vunpack.c.h.b16 %v598
        %v1239 = vunpack.c.l.b16 %v599
        %v1240 = vunpack.c.h.b16 %v599
        %v1241 = vunpack.c.l.b16 %v600
        %v1242 = vunpack.c.h.b16 %v600
        %v1243 = vunpack.c.l.b16 %v601
        %v1244 = vunpack.c.h.b16 %v601
        %v1245 = vunpack.c.l.b16 %v602
        %v1246 = vunpack.c.h.b16 %v602
        %v1247 = vunpack.c.l.b16 %v603
        %v1248 = vunpack.c.h.b16 %v603
        %v1249 = vunpack.c.l.b16 %v604
        %v1250 = vunpack.c.h.b16 %v604
        %v1251 = vunpack.c.l.b16 %v605
        %v1252 = vunpack.c.h.b16 %v605
        %v1253 = vunpack.c.l.b16 %v606
        %v1254 = vunpack.c.h.b16 %v606
        %v1255 = vunpack.c.l.b16 %v607
        %v1256 = vunpack.c.h.b16 %v607
        %v1257 = vunpack.c.l.b16 %v608
        %v1258 = vunpack.c.h.b16 %v608
        %v1259 = vunpack.c.l.b16 %v609
        %v1260 = vunpack.c.h.b16 %v609
        %v1261 = vunpack.c.l.b16 %v610
        %v1262 = vunpack.c.h.b16 %v610
        %v1263 = vunpack.c.l.b16 %v611
        %v1264 = vunpack.c.h.b16 %v611
        %v1265 = vunpack.c.l.b16 %v612
        %v1266 = vunpack.c.h.b16 %v612
        %v1267 = vunpack.c.l.b16 %v613
        %v1268 = vunpack.c.h.b16 %v613
        %v1269 = vunpack.c.l.b16 %v614
        %v1270 = vunpack.c.h.b16 %v614
        %v1271 = vunpack.c.l.b16 %v615
        %v1272 = vunpack.c.h.b16 %v615
        %v1273 = vunpack.c.l.b16 %v616
        %v1274 = vunpack.c.h.b16 %v616
        %v1275 = vunpack.c.l.b16 %v617
        %v1276 = vunpack.c.h.b16 %v617
        %v1277 = vunpack.c.l.b16 %v618
        %v1278 = vunpack.c.h.b16 %v618
        %v1279 = vunpack.c.l.b16 %v619
        %v1280 = vunpack.c.h.b16 %v619
        %v1281 = vunpack.c.l.b16 %v620
        %v1282 = vunpack.c.h.b16 %v620
        %v1283 = vunpack.c.l.b16 %v621
        %v1284 = vunpack.c.h.b16 %v621
        %v1285 = vunpack.c.l.b16 %v622
        %v1286 = vunpack.c.h.b16 %v622
        %v1287 = vunpack.c.l.b16 %v623
        %v1288 = vunpack.c.h.b16 %v623
        %v1289 = vunpack.c.l.b16 %v624
        %v1290 = vunpack.c.h.b16 %v624
        %v1291 = vunpack.c.l.b16 %v625
        %v1292 = vunpack.c.h.b16 %v625
        %v1293 = vunpack.c.l.b16 %v626
        %v1294 = vunpack.c.h.b16 %v626
        %v1295 = vunpack.c.l.b16 %v627
        %v1296 = vunpack.c.h.b16 %v627
        %v1297 = vunpack.c.l.b16 %v628
        %v1298 = vunpack.c.h.b16 %v628
        %v1299 = vunpack.c.l.b16 %v629
        %v1300 = vunpack.c.h.b16 %v629
        %v1301 = vunpack.c.l.b16 %v630
        %v1302 = vunpack.c.h.b16 %v630
        %v1303 = vunpack.c.l.b16 %v631
        %v1304 = vunpack.c.h.b16 %v631
        %v1305 = vunpack.c.l.b16 %v632
        %v1306 = vunpack.c.h.b16 %v632
        %v1307 = vunpack.c.l.b16 %v633
        %v1308 = vunpack.c.h.b16 %v633
        %v1309 = vunpack.c.l.b16 %v634
        %v1310 = vunpack.c.h.b16 %v634
        %v1311 = vunpack.c.l.b16 %v635
        %v1312 = vunpack.c.h.b16 %v635
        %v1313 = vunpack.c.l.b16 %v636
        %v1314 = vunpack.c.h.b16 %v636
        %v1315 = vunpack.c.l.b16 %v637
        %v1316 = vunpack.c.h.b16 %v637
        %v1317 = vunpack.c.l.b16 %v638
        %v1318 = vunpack.c.h.b16 %v638
        %v1319 = vunpack.c.l.b16 %v639
        %v1320 = vunpack.c.h.b16 %v639
        %v1321 = vunpack.c.l.b16 %v640
        %v1322 = vunpack.c.h.b16 %v640
        %v1323 = vunpack.c.l.b16 %v641
        %v1324 = vunpack.c.h.b16 %v641
        %v1325 = vunpack.c.l.b16 %v642
        %v1326 = vunpack.c.h.b16 %v642
        %v1327 = vunpack.c.l.b16 %v643
        %v1328 = vunpack.c.h.b16 %v643
        %v1329 = vunpack.c.l.b16 %v644
        %v1330 = vunpack.c.h.b16 %v644
        %v1331 = vunpack.c.l.b16 %v645
        %v1332 = vunpack.c.h.b16 %v645
        %v1333 = vunpack.c.l.b16 %v646
        %v1334 = vunpack.c.h.b16 %v646
        %v1335 = vunpack.c.l.b16 %v647
        %v1336 = vunpack.c.h.b16 %v647
        %v1337 = vunpack.c.l.b16 %v648
        %v1338 = vunpack.c.h.b16 %v648
        %v1339 = vunpack.c.l.b16 %v649
        %v1340 = vunpack.c.h.b16 %v649
        %v1341 = vunpack.c.l.b16 %v650
        %v1342 = vunpack.c.h.b16 %v650
        %v1343 = vunpack.c.l.b16 %v651
        %v1344 = vunpack.c.h.b16 %v651
        %v1345 = vunpack.c.l.b16 %v652
        %v1346 = vunpack.c.h.b16 %v652
        %v1347 = vunpack.c.l.b16 %v653
        %v1348 = vunpack.c.h.b16 %v653
        %v1349 = vunpack.c.l.b16 %v654
        %v1350 = vunpack.c.h.b16 %v654
        %v1351 = vunpack.c.l.b16 %v655
        %v1352 = vunpack.c.h.b16 %v655
        %v1353 = vunpack.c.l.b16 %v656
        %v1354 = vunpack.c.h.b16 %v656
        %v1355 = vunpack.c.l.b16 %v657
        %v1356 = vunpack.c.h.b16 %v657
        %v1357 = vunpack.c.l.b16 %v658
        %v1358 = vunpack.c.h.b16 %v658
        %v1359 = vunpack.c.l.b16 %v659
        %v1360 = vunpack.c.h.b16 %v659
        %v1361 = vunpack.c.l.b16 %v660
        %v1362 = vunpack.c.h.b16 %v660
        %v1363 = vunpack.c.l.b16 %v661
        %v1364 = vunpack.c.h.b16 %v661
        %v1365 = vunpack.c.l.b16 %v662
        %v1366 = vunpack.c.h.b16 %v662
        %v1367 = vunpack.c.l.b16 %v663
        %v1368 = vunpack.c.h.b16 %v663
        %v1369 = vunpack.c.l.b16 %v664
        %v1370 = vunpack.c.h.b16 %v664
        %v1371 = vunpack.c.l.b16 %v665
        %v1372 = vunpack.c.h.b16 %v665
        %v1373 = vunpack.c.l.b16 %v666
        %v1374 = vunpack.c.h.b16 %v666
        %v1375 = vunpack.c.l.b16 %v667
        %v1376 = vunpack.c.h.b16 %v667
        %v1377 = vunpack.c.l.b16 %v668
        %v1378 = vunpack.c.h.b16 %v668
        %v1379 = vunpack.c.l.b16 %v669
        %v1380 = vunpack.c.h.b16 %v669
        %v1381 = vunpack.c.l.b16 %v670
        %v1382 = vunpack.c.h.b16 %v670
        %v1383 = vunpack.c.l.b16 %v671
        %v1384 = vunpack.c.h.b16 %v671
        %v1385 = vunpack.c.l.b16 %v672
        %v1386 = vunpack.c.h.b16 %v672
        %v1387 = vunpack.c.l.b16 %v673
        %v1388 = vunpack.c.h.b16 %v673
        %v1389 = vunpack.c.l.b16 %v674
        %v1390 = vunpack.c.h.b16 %v674
        %v1391 = vunpack.c.l.b16 %v675
        %v1392 = vunpack.c.h.b16 %v675
        %v1393 = vunpack.c.l.b16 %v676
        %v1394 = vunpack.c.h.b16 %v676
        %v1395 = vpack.c.b16 %v951, %v947
        %v1396 = vpack.c.b16 %v952, %v948
        %v1397 = vpack.c.b16 %v953, %v949
        %v1398 = vpack.c.b16 %v954, %v950
        %v1399 = vpack.c.b16 %v959, %v955
        %v1400 = vpack.c.b16 %v960, %v956
        %v1401 = vpack.c.b16 %v961, %v957
        %v1402 = vpack.c.b16 %v962, %v958
        %v1403 = vpack.c.b16 %v967, %v963
        %v1404 = vpack.c.b16 %v968, %v964
        %v1405 = vpack.c.b16 %v969, %v965
        %v1406 = vpack.c.b16 %v970, %v966
        %v1407 = vpack.c.b16 %v975, %v971
        %v1408 = vpack.c.b16 %v976, %v972
        %v1409 = vpack.c.b16 %v977, %v973
        %v1410 = vpack.c.b16 %v978, %v974
        %v1411 = vpack.c.b16 %v983, %v979
        %v1412 = vpack.c.b16 %v984, %v980
        %v1413 = vpack.c.b16 %v985, %v981
        %v1414 = vpack.c.b16 %v986, %v982
        %v1415 = vpack.c.b16 %v991, %v987
        %v1416 = vpack.c.b16 %v992, %v988
        %v1417 = vpack.c.b16 %v993, %v989
        %v1418 = vpack.c.b16 %v994, %v990
        %v1419 = vpack.c.b16 %v999, %v995
        %v1420 = vpack.c.b16 %v1000, %v996
        %v1421 = vpack.c.b16 %v1001, %v997
        %v1422 = vpack.c.b16 %v1002, %v998
        %v1423 = vpack.c.b16 %v1007, %v1003
        %v1424 = vpack.c.b16 %v1008, %v1004
        %v1425 = vpack.c.b16 %v1009, %v1005
        %v1426 = vpack.c.b16 %v1010, %v1006
        %v1427 = vpack.c.b16 %v1015, %v1011
        %v1428 = vpack.c.b16 %v1016, %v1012
        %v1429 = vpack.c.b16 %v1017, %v1013
        %v1430 = vpack.c.b16 %v1018, %v1014
        %v1431 = vpack.c.b16 %v1023, %v1019
        %v1432 = vpack.c.b16 %v1024, %v1020
        %v1433 = vpack.c.b16 %v1025, %v1021
        %v1434 = vpack.c.b16 %v1026, %v1022
        %v1435 = vpack.c.b16 %v1031, %v1027
        %v1436 = vpack.c.b16 %v1032, %v1028
        %v1437 = vpack.c.b16 %v1033, %v1029
        %v1438 = vpack.c.b16 %v1034, %v1030
        %v1439 = vpack.c.b16 %v1039, %v1035
        %v1440 = vpack.c.b16 %v1040, %v1036
        %v1441 = vpack.c.b16 %v1041, %v1037
        %v1442 = vpack.c.b16 %v1042, %v1038
        %v1443 = vpack.c.b16 %v1047, %v1043
        %v1444 = vpack.c.b16 %v1048, %v1044
        %v1445 = vpack.c.b16 %v1049, %v1045
        %v1446 = vpack.c.b16 %v1050, %v1046
        %v1447 = vpack.c.b16 %v1055, %v1051
        %v1448 = vpack.c.b16 %v1056, %v1052
        %v1449 = vpack.c.b16 %v1057, %v1053
        %v1450 = vpack.c.b16 %v1058, %v1054
        %v1451 = vpack.c.b16 %v1063, %v1059
        %v1452 = vpack.c.b16 %v1064, %v1060
        %v1453 = vpack.c.b16 %v1065, %v1061
        %v1454 = vpack.c.b16 %v1066, %v1062
        %v1455 = vpack.c.b16 %v1071, %v1067
        %v1456 = vpack.c.b16 %v1072, %v1068
        %v1457 = vpack.c.b16 %v1073, %v1069
        %v1458 = vpack.c.b16 %v1074, %v1070
        %v1459 = vpack.c.b16 %v1079, %v1075
        %v1460 = vpack.c.b16 %v1080, %v1076
        %v1461 = vpack.c.b16 %v1081, %v1077
        %v1462 = vpack.c.b16 %v1082, %v1078
        %v1463 = vpack.c.b16 %v1087, %v1083
        %v1464 = vpack.c.b16 %v1088, %v1084
        %v1465 = vpack.c.b16 %v1089, %v1085
        %v1466 = vpack.c.b16 %v1090, %v1086
        %v1467 = vpack.c.b16 %v1095, %v1091
        %v1468 = vpack.c.b16 %v1096, %v1092
        %v1469 = vpack.c.b16 %v1097, %v1093
        %v1470 = vpack.c.b16 %v1098, %v1094
        %v1471 = vpack.c.b16 %v1103, %v1099
        %v1472 = vpack.c.b16 %v1104, %v1100
        %v1473 = vpack.c.b16 %v1105, %v1101
        %v1474 = vpack.c.b16 %v1106, %v1102
        %v1475 = vpack.c.b16 %v1111, %v1107
        %v1476 = vpack.c.b16 %v1112, %v1108
        %v1477 = vpack.c.b16 %v1113, %v1109
        %v1478 = vpack.c.b16 %v1114, %v1110
        %v1479 = vpack.c.b16 %v1119, %v1115
        %v1480 = vpack.c.b16 %v1120, %v1116
        %v1481 = vpack.c.b16 %v1121, %v1117
        %v1482 = vpack.c.b16 %v1122, %v1118
        %v1483 = vpack.c.b16 %v1127, %v1123
        %v1484 = vpack.c.b16 %v1128, %v1124
        %v1485 = vpack.c.b16 %v1129, %v1125
        %v1486 = vpack.c.b16 %v1130, %v1126
        %v1487 = vpack.c.b16 %v1135, %v1131
        %v1488 = vpack.c.b16 %v1136, %v1132
        %v1489 = vpack.c.b16 %v1137, %v1133
        %v1490 = vpack.c.b16 %v1138, %v1134
        %v1491 = vpack.c.b16 %v1143, %v1139
        %v1492 = vpack.c.b16 %v1144, %v1140
        %v1493 = vpack.c.b16 %v1145, %v1141
        %v1494 = vpack.c.b16 %v1146, %v1142
        %v1495 = vpack.c.b16 %v1151, %v1147
        %v1496 = vpack.c.b16 %v1152, %v1148
        %v1497 = vpack.c.b16 %v1153, %v1149
        %v1498 = vpack.c.b16 %v1154, %v1150
        %v1499 = vpack.c.b16 %v1159, %v1155
        %v1500 = vpack.c.b16 %v1160, %v1156
        %v1501 = vpack.c.b16 %v1161, %v1157
        %v1502 = vpack.c.b16 %v1162, %v1158
        %v1503 = vpack.c.b16 %v1167, %v1163
        %v1504 = vpack.c.b16 %v1168, %v1164
        %v1505 = vpack.c.b16 %v1169, %v1165
        %v1506 = vpack.c.b16 %v1170, %v1166
        %v1507 = vpack.c.b16 %v1175, %v1171
        %v1508 = vpack.c.b16 %v1176, %v1172
        %v1509 = vpack.c.b16 %v1177, %v1173
        %v1510 = vpack.c.b16 %v1178, %v1174
        %v1511 = vpack.c.b16 %v1183, %v1179
        %v1512 = vpack.c.b16 %v1184, %v1180
        %v1513 = vpack.c.b16 %v1185, %v1181
        %v1514 = vpack.c.b16 %v1186, %v1182
        %v1515 = vpack.c.b16 %v1191, %v1187
        %v1516 = vpack.c.b16 %v1192, %v1188
        %v1517 = vpack.c.b16 %v1193, %v1189
        %v1518 = vpack.c.b16 %v1194, %v1190
        %v1519 = vpack.c.b16 %v1199, %v1195
        %v1520 = vpack.c.b16 %v1200, %v1196
        %v1521 = vpack.c.b16 %v1201, %v1197
        %v1522 = vpack.c.b16 %v1202, %v1198
        %v1523 = vpack.c.b16 %v1207, %v1203
        %v1524 = vpack.c.b16 %v1208, %v1204
        %v1525 = vpack.c.b16 %v1209, %v1205
        %v1526 = vpack.c.b16 %v1210, %v1206
        %v1527 = vpack.c.b16 %v1215, %v1211
        %v1528 = vpack.c.b16 %v1216, %v1212
        %v1529 = vpack.c.b16 %v1217, %v1213
        %v1530 = vpack.c.b16 %v1218, %v1214
        %v1531 = vpack.c.b16 %v1223, %v1219
        %v1532 = vpack.c.b16 %v1224, %v1220
        %v1533 = vpack.c.b16 %v1225, %v1221
        %v1534 = vpack.c.b16 %v1226, %v1222
        %v1535 = vpack.c.b16 %v1231, %v1227
        %v1536 = vpack.c.b16 %v1232, %v1228
        %v1537 = vpack.c.b16 %v1233, %v1229
        %v1538 = vpack.c.b16 %v1234, %v1230
        %v1539 = vpack.c.b16 %v1239, %v1235
        %v1540 = vpack.c.b16 %v1240, %v1236
        %v1541 = vpack.c.b16 %v1241, %v1237
        %v1542 = vpack.c.b16 %v1242, %v1238
        %v1543 = vpack.c.b16 %v1247, %v1243
        %v1544 = vpack.c.b16 %v1248, %v1244
        %v1545 = vpack.c.b16 %v1249, %v1245
        %v1546 = vpack.c.b16 %v1250, %v1246
        %v1547 = vpack.c.b16 %v1255, %v1251
        %v1548 = vpack.c.b16 %v1256, %v1252
        %v1549 = vpack.c.b16 %v1257, %v1253
        %v1550 = vpack.c.b16 %v1258, %v1254
        %v1551 = vpack.c.b16 %v1263, %v1259
        %v1552 = vpack.c.b16 %v1264, %v1260
        %v1553 = vpack.c.b16 %v1265, %v1261
        %v1554 = vpack.c.b16 %v1266, %v1262
        %v1555 = vpack.c.b16 %v1271, %v1267
        %v1556 = vpack.c.b16 %v1272, %v1268
        %v1557 = vpack.c.b16 %v1273, %v1269
        %v1558 = vpack.c.b16 %v1274, %v1270
        %v1559 = vpack.c.b16 %v1279, %v1275
        %v1560 = vpack.c.b16 %v1280, %v1276
        %v1561 = vpack.c.b16 %v1281, %v1277
        %v1562 = vpack.c.b16 %v1282, %v1278
        %v1563 = vpack.c.b16 %v1287, %v1283
        %v1564 = vpack.c.b16 %v1288, %v1284
        %v1565 = vpack.c.b16 %v1289, %v1285
        %v1566 = vpack.c.b16 %v1290, %v1286
        %v1567 = vpack.c.b16 %v1295, %v1291
        %v1568 = vpack.c.b16 %v1296, %v1292
        %v1569 = vpack.c.b16 %v1297, %v1293
        %v1570 = vpack.c.b16 %v1298, %v1294
        %v1571 = vpack.c.b16 %v1303, %v1299
        %v1572 = vpack.c.b16 %v1304, %v1300
        %v1573 = vpack.c.b16 %v1305, %v1301
        %v1574 = vpack.c.b16 %v1306, %v1302
        %v1575 = vpack.c.b16 %v1311, %v1307
        %v1576 = vpack.c.b16 %v1312, %v1308
        %v1577 = vpack.c.b16 %v1313, %v1309
        %v1578 = vpack.c.b16 %v1314, %v1310
        %v1579 = vpack.c.b16 %v1319, %v1315
        %v1580 = vpack.c.b16 %v1320, %v1316
        %v1581 = vpack.c.b16 %v1321, %v1317
        %v1582 = vpack.c.b16 %v1322, %v1318
        %v1583 = vpack.c.b16 %v1327, %v1323
        %v1584 = vpack.c.b16 %v1328, %v1324
        %v1585 = vpack.c.b16 %v1329, %v1325
        %v1586 = vpack.c.b16 %v1330, %v1326
        %v1587 = vpack.c.b16 %v1335, %v1331
        %v1588 = vpack.c.b16 %v1336, %v1332
        %v1589 = vpack.c.b16 %v1337, %v1333
        %v1590 = vpack.c.b16 %v1338, %v1334
        %v1591 = vpack.c.b16 %v1343, %v1339
        %v1592 = vpack.c.b16 %v1344, %v1340
        %v1593 = vpack.c.b16 %v1345, %v1341
        %v1594 = vpack.c.b16 %v1346, %v1342
        %v1595 = vpack.c.b16 %v1351, %v1347
        %v1596 = vpack.c.b16 %v1352, %v1348
        %v1597 = vpack.c.b16 %v1353, %v1349
        %v1598 = vpack.c.b16 %v1354, %v1350
        %v1599 = vpack.c.b16 %v1359, %v1355
        %v1600 = vpack.c.b16 %v1360, %v1356
        %v1601 = vpack.c.b16 %v1361, %v1357
        %v1602 = vpack.c.b16 %v1362, %v1358
        %v1603 = vpack.c.b16 %v1367, %v1363
        %v1604 = vpack.c.b16 %v1368, %v1364
        %v1605 = vpack.c.b16 %v1369, %v1365
        %v1606 = vpack.c.b16 %v1370, %v1366
        %v1607 = vpack.c.b16 %v1375, %v1371
        %v1608 = vpack.c.b16 %v1376, %v1372
        %v1609 = vpack.c.b16 %v1377, %v1373
        %v1610 = vpack.c.b16 %v1378, %v1374
        %v1611 = vpack.c.b16 %v1383, %v1379
        %v1612 = vpack.c.b16 %v1384, %v1380
        %v1613 = vpack.c.b16 %v1385, %v1381
        %v1614 = vpack.c.b16 %v1386, %v1382
        %v1615 = vpack.c.b16 %v1391, %v1387
        %v1616 = vpack.c.b16 %v1392, %v1388
        %v1617 = vpack.c.b16 %v1393, %v1389
        %v1618 = vpack.c.b16 %v1394, %v1390
        %1843 = vmatpush.bf16.msra.mxu0 %v1423
        %1844 = vmatpush.bf16.msra.mxu0 %v1419
        %1845 = vmatpush.bf16.msra.mxu0 %v1415
        %1846 = vmatpush.bf16.msra.mxu0 %v1411
        %1847 = vmatpush.bf16.msra.mxu0 %v1407
        %1848 = vmatpush.bf16.msra.mxu0 %v1403
        %1849 = vmatpush.bf16.msra.mxu0 %v1399
        %1850 = vmatpush.bf16.msra.mxu0 %v1395
        %1851 = vmatmul.bf16.gmra.mxu0 %v709
        %v1852 = vpop.f32.mrf.mxu0
        %v1853 = vadd.f32 %v679, %v1852
        %v1854 = vpop.f32.mrf.mxu0
        %v1855 = vadd.f32 %v679, %v1854
        %1856 = vdwg.mxu0
        %1857 = vmatpush.bf16.msra.mxu0 %v1455
        %1858 = vmatpush.bf16.msra.mxu0 %v1451
        %1859 = vmatpush.bf16.msra.mxu0 %v1447
        %1860 = vmatpush.bf16.msra.mxu0 %v1443
        %1861 = vmatpush.bf16.msra.mxu0 %v1439
        %1862 = vmatpush.bf16.msra.mxu0 %v1435
        %1863 = vmatpush.bf16.msra.mxu0 %v1431
        %1864 = vmatpush.bf16.msra.mxu0 %v1427
        %1865 = vmatmul.bf16.gmra.mxu0 %v710
        %v1866 = vpop.f32.mrf.mxu0
        %v1867 = vadd.f32 %v1853, %v1866
        %v1868 = vpop.f32.mrf.mxu0
        %v1869 = vadd.f32 %v1855, %v1868
        %1870 = vdwg.mxu0
        %1871 = vmatpush.bf16.msra.mxu0 %v1487
        %1872 = vmatpush.bf16.msra.mxu0 %v1483
        %1873 = vmatpush.bf16.msra.mxu0 %v1479
        %1874 = vmatpush.bf16.msra.mxu0 %v1475
        %1875 = vmatpush.bf16.msra.mxu0 %v1471
        %1876 = vmatpush.bf16.msra.mxu0 %v1467
        %1877 = vmatpush.bf16.msra.mxu0 %v1463
        %1878 = vmatpush.bf16.msra.mxu0 %v1459
        %1879 = vmatmul.bf16.gmra.mxu0 %v711
        %v1880 = vpop.f32.mrf.mxu0
        %v1881 = vadd.f32 %v1867, %v1880
        %v1882 = vpop.f32.mrf.mxu0
        %v1883 = vadd.f32 %v1869, %v1882
        %1884 = vdwg.mxu0
        %1885 = vmatpush.bf16.msra.mxu0 %v1519
        %1886 = vmatpush.bf16.msra.mxu0 %v1515
        %1887 = vmatpush.bf16.msra.mxu0 %v1511
        %1888 = vmatpush.bf16.msra.mxu0 %v1507
        %1889 = vmatpush.bf16.msra.mxu0 %v1503
        %1890 = vmatpush.bf16.msra.mxu0 %v1499
        %1891 = vmatpush.bf16.msra.mxu0 %v1495
        %1892 = vmatpush.bf16.msra.mxu0 %v1491
        %1893 = vmatmul.bf16.gmra.mxu0 %v712
        %v1894 = vpop.f32.mrf.mxu0
        %v1895 = vadd.f32 %v1881, %v1894
        %v1896 = vpop.f32.mrf.mxu0
        %v1897 = vadd.f32 %v1883, %v1896
        %1898 = vdwg.mxu0
        %1899 = vmatpush.bf16.msra.mxu0 %v1551
        %1900 = vmatpush.bf16.msra.mxu0 %v1547
        %1901 = vmatpush.bf16.msra.mxu0 %v1543
        %1902 = vmatpush.bf16.msra.mxu0 %v1539
        %1903 = vmatpush.bf16.msra.mxu0 %v1535
        %1904 = vmatpush.bf16.msra.mxu0 %v1531
        %1905 = vmatpush.bf16.msra.mxu0 %v1527
        %1906 = vmatpush.bf16.msra.mxu0 %v1523
        %1907 = vmatmul.bf16.gmra.mxu0 %v713
        %v1908 = vpop.f32.mrf.mxu0
        %v1909 = vadd.f32 %v1895, %v1908
        %v1910 = vpop.f32.mrf.mxu0
        %v1911 = vadd.f32 %v1897, %v1910
        %1912 = vdwg.mxu0
        %1913 = vmatpush.bf16.msra.mxu0 %v1583
        %1914 = vmatpush.bf16.msra.mxu0 %v1579
        %1915 = vmatpush.bf16.msra.mxu0 %v1575
        %1916 = vmatpush.bf16.msra.mxu0 %v1571
        %1917 = vmatpush.bf16.msra.mxu0 %v1567
        %1918 = vmatpush.bf16.msra.mxu0 %v1563
        %1919 = vmatpush.bf16.msra.mxu0 %v1559
        %1920 = vmatpush.bf16.msra.mxu0 %v1555
        %1921 = vmatmul.bf16.gmra.mxu0 %v714
        %v1922 = vpop.f32.mrf.mxu0
        %v1923 = vadd.f32 %v1909, %v1922
        %v1924 = vpop.f32.mrf.mxu0
        %v1925 = vadd.f32 %v1911, %v1924
        %1926 = vdwg.mxu0
        %1927 = vmatpush.bf16.msra.mxu0 %v1615
        %1928 = vmatpush.bf16.msra.mxu0 %v1611
        %1929 = vmatpush.bf16.msra.mxu0 %v1607
        %1930 = vmatpush.bf16.msra.mxu0 %v1603
        %1931 = vmatpush.bf16.msra.mxu0 %v1599
        %1932 = vmatpush.bf16.msra.mxu0 %v1595
        %1933 = vmatpush.bf16.msra.mxu0 %v1591
        %1934 = vmatpush.bf16.msra.mxu0 %v1587
        %1935 = vmatmul.bf16.gmra.mxu0 %v715
        %v1936 = vpop.f32.mrf.mxu0
        %v1937 = vadd.f32 %v1923, %v1936
        %v1938 = vpop.f32.mrf.mxu0
        %v1939 = vadd.f32 %v1925, %v1938
        %1940 = vdwg.mxu0
        %1941 = vmatpush.bf16.msra.mxu0 %v1424
        %1942 = vmatpush.bf16.msra.mxu0 %v1420
        %1943 = vmatpush.bf16.msra.mxu0 %v1416
        %1944 = vmatpush.bf16.msra.mxu0 %v1412
        %1945 = vmatpush.bf16.msra.mxu0 %v1408
        %1946 = vmatpush.bf16.msra.mxu0 %v1404
        %1947 = vmatpush.bf16.msra.mxu0 %v1400
        %1948 = vmatpush.bf16.msra.mxu0 %v1396
        %1949 = vmatmul.bf16.gmra.mxu0 %v709
        %v1950 = vpop.f32.mrf.mxu0
        %v1951 = vadd.f32 %v680, %v1950
        %v1952 = vpop.f32.mrf.mxu0
        %v1953 = vadd.f32 %v680, %v1952
        %1954 = vdwg.mxu0
        %1955 = vmatpush.bf16.msra.mxu0 %v1456
        %1956 = vmatpush.bf16.msra.mxu0 %v1452
        %1957 = vmatpush.bf16.msra.mxu0 %v1448
        %1958 = vmatpush.bf16.msra.mxu0 %v1444
        %1959 = vmatpush.bf16.msra.mxu0 %v1440
        %1960 = vmatpush.bf16.msra.mxu0 %v1436
        %1961 = vmatpush.bf16.msra.mxu0 %v1432
        %1962 = vmatpush.bf16.msra.mxu0 %v1428
        %1963 = vmatmul.bf16.gmra.mxu0 %v710
        %v1964 = vpop.f32.mrf.mxu0
        %v1965 = vadd.f32 %v1951, %v1964
        %v1966 = vpop.f32.mrf.mxu0
        %v1967 = vadd.f32 %v1953, %v1966
        %1968 = vdwg.mxu0
        %1969 = vmatpush.bf16.msra.mxu0 %v1488
        %1970 = vmatpush.bf16.msra.mxu0 %v1484
        %1971 = vmatpush.bf16.msra.mxu0 %v1480
        %1972 = vmatpush.bf16.msra.mxu0 %v1476
        %1973 = vmatpush.bf16.msra.mxu0 %v1472
        %1974 = vmatpush.bf16.msra.mxu0 %v1468
        %1975 = vmatpush.bf16.msra.mxu0 %v1464
        %1976 = vmatpush.bf16.msra.mxu0 %v1460
        %1977 = vmatmul.bf16.gmra.mxu0 %v711
        %v1978 = vpop.f32.mrf.mxu0
        %v1979 = vadd.f32 %v1965, %v1978
        %v1980 = vpop.f32.mrf.mxu0
        %v1981 = vadd.f32 %v1967, %v1980
        %1982 = vdwg.mxu0
        %1983 = vmatpush.bf16.msra.mxu0 %v1520
        %1984 = vmatpush.bf16.msra.mxu0 %v1516
        %1985 = vmatpush.bf16.msra.mxu0 %v1512
        %1986 = vmatpush.bf16.msra.mxu0 %v1508
        %1987 = vmatpush.bf16.msra.mxu0 %v1504
        %1988 = vmatpush.bf16.msra.mxu0 %v1500
        %1989 = vmatpush.bf16.msra.mxu0 %v1496
        %1990 = vmatpush.bf16.msra.mxu0 %v1492
        %1991 = vmatmul.bf16.gmra.mxu0 %v712
        %v1992 = vpop.f32.mrf.mxu0
        %v1993 = vadd.f32 %v1979, %v1992
        %v1994 = vpop.f32.mrf.mxu0
        %v1995 = vadd.f32 %v1981, %v1994
        %1996 = vdwg.mxu0
        %1997 = vmatpush.bf16.msra.mxu0 %v1552
        %1998 = vmatpush.bf16.msra.mxu0 %v1548
        %1999 = vmatpush.bf16.msra.mxu0 %v1544
        %2000 = vmatpush.bf16.msra.mxu0 %v1540
        %2001 = vmatpush.bf16.msra.mxu0 %v1536
        %2002 = vmatpush.bf16.msra.mxu0 %v1532
        %2003 = vmatpush.bf16.msra.mxu0 %v1528
        %2004 = vmatpush.bf16.msra.mxu0 %v1524
        %2005 = vmatmul.bf16.gmra.mxu0 %v713
        %v2006 = vpop.f32.mrf.mxu0
        %v2007 = vadd.f32 %v1993, %v2006
        %v2008 = vpop.f32.mrf.mxu0
        %v2009 = vadd.f32 %v1995, %v2008
        %2010 = vdwg.mxu0
        %2011 = vmatpush.bf16.msra.mxu0 %v1584
        %2012 = vmatpush.bf16.msra.mxu0 %v1580
        %2013 = vmatpush.bf16.msra.mxu0 %v1576
        %2014 = vmatpush.bf16.msra.mxu0 %v1572
        %2015 = vmatpush.bf16.msra.mxu0 %v1568
        %2016 = vmatpush.bf16.msra.mxu0 %v1564
        %2017 = vmatpush.bf16.msra.mxu0 %v1560
        %2018 = vmatpush.bf16.msra.mxu0 %v1556
        %2019 = vmatmul.bf16.gmra.mxu0 %v714
        %v2020 = vpop.f32.mrf.mxu0
        %v2021 = vadd.f32 %v2007, %v2020
        %v2022 = vpop.f32.mrf.mxu0
        %v2023 = vadd.f32 %v2009, %v2022
        %2024 = vdwg.mxu0
        %2025 = vmatpush.bf16.msra.mxu0 %v1616
        %2026 = vmatpush.bf16.msra.mxu0 %v1612
        %2027 = vmatpush.bf16.msra.mxu0 %v1608
        %2028 = vmatpush.bf16.msra.mxu0 %v1604
        %2029 = vmatpush.bf16.msra.mxu0 %v1600
        %2030 = vmatpush.bf16.msra.mxu0 %v1596
        %2031 = vmatpush.bf16.msra.mxu0 %v1592
        %2032 = vmatpush.bf16.msra.mxu0 %v1588
        %2033 = vmatmul.bf16.gmra.mxu0 %v715
        %v2034 = vpop.f32.mrf.mxu0
        %v2035 = vadd.f32 %v2021, %v2034
        %v2036 = vpop.f32.mrf.mxu0
        %v2037 = vadd.f32 %v2023, %v2036
        %2038 = vdwg.mxu0
        %2039 = vmatpush.bf16.msra.mxu0 %v1425
        %2040 = vmatpush.bf16.msra.mxu0 %v1421
        %2041 = vmatpush.bf16.msra.mxu0 %v1417
        %2042 = vmatpush.bf16.msra.mxu0 %v1413
        %2043 = vmatpush.bf16.msra.mxu0 %v1409
        %2044 = vmatpush.bf16.msra.mxu0 %v1405
        %2045 = vmatpush.bf16.msra.mxu0 %v1401
        %2046 = vmatpush.bf16.msra.mxu0 %v1397
        %2047 = vmatmul.bf16.gmra.mxu0 %v709
        %v2048 = vpop.f32.mrf.mxu0
        %v2049 = vadd.f32 %v681, %v2048
        %v2050 = vpop.f32.mrf.mxu0
        %v2051 = vadd.f32 %v681, %v2050
        %2052 = vdwg.mxu0
        %2053 = vmatpush.bf16.msra.mxu0 %v1457
        %2054 = vmatpush.bf16.msra.mxu0 %v1453
        %2055 = vmatpush.bf16.msra.mxu0 %v1449
        %2056 = vmatpush.bf16.msra.mxu0 %v1445
        %2057 = vmatpush.bf16.msra.mxu0 %v1441
        %2058 = vmatpush.bf16.msra.mxu0 %v1437
        %2059 = vmatpush.bf16.msra.mxu0 %v1433
        %2060 = vmatpush.bf16.msra.mxu0 %v1429
        %2061 = vmatmul.bf16.gmra.mxu0 %v710
        %v2062 = vpop.f32.mrf.mxu0
        %v2063 = vadd.f32 %v2049, %v2062
        %v2064 = vpop.f32.mrf.mxu0
        %v2065 = vadd.f32 %v2051, %v2064
        %2066 = vdwg.mxu0
        %2067 = vmatpush.bf16.msra.mxu0 %v1489
        %2068 = vmatpush.bf16.msra.mxu0 %v1485
        %2069 = vmatpush.bf16.msra.mxu0 %v1481
        %2070 = vmatpush.bf16.msra.mxu0 %v1477
        %2071 = vmatpush.bf16.msra.mxu0 %v1473
        %2072 = vmatpush.bf16.msra.mxu0 %v1469
        %2073 = vmatpush.bf16.msra.mxu0 %v1465
        %2074 = vmatpush.bf16.msra.mxu0 %v1461
        %2075 = vmatmul.bf16.gmra.mxu0 %v711
        %v2076 = vpop.f32.mrf.mxu0
        %v2077 = vadd.f32 %v2063, %v2076
        %v2078 = vpop.f32.mrf.mxu0
        %v2079 = vadd.f32 %v2065, %v2078
        %2080 = vdwg.mxu0
        %2081 = vmatpush.bf16.msra.mxu0 %v1521
        %2082 = vmatpush.bf16.msra.mxu0 %v1517
        %2083 = vmatpush.bf16.msra.mxu0 %v1513
        %2084 = vmatpush.bf16.msra.mxu0 %v1509
        %2085 = vmatpush.bf16.msra.mxu0 %v1505
        %2086 = vmatpush.bf16.msra.mxu0 %v1501
        %2087 = vmatpush.bf16.msra.mxu0 %v1497
        %2088 = vmatpush.bf16.msra.mxu0 %v1493
        %2089 = vmatmul.bf16.gmra.mxu0 %v712
        %v2090 = vpop.f32.mrf.mxu0
        %v2091 = vadd.f32 %v2077, %v2090
        %v2092 = vpop.f32.mrf.mxu0
        %v2093 = vadd.f32 %v2079, %v2092
        %2094 = vdwg.mxu0
        %2095 = vmatpush.bf16.msra.mxu0 %v1553
        %2096 = vmatpush.bf16.msra.mxu0 %v1549
        %2097 = vmatpush.bf16.msra.mxu0 %v1545
        %2098 = vmatpush.bf16.msra.mxu0 %v1541
        %2099 = vmatpush.bf16.msra.mxu0 %v1537
        %2100 = vmatpush.bf16.msra.mxu0 %v1533
        %2101 = vmatpush.bf16.msra.mxu0 %v1529
        %2102 = vmatpush.bf16.msra.mxu0 %v1525
        %2103 = vmatmul.bf16.gmra.mxu0 %v713
        %v2104 = vpop.f32.mrf.mxu0
        %v2105 = vadd.f32 %v2091, %v2104
        %v2106 = vpop.f32.mrf.mxu0
        %v2107 = vadd.f32 %v2093, %v2106
        %2108 = vdwg.mxu0
        %2109 = vmatpush.bf16.msra.mxu0 %v1585
        %2110 = vmatpush.bf16.msra.mxu0 %v1581
        %2111 = vmatpush.bf16.msra.mxu0 %v1577
        %2112 = vmatpush.bf16.msra.mxu0 %v1573
        %2113 = vmatpush.bf16.msra.mxu0 %v1569
        %2114 = vmatpush.bf16.msra.mxu0 %v1565
        %2115 = vmatpush.bf16.msra.mxu0 %v1561
        %2116 = vmatpush.bf16.msra.mxu0 %v1557
        %2117 = vmatmul.bf16.gmra.mxu0 %v714
        %v2118 = vpop.f32.mrf.mxu0
        %v2119 = vadd.f32 %v2105, %v2118
        %v2120 = vpop.f32.mrf.mxu0
        %v2121 = vadd.f32 %v2107, %v2120
        %2122 = vdwg.mxu0
        %2123 = vmatpush.bf16.msra.mxu0 %v1617
        %2124 = vmatpush.bf16.msra.mxu0 %v1613
        %2125 = vmatpush.bf16.msra.mxu0 %v1609
        %2126 = vmatpush.bf16.msra.mxu0 %v1605
        %2127 = vmatpush.bf16.msra.mxu0 %v1601
        %2128 = vmatpush.bf16.msra.mxu0 %v1597
        %2129 = vmatpush.bf16.msra.mxu0 %v1593
        %2130 = vmatpush.bf16.msra.mxu0 %v1589
        %2131 = vmatmul.bf16.gmra.mxu0 %v715
        %v2132 = vpop.f32.mrf.mxu0
        %v2133 = vadd.f32 %v2119, %v2132
        %v2134 = vpop.f32.mrf.mxu0
        %v2135 = vadd.f32 %v2121, %v2134
        %2136 = vdwg.mxu0
        %2137 = vmatpush.bf16.msra.mxu0 %v1426
        %2138 = vmatpush.bf16.msra.mxu0 %v1422
        %2139 = vmatpush.bf16.msra.mxu0 %v1418
        %2140 = vmatpush.bf16.msra.mxu0 %v1414
        %2141 = vmatpush.bf16.msra.mxu0 %v1410
        %2142 = vmatpush.bf16.msra.mxu0 %v1406
        %2143 = vmatpush.bf16.msra.mxu0 %v1402
        %2144 = vmatpush.bf16.msra.mxu0 %v1398
        %2145 = vmatmul.bf16.gmra.mxu0 %v709
        %v2146 = vpop.f32.mrf.mxu0
        %v2147 = vadd.f32 %v682, %v2146
        %v2148 = vpop.f32.mrf.mxu0
        %v2149 = vadd.f32 %v682, %v2148
        %2150 = vdwg.mxu0
        %2151 = vmatpush.bf16.msra.mxu0 %v1458
        %2152 = vmatpush.bf16.msra.mxu0 %v1454
        %2153 = vmatpush.bf16.msra.mxu0 %v1450
        %2154 = vmatpush.bf16.msra.mxu0 %v1446
        %2155 = vmatpush.bf16.msra.mxu0 %v1442
        %2156 = vmatpush.bf16.msra.mxu0 %v1438
        %2157 = vmatpush.bf16.msra.mxu0 %v1434
        %2158 = vmatpush.bf16.msra.mxu0 %v1430
        %2159 = vmatmul.bf16.gmra.mxu0 %v710
        %v2160 = vpop.f32.mrf.mxu0
        %v2161 = vadd.f32 %v2147, %v2160
        %v2162 = vpop.f32.mrf.mxu0
        %v2163 = vadd.f32 %v2149, %v2162
        %2164 = vdwg.mxu0
        %2165 = vmatpush.bf16.msra.mxu0 %v1490
        %2166 = vmatpush.bf16.msra.mxu0 %v1486
        %2167 = vmatpush.bf16.msra.mxu0 %v1482
        %2168 = vmatpush.bf16.msra.mxu0 %v1478
        %2169 = vmatpush.bf16.msra.mxu0 %v1474
        %2170 = vmatpush.bf16.msra.mxu0 %v1470
        %2171 = vmatpush.bf16.msra.mxu0 %v1466
        %2172 = vmatpush.bf16.msra.mxu0 %v1462
        %2173 = vmatmul.bf16.gmra.mxu0 %v711
        %v2174 = vpop.f32.mrf.mxu0
        %v2175 = vadd.f32 %v2161, %v2174
        %v2176 = vpop.f32.mrf.mxu0
        %v2177 = vadd.f32 %v2163, %v2176
        %2178 = vdwg.mxu0
        %2179 = vmatpush.bf16.msra.mxu0 %v1522
        %2180 = vmatpush.bf16.msra.mxu0 %v1518
        %2181 = vmatpush.bf16.msra.mxu0 %v1514
        %2182 = vmatpush.bf16.msra.mxu0 %v1510
        %2183 = vmatpush.bf16.msra.mxu0 %v1506
        %2184 = vmatpush.bf16.msra.mxu0 %v1502
        %2185 = vmatpush.bf16.msra.mxu0 %v1498
        %2186 = vmatpush.bf16.msra.mxu0 %v1494
        %2187 = vmatmul.bf16.gmra.mxu0 %v712
        %v2188 = vpop.f32.mrf.mxu0
        %v2189 = vadd.f32 %v2175, %v2188
        %v2190 = vpop.f32.mrf.mxu0
        %v2191 = vadd.f32 %v2177, %v2190
        %2192 = vdwg.mxu0
        %2193 = vmatpush.bf16.msra.mxu0 %v1554
        %2194 = vmatpush.bf16.msra.mxu0 %v1550
        %2195 = vmatpush.bf16.msra.mxu0 %v1546
        %2196 = vmatpush.bf16.msra.mxu0 %v1542
        %2197 = vmatpush.bf16.msra.mxu0 %v1538
        %2198 = vmatpush.bf16.msra.mxu0 %v1534
        %2199 = vmatpush.bf16.msra.mxu0 %v1530
        %2200 = vmatpush.bf16.msra.mxu0 %v1526
        %2201 = vmatmul.bf16.gmra.mxu0 %v713
        %v2202 = vpop.f32.mrf.mxu0
        %v2203 = vadd.f32 %v2189, %v2202
        %v2204 = vpop.f32.mrf.mxu0
        %v2205 = vadd.f32 %v2191, %v2204
        %2206 = vdwg.mxu0
        %2207 = vmatpush.bf16.msra.mxu0 %v1586
        %2208 = vmatpush.bf16.msra.mxu0 %v1582
        %2209 = vmatpush.bf16.msra.mxu0 %v1578
        %2210 = vmatpush.bf16.msra.mxu0 %v1574
        %2211 = vmatpush.bf16.msra.mxu0 %v1570
        %2212 = vmatpush.bf16.msra.mxu0 %v1566
        %2213 = vmatpush.bf16.msra.mxu0 %v1562
        %2214 = vmatpush.bf16.msra.mxu0 %v1558
        %2215 = vmatmul.bf16.gmra.mxu0 %v714
        %v2216 = vpop.f32.mrf.mxu0
        %v2217 = vadd.f32 %v2203, %v2216
        %v2218 = vpop.f32.mrf.mxu0
        %v2219 = vadd.f32 %v2205, %v2218
        %2220 = vdwg.mxu0
        %2221 = vmatpush.bf16.msra.mxu0 %v1618
        %2222 = vmatpush.bf16.msra.mxu0 %v1614
        %2223 = vmatpush.bf16.msra.mxu0 %v1610
        %2224 = vmatpush.bf16.msra.mxu0 %v1606
        %2225 = vmatpush.bf16.msra.mxu0 %v1602
        %2226 = vmatpush.bf16.msra.mxu0 %v1598
        %2227 = vmatpush.bf16.msra.mxu0 %v1594
        %2228 = vmatpush.bf16.msra.mxu0 %v1590
        %2229 = vmatmul.bf16.gmra.mxu0 %v715
        %v2230 = vpop.f32.mrf.mxu0
        %v2231 = vadd.f32 %v2217, %v2230
        %v2232 = vpop.f32.mrf.mxu0
        %v2233 = vadd.f32 %v2219, %v2232
        %2234 = vdwg.mxu0
        %v2235 = vmax.f32 %v1937, 0.0
        %v2236 = vmax.f32 %v2035, 0.0
        %v2237 = vmax.f32 %v2133, 0.0
        %v2238 = vmax.f32 %v2231, 0.0
        %v2239 = vmax.f32 %v1939, 0.0
        %v2240 = vmax.f32 %v2037, 0.0
        %v2241 = vmax.f32 %v2135, 0.0
        %v2242 = vmax.f32 %v2233, 0.0
        %v2243 = vpack.c.bf16 %v2239, %v2235
        %v2244 = vpack.c.bf16 %v2240, %v2236
        %v2245 = vpack.c.bf16 %v2241, %v2237
        %v2246 = vpack.c.bf16 %v2242, %v2238
        %v2247 = vld [vmem:[%s4] sm:$0xf]
        %v2248 = vld [vmem:[%s4 + $0x4] sm:$0xf]
        %v2249 = vld [vmem:[%s4 + $0x8] sm:$0xf]
        %v2250 = vld [vmem:[%s4 + $0xc] sm:$0xf]
        %v2251 = vld [vmem:[%s4 + $0x10] sm:$0xf]
        %v2252 = vld [vmem:[%s4 + $0x14] sm:$0xf]
        %v2253 = vld [vmem:[%s4 + $0x18] sm:$0xf]
        %v2254 = vld [vmem:[%s4 + $0x1c] sm:$0xf]
        %v2255 = vld [vmem:[%s4 + $0x20] sm:$0xf]
        %v2256 = vld [vmem:[%s4 + $0x24] sm:$0xf]
        %v2257 = vld [vmem:[%s4 + $0x28] sm:$0xf]
        %v2258 = vld [vmem:[%s4 + $0x2c] sm:$0xf]
        %v2259 = vld [vmem:[%s4 + $0x30] sm:$0xf]
        %v2260 = vld [vmem:[%s4 + $0x34] sm:$0xf]
        %v2261 = vld [vmem:[%s4 + $0x38] sm:$0xf]
        %v2262 = vld [vmem:[%s4 + $0x3c] sm:$0xf]
        %v2263 = vld [vmem:[%s4 + $0x40] sm:$0xf]
        %v2264 = vld [vmem:[%s4 + $0x44] sm:$0xf]
        %v2265 = vld [vmem:[%s4 + $0x48] sm:$0xf]
        %v2266 = vld [vmem:[%s4 + $0x4c] sm:$0xf]
        %v2267 = vld [vmem:[%s4 + $0x50] sm:$0xf]
        %v2268 = vld [vmem:[%s4 + $0x54] sm:$0xf]
        %v2269 = vld [vmem:[%s4 + $0x58] sm:$0xf]
        %v2270 = vld [vmem:[%s4 + $0x5c] sm:$0xf]
        %v2271 = vld [vmem:[%s4 + $0x60] sm:$0xf]
        %v2272 = vld [vmem:[%s4 + $0x64] sm:$0xf]
        %v2273 = vld [vmem:[%s4 + $0x68] sm:$0xf]
        %v2274 = vld [vmem:[%s4 + $0x6c] sm:$0xf]
        %v2275 = vld [vmem:[%s4 + $0x70] sm:$0xf]
        %v2276 = vld [vmem:[%s4 + $0x74] sm:$0xf]
        %v2277 = vld [vmem:[%s4 + $0x78] sm:$0xf]
        %v2278 = vld [vmem:[%s4 + $0x7c] sm:$0xf]
        %v2279 = vld [vmem:[%s4 + $0x80] sm:$0xf]
        %v2280 = vld [vmem:[%s4 + $0x84] sm:$0xf]
        %v2281 = vld [vmem:[%s4 + $0x88] sm:$0xf]
        %v2282 = vld [vmem:[%s4 + $0x8c] sm:$0xf]
        %v2283 = vld [vmem:[%s4 + $0x90] sm:$0xf]
        %v2284 = vld [vmem:[%s4 + $0x94] sm:$0xf]
        %v2285 = vld [vmem:[%s4 + $0x98] sm:$0xf]
        %v2286 = vld [vmem:[%s4 + $0x9c] sm:$0xf]
        %v2287 = vld [vmem:[%s4 + $0xa0] sm:$0xf]
        %v2288 = vld [vmem:[%s4 + $0xa4] sm:$0xf]
        %v2289 = vld [vmem:[%s4 + $0xa8] sm:$0xf]
        %v2290 = vld [vmem:[%s4 + $0xac] sm:$0xf]
        %v2291 = vld [vmem:[%s4 + $0xb0] sm:$0xf]
        %v2292 = vld [vmem:[%s4 + $0xb4] sm:$0xf]
        %v2293 = vld [vmem:[%s4 + $0xb8] sm:$0xf]
        %v2294 = vld [vmem:[%s4 + $0xbc] sm:$0xf]
        %v2295 = vld [vmem:[%s4 + $0xc0] sm:$0xf]
        %v2296 = vld [vmem:[%s4 + $0xc4] sm:$0xf]
        %v2297 = vld [vmem:[%s4 + $0xc8] sm:$0xf]
        %v2298 = vld [vmem:[%s4 + $0xcc] sm:$0xf]
        %v2299 = vld [vmem:[%s4 + $0xd0] sm:$0xf]
        %v2300 = vld [vmem:[%s4 + $0xd4] sm:$0xf]
        %v2301 = vld [vmem:[%s4 + $0xd8] sm:$0xf]
        %v2302 = vld [vmem:[%s4 + $0xdc] sm:$0xf]
        %v2303 = vld [vmem:[%s4 + $0xe0] sm:$0xf]
        %v2304 = vld [vmem:[%s4 + $0xe4] sm:$0xf]
        %v2305 = vld [vmem:[%s4 + $0xe8] sm:$0xf]
        %v2306 = vld [vmem:[%s4 + $0xec] sm:$0xf]
        %v2307 = vld [vmem:[%s4 + $0xf0] sm:$0xf]
        %v2308 = vld [vmem:[%s4 + $0xf4] sm:$0xf]
        %v2309 = vld [vmem:[%s4 + $0xf8] sm:$0xf]
        %v2310 = vld [vmem:[%s4 + $0xfc] sm:$0xf]
        %v2311 = vld [vmem:[%s5] sm:$0x1]
        %v2313 = vperm.slane %v2311, 0
        %v2379 = vunpack.c.l.b16 %v2247
        %v2380 = vunpack.c.l.b16 %v2248
        %v2381 = vunpack.c.l.b16 %v2249
        %v2382 = vunpack.c.l.b16 %v2250
        %v2383 = vunpack.c.l.b16 %v2251
        %v2384 = vunpack.c.l.b16 %v2252
        %v2385 = vunpack.c.l.b16 %v2253
        %v2386 = vunpack.c.l.b16 %v2254
        %v2387 = vunpack.c.l.b16 %v2255
        %v2388 = vunpack.c.l.b16 %v2256
        %v2389 = vunpack.c.l.b16 %v2257
        %v2390 = vunpack.c.l.b16 %v2258
        %v2391 = vunpack.c.l.b16 %v2259
        %v2392 = vunpack.c.l.b16 %v2260
        %v2393 = vunpack.c.l.b16 %v2261
        %v2394 = vunpack.c.l.b16 %v2262
        %v2395 = vunpack.c.l.b16 %v2263
        %v2396 = vunpack.c.l.b16 %v2264
        %v2397 = vunpack.c.l.b16 %v2265
        %v2398 = vunpack.c.l.b16 %v2266
        %v2399 = vunpack.c.l.b16 %v2267
        %v2400 = vunpack.c.l.b16 %v2268
        %v2401 = vunpack.c.l.b16 %v2269
        %v2402 = vunpack.c.l.b16 %v2270
        %v2403 = vunpack.c.l.b16 %v2271
        %v2404 = vunpack.c.l.b16 %v2272
        %v2405 = vunpack.c.l.b16 %v2273
        %v2406 = vunpack.c.l.b16 %v2274
        %v2407 = vunpack.c.l.b16 %v2275
        %v2408 = vunpack.c.l.b16 %v2276
        %v2409 = vunpack.c.l.b16 %v2277
        %v2410 = vunpack.c.l.b16 %v2278
        %v2411 = vunpack.c.l.b16 %v2279
        %v2412 = vunpack.c.l.b16 %v2280
        %v2413 = vunpack.c.l.b16 %v2281
        %v2414 = vunpack.c.l.b16 %v2282
        %v2415 = vunpack.c.l.b16 %v2283
        %v2416 = vunpack.c.l.b16 %v2284
        %v2417 = vunpack.c.l.b16 %v2285
        %v2418 = vunpack.c.l.b16 %v2286
        %v2419 = vunpack.c.l.b16 %v2287
        %v2420 = vunpack.c.l.b16 %v2288
        %v2421 = vunpack.c.l.b16 %v2289
        %v2422 = vunpack.c.l.b16 %v2290
        %v2423 = vunpack.c.l.b16 %v2291
        %v2424 = vunpack.c.l.b16 %v2292
        %v2425 = vunpack.c.l.b16 %v2293
        %v2426 = vunpack.c.l.b16 %v2294
        %v2427 = vunpack.c.l.b16 %v2295
        %v2428 = vunpack.c.l.b16 %v2296
        %v2429 = vunpack.c.l.b16 %v2297
        %v2430 = vunpack.c.l.b16 %v2298
        %v2431 = vunpack.c.l.b16 %v2299
        %v2432 = vunpack.c.l.b16 %v2300
        %v2433 = vunpack.c.l.b16 %v2301
        %v2434 = vunpack.c.l.b16 %v2302
        %v2435 = vunpack.c.l.b16 %v2303
        %v2436 = vunpack.c.l.b16 %v2304
        %v2437 = vunpack.c.l.b16 %v2305
        %v2438 = vunpack.c.l.b16 %v2306
        %v2439 = vunpack.c.l.b16 %v2307
        %v2440 = vunpack.c.l.b16 %v2308
        %v2441 = vunpack.c.l.b16 %v2309
        %v2442 = vunpack.c.l.b16 %v2310
        %v2443 = vpack.c.b16 %v2380, %v2379
        %v2444 = vpack.c.b16 %v2382, %v2381
        %v2445 = vpack.c.b16 %v2384, %v2383
        %v2446 = vpack.c.b16 %v2386, %v2385
        %v2447 = vpack.c.b16 %v2388, %v2387
        %v2448 = vpack.c.b16 %v2390, %v2389
        %v2449 = vpack.c.b16 %v2392, %v2391
        %v2450 = vpack.c.b16 %v2394, %v2393
        %v2451 = vpack.c.b16 %v2396, %v2395
        %v2452 = vpack.c.b16 %v2398, %v2397
        %v2453 = vpack.c.b16 %v2400, %v2399
        %v2454 = vpack.c.b16 %v2402, %v2401
        %v2455 = vpack.c.b16 %v2404, %v2403
        %v2456 = vpack.c.b16 %v2406, %v2405
        %v2457 = vpack.c.b16 %v2408, %v2407
        %v2458 = vpack.c.b16 %v2410, %v2409
        %v2459 = vpack.c.b16 %v2412, %v2411
        %v2460 = vpack.c.b16 %v2414, %v2413
        %v2461 = vpack.c.b16 %v2416, %v2415
        %v2462 = vpack.c.b16 %v2418, %v2417
        %v2463 = vpack.c.b16 %v2420, %v2419
        %v2464 = vpack.c.b16 %v2422, %v2421
        %v2465 = vpack.c.b16 %v2424, %v2423
        %v2466 = vpack.c.b16 %v2426, %v2425
        %v2467 = vpack.c.b16 %v2428, %v2427
        %v2468 = vpack.c.b16 %v2430, %v2429
        %v2469 = vpack.c.b16 %v2432, %v2431
        %v2470 = vpack.c.b16 %v2434, %v2433
        %v2471 = vpack.c.b16 %v2436, %v2435
        %v2472 = vpack.c.b16 %v2438, %v2437
        %v2473 = vpack.c.b16 %v2440, %v2439
        %v2474 = vpack.c.b16 %v2442, %v2441
        %2507 = vmatpush.bf16.msra.mxu0 %v2450
        %2508 = vmatpush.bf16.msra.mxu0 %v2449
        %2509 = vmatpush.bf16.msra.mxu0 %v2448
        %2510 = vmatpush.bf16.msra.mxu0 %v2447
        %2511 = vmatpush.bf16.msra.mxu0 %v2446
        %2512 = vmatpush.bf16.msra.mxu0 %v2445
        %2513 = vmatpush.bf16.msra.mxu0 %v2444
        %2514 = vmatpush.bf16.msra.mxu0 %v2443
        %2515 = vmatmul.bf16.gmra.mxu0 %v2243
        %v2516 = vpop.f32.mrf.mxu0
        %v2517 = vadd.f32 %v2313, %v2516
        %v2518 = vpop.f32.mrf.mxu0
        %v2519 = vadd.f32 %v2313, %v2518
        %2520 = vdwg.mxu0
        %2521 = vmatpush.bf16.msra.mxu0 %v2458
        %2522 = vmatpush.bf16.msra.mxu0 %v2457
        %2523 = vmatpush.bf16.msra.mxu0 %v2456
        %2524 = vmatpush.bf16.msra.mxu0 %v2455
        %2525 = vmatpush.bf16.msra.mxu0 %v2454
        %2526 = vmatpush.bf16.msra.mxu0 %v2453
        %2527 = vmatpush.bf16.msra.mxu0 %v2452
        %2528 = vmatpush.bf16.msra.mxu0 %v2451
        %2529 = vmatmul.bf16.gmra.mxu0 %v2244
        %v2530 = vpop.f32.mrf.mxu0
        %v2531 = vadd.f32 %v2517, %v2530
        %v2532 = vpop.f32.mrf.mxu0
        %v2533 = vadd.f32 %v2519, %v2532
        %2534 = vdwg.mxu0
        %2535 = vmatpush.bf16.msra.mxu0 %v2466
        %2536 = vmatpush.bf16.msra.mxu0 %v2465
        %2537 = vmatpush.bf16.msra.mxu0 %v2464
        %2538 = vmatpush.bf16.msra.mxu0 %v2463
        %2539 = vmatpush.bf16.msra.mxu0 %v2462
        %2540 = vmatpush.bf16.msra.mxu0 %v2461
        %2541 = vmatpush.bf16.msra.mxu0 %v2460
        %2542 = vmatpush.bf16.msra.mxu0 %v2459
        %2543 = vmatmul.bf16.gmra.mxu0 %v2245
        %v2544 = vpop.f32.mrf.mxu0
        %v2545 = vadd.f32 %v2531, %v2544
        %v2546 = vpop.f32.mrf.mxu0
        %v2547 = vadd.f32 %v2533, %v2546
        %2548 = vdwg.mxu0
        %2549 = vmatpush.bf16.msra.mxu0 %v2474
        %2550 = vmatpush.bf16.msra.mxu0 %v2473
        %2551 = vmatpush.bf16.msra.mxu0 %v2472
        %2552 = vmatpush.bf16.msra.mxu0 %v2471
        %2553 = vmatpush.bf16.msra.mxu0 %v2470
        %2554 = vmatpush.bf16.msra.mxu0 %v2469
        %2555 = vmatpush.bf16.msra.mxu0 %v2468
        %2556 = vmatpush.bf16.msra.mxu0 %v2467
        %2557 = vmatmul.bf16.gmra.mxu0 %v2246
        %v2558 = vpop.f32.mrf.mxu0
        %v2559 = vadd.f32 %v2545, %v2558
        %v2560 = vpop.f32.mrf.mxu0
        %v2561 = vadd.f32 %v2547, %v2560
        %2562 = vdwg.mxu0
        %v2563 = vld [vmem:[%s435] sm:$0xf]
        %v2564 = vld [vmem:[%s435 + $0x4] sm:$0xf]
        %v2565 = vunpack.c.l.bf16 %v2563
        %v2566 = vunpack.c.l.bf16 %v2564
        %v2567 = vmul.f32 %v2559, 0.5
        %v2568 = vmul.f32 %v2561, 0.5
        %v2569 = vmul.f32 %v2567, 1.442695
        %v2570 = vpow.pop %v2569
        %v2571 = vmul.f32 %v2568, 1.442695
        %v2572 = vpow.pop %v2571
        %2575 = vrot.lane.b32.xlu0 %v2570, 64
        %v2576 = vpop.permute.xlu0 %2575
        %2577 = vrot.lane.b32.xlu0 %v2572, 64
        %v2578 = vpop.permute.xlu0 %2577
        %v2581 = vmul.f32 %v2565, %v2576
        %v2582 = vmul.f32 %v2566, %v2578
        %v2583 = vadd.f32 %v2581, %v2559
        %v2584 = vadd.f32 %v2582, %v2561
        %v2585 = vpack.c.bf16 %v2584, %v2583
        %v2586 = vld [vmem:[%s6] sm:$0xff]
        %v2587 = vld [vmem:[%s6 + $0x8] sm:$0xff]
        %v2588 = vld [vmem:[%s6 + $0x10] sm:$0xff]
        %v2589 = vld [vmem:[%s6 + $0x18] sm:$0xff]
        %v2590 = vld [vmem:[%s6 + $0x20] sm:$0xff]
        %v2591 = vld [vmem:[%s6 + $0x28] sm:$0xff]
        %v2592 = vld [vmem:[%s6 + $0x30] sm:$0xff]
        %v2593 = vld [vmem:[%s6 + $0x38] sm:$0xff]
        %v2594 = vld [vmem:[%s6 + $0x40] sm:$0xff]
        %v2595 = vld [vmem:[%s6 + $0x48] sm:$0xff]
        %v2596 = vld [vmem:[%s6 + $0x50] sm:$0xff]
        %v2597 = vld [vmem:[%s6 + $0x58] sm:$0xff]
        %v2598 = vld [vmem:[%s6 + $0x60] sm:$0xff]
        %v2599 = vld [vmem:[%s6 + $0x68] sm:$0xff]
        %v2600 = vld [vmem:[%s6 + $0x70] sm:$0xff]
        %v2601 = vld [vmem:[%s6 + $0x78] sm:$0xff]
        %v2602 = vld [vmem:[%s7] sm:$0xf]
        %v2604 = vperm.slane %v2602, 0
        %v2605 = vperm.slane %v2602, 1
        %v2606 = vperm.slane %v2602, 2
        %v2607 = vperm.slane %v2602, 3
        %v2628 = vunpack.c.l.b16 %v2586
        %v2629 = vunpack.c.h.b16 %v2586
        %v2630 = vunpack.c.l.b16 %v2587
        %v2631 = vunpack.c.h.b16 %v2587
        %v2632 = vunpack.c.l.b16 %v2588
        %v2633 = vunpack.c.h.b16 %v2588
        %v2634 = vunpack.c.l.b16 %v2589
        %v2635 = vunpack.c.h.b16 %v2589
        %v2636 = vunpack.c.l.b16 %v2590
        %v2637 = vunpack.c.h.b16 %v2590
        %v2638 = vunpack.c.l.b16 %v2591
        %v2639 = vunpack.c.h.b16 %v2591
        %v2640 = vunpack.c.l.b16 %v2592
        %v2641 = vunpack.c.h.b16 %v2592
        %v2642 = vunpack.c.l.b16 %v2593
        %v2643 = vunpack.c.h.b16 %v2593
        %v2644 = vunpack.c.l.b16 %v2594
        %v2645 = vunpack.c.h.b16 %v2594
        %v2646 = vunpack.c.l.b16 %v2595
        %v2647 = vunpack.c.h.b16 %v2595
        %v2648 = vunpack.c.l.b16 %v2596
        %v2649 = vunpack.c.h.b16 %v2596
        %v2650 = vunpack.c.l.b16 %v2597
        %v2651 = vunpack.c.h.b16 %v2597
        %v2652 = vunpack.c.l.b16 %v2598
        %v2653 = vunpack.c.h.b16 %v2598
        %v2654 = vunpack.c.l.b16 %v2599
        %v2655 = vunpack.c.h.b16 %v2599
        %v2656 = vunpack.c.l.b16 %v2600
        %v2657 = vunpack.c.h.b16 %v2600
        %v2658 = vunpack.c.l.b16 %v2601
        %v2659 = vunpack.c.h.b16 %v2601
        %v2660 = vpack.c.b16 %v2632, %v2628
        %v2661 = vpack.c.b16 %v2633, %v2629
        %v2662 = vpack.c.b16 %v2634, %v2630
        %v2663 = vpack.c.b16 %v2635, %v2631
        %v2664 = vpack.c.b16 %v2640, %v2636
        %v2665 = vpack.c.b16 %v2641, %v2637
        %v2666 = vpack.c.b16 %v2642, %v2638
        %v2667 = vpack.c.b16 %v2643, %v2639
        %v2668 = vpack.c.b16 %v2648, %v2644
        %v2669 = vpack.c.b16 %v2649, %v2645
        %v2670 = vpack.c.b16 %v2650, %v2646
        %v2671 = vpack.c.b16 %v2651, %v2647
        %v2672 = vpack.c.b16 %v2656, %v2652
        %v2673 = vpack.c.b16 %v2657, %v2653
        %v2674 = vpack.c.b16 %v2658, %v2654
        %v2675 = vpack.c.b16 %v2659, %v2655
        %vm2692 = vcmask 523264
        %v2694 = vsel %vm2692, %v2585, 0
        %2696 = vmatpush.bf16.msra.mxu0 0
        %2697 = vmatpush.bf16.msra.mxu0 0
        %2698 = vmatpush.bf16.msra.mxu0 0
        %2699 = vmatpush.bf16.msra.mxu0 0
        %2700 = vmatpush.bf16.msra.mxu0 %v2672
        %2701 = vmatpush.bf16.msra.mxu0 %v2668
        %2702 = vmatpush.bf16.msra.mxu0 %v2664
        %2703 = vmatpush.bf16.msra.mxu0 %v2660
        %2704 = vmatmul.bf16.gmra.mxu0 %v2694
        %v2705 = vpop.f32.mrf.mxu0
        %v2706 = vadd.f32 %v2604, %v2705
        %v2707 = vpop.f32.mrf.mxu0
        %v2708 = vadd.f32 %v2604, %v2707
        %2709 = vdwg.mxu0
        %2710 = vmatpush.bf16.msra.mxu0 0
        %2711 = vmatpush.bf16.msra.mxu0 0
        %2712 = vmatpush.bf16.msra.mxu0 0
        %2713 = vmatpush.bf16.msra.mxu0 0
        %2714 = vmatpush.bf16.msra.mxu0 %v2673
        %2715 = vmatpush.bf16.msra.mxu0 %v2669
        %2716 = vmatpush.bf16.msra.mxu0 %v2665
        %2717 = vmatpush.bf16.msra.mxu0 %v2661
        %2718 = vmatmul.bf16.gmra.mxu0 %v2694
        %v2719 = vpop.f32.mrf.mxu0
        %v2720 = vadd.f32 %v2605, %v2719
        %v2721 = vpop.f32.mrf.mxu0
        %v2722 = vadd.f32 %v2605, %v2721
        %2723 = vdwg.mxu0
        %2724 = vmatpush.bf16.msra.mxu0 0
        %2725 = vmatpush.bf16.msra.mxu0 0
        %2726 = vmatpush.bf16.msra.mxu0 0
        %2727 = vmatpush.bf16.msra.mxu0 0
        %2728 = vmatpush.bf16.msra.mxu0 %v2674
        %2729 = vmatpush.bf16.msra.mxu0 %v2670
        %2730 = vmatpush.bf16.msra.mxu0 %v2666
        %2731 = vmatpush.bf16.msra.mxu0 %v2662
        %2732 = vmatmul.bf16.gmra.mxu0 %v2694
        %v2733 = vpop.f32.mrf.mxu0
        %v2734 = vadd.f32 %v2606, %v2733
        %v2735 = vpop.f32.mrf.mxu0
        %v2736 = vadd.f32 %v2606, %v2735
        %2737 = vdwg.mxu0
        %2738 = vmatpush.bf16.msra.mxu0 0
        %2739 = vmatpush.bf16.msra.mxu0 0
        %2740 = vmatpush.bf16.msra.mxu0 0
        %2741 = vmatpush.bf16.msra.mxu0 0
        %2742 = vmatpush.bf16.msra.mxu0 %v2675
        %2743 = vmatpush.bf16.msra.mxu0 %v2671
        %2744 = vmatpush.bf16.msra.mxu0 %v2667
        %2745 = vmatpush.bf16.msra.mxu0 %v2663
        %2746 = vmatmul.bf16.gmra.mxu0 %v2694
        %v2747 = vpop.f32.mrf.mxu0
        %v2748 = vadd.f32 %v2607, %v2747
        %v2749 = vpop.f32.mrf.mxu0
        %v2750 = vadd.f32 %v2607, %v2749
        %2751 = vdwg.mxu0
        %v2752 = vmax.f32 %v2706, 0.0
        %v2753 = vmax.f32 %v2720, 0.0
        %v2754 = vmax.f32 %v2734, 0.0
        %v2755 = vmax.f32 %v2748, 0.0
        %v2756 = vmax.f32 %v2708, 0.0
        %v2757 = vmax.f32 %v2722, 0.0
        %v2758 = vmax.f32 %v2736, 0.0
        %v2759 = vmax.f32 %v2750, 0.0
        %v2760 = vpack.c.bf16 %v2756, %v2752
        %v2761 = vpack.c.bf16 %v2757, %v2753
        %v2762 = vpack.c.bf16 %v2758, %v2754
        %v2763 = vpack.c.bf16 %v2759, %v2755
        %v2764 = vld [vmem:[#allocation2] sm:$0xff]
        %v2765 = vld [vmem:[#allocation2 + $0x8] sm:$0xff]
        %v2766 = vld [vmem:[#allocation2 + $0x10] sm:$0xff]
        %v2767 = vld [vmem:[#allocation2 + $0x18] sm:$0xf]
        %v2768 = vld [vmem:[#allocation2 + $0x1c] sm:$0xff]
        %v2769 = vld [vmem:[#allocation2 + $0x24] sm:$0xff]
        %v2770 = vld [vmem:[#allocation2 + $0x2c] sm:$0xff]
        %v2771 = vld [vmem:[#allocation2 + $0x34] sm:$0xf]
        %v2772 = vld [vmem:[#allocation2 + $0x38] sm:$0xff]
        %v2773 = vld [vmem:[#allocation2 + $0x40] sm:$0xff]
        %v2774 = vld [vmem:[#allocation2 + $0x48] sm:$0xff]
        %v2775 = vld [vmem:[#allocation2 + $0x50] sm:$0xf]
        %v2776 = vld [vmem:[#allocation2 + $0x54] sm:$0xff]
        %v2777 = vld [vmem:[#allocation2 + $0x5c] sm:$0xff]
        %v2778 = vld [vmem:[#allocation2 + $0x64] sm:$0xff]
        %v2779 = vld [vmem:[#allocation2 + $0x6c] sm:$0xf]
        %v2780 = vld [vmem:[#allocation2 + $0x70] sm:$0xff]
        %v2781 = vld [vmem:[#allocation2 + $0x78] sm:$0xff]
        %v2782 = vld [vmem:[#allocation2 + $0x80] sm:$0xff]
        %v2783 = vld [vmem:[#allocation2 + $0x88] sm:$0xf]
        %v2784 = vld [vmem:[#allocation2 + $0x8c] sm:$0xff]
        %v2785 = vld [vmem:[#allocation2 + $0x94] sm:$0xff]
        %v2786 = vld [vmem:[#allocation2 + $0x9c] sm:$0xff]
        %v2787 = vld [vmem:[#allocation2 + $0xa4] sm:$0xf]
        %v2788 = vld [vmem:[#allocation2 + $0xa8] sm:$0xff]
        %v2789 = vld [vmem:[#allocation2 + $0xb0] sm:$0xff]
        %v2790 = vld [vmem:[#allocation2 + $0xb8] sm:$0xff]
        %v2791 = vld [vmem:[#allocation2 + $0xc0] sm:$0xf]
        %v2792 = vld [vmem:[#allocation2 + $0xc4] sm:$0xff]
        %v2793 = vld [vmem:[#allocation2 + $0xcc] sm:$0xff]
        %v2794 = vld [vmem:[#allocation2 + $0xd4] sm:$0xff]
        %v2795 = vld [vmem:[#allocation2 + $0xdc] sm:$0xf]
        %v2796 = vld [vmem:[#allocation2 + $0xe0] sm:$0xff]
        %v2797 = vld [vmem:[#allocation2 + $0xe8] sm:$0xff]
        %v2798 = vld [vmem:[#allocation2 + $0xf0] sm:$0xff]
        %v2799 = vld [vmem:[#allocation2 + $0xf8] sm:$0xf]
        %v2800 = vld [vmem:[#allocation2 + $0xfc] sm:$0xff]
        %v2801 = vld [vmem:[#allocation2 + $0x104] sm:$0xff]
        %v2802 = vld [vmem:[#allocation2 + $0x10c] sm:$0xff]
        %v2803 = vld [vmem:[#allocation2 + $0x114] sm:$0xf]
        %v2804 = vld [vmem:[#allocation2 + $0x118] sm:$0xff]
        %v2805 = vld [vmem:[#allocation2 + $0x120] sm:$0xff]
        %v2806 = vld [vmem:[#allocation2 + $0x128] sm:$0xff]
        %v2807 = vld [vmem:[#allocation2 + $0x130] sm:$0xf]
        %v2808 = vld [vmem:[#allocation2 + $0x134] sm:$0xff]
        %v2809 = vld [vmem:[#allocation2 + $0x13c] sm:$0xff]
        %v2810 = vld [vmem:[#allocation2 + $0x144] sm:$0xff]
        %v2811 = vld [vmem:[#allocation2 + $0x14c] sm:$0xf]
        %v2812 = vld [vmem:[#allocation2 + $0x150] sm:$0xff]
        %v2813 = vld [vmem:[#allocation2 + $0x158] sm:$0xff]
        %v2814 = vld [vmem:[#allocation2 + $0x160] sm:$0xff]
        %v2815 = vld [vmem:[#allocation2 + $0x168] sm:$0xf]
        %v2816 = vld [vmem:[#allocation2 + $0x16c] sm:$0xff]
        %v2817 = vld [vmem:[#allocation2 + $0x174] sm:$0xff]
        %v2818 = vld [vmem:[#allocation2 + $0x17c] sm:$0xff]
        %v2819 = vld [vmem:[#allocation2 + $0x184] sm:$0xf]
        %v2820 = vld [vmem:[#allocation2 + $0x188] sm:$0xff]
        %v2821 = vld [vmem:[#allocation2 + $0x190] sm:$0xff]
        %v2822 = vld [vmem:[#allocation2 + $0x198] sm:$0xff]
        %v2823 = vld [vmem:[#allocation2 + $0x1a0] sm:$0xf]
        %v2824 = vld [vmem:[#allocation2 + $0x1a4] sm:$0xff]
        %v2825 = vld [vmem:[#allocation2 + $0x1ac] sm:$0xff]
        %v2826 = vld [vmem:[#allocation2 + $0x1b4] sm:$0xff]
        %v2827 = vld [vmem:[#allocation2 + $0x1bc] sm:$0xf]
        %v2828 = vld [vmem:[#allocation2 + $0x1c0] sm:$0xff]
        %v2829 = vld [vmem:[#allocation2 + $0x1c8] sm:$0xff]
        %v2830 = vld [vmem:[#allocation2 + $0x1d0] sm:$0xff]
        %v2831 = vld [vmem:[#allocation2 + $0x1d8] sm:$0xf]
        %v2832 = vld [vmem:[#allocation2 + $0x1dc] sm:$0xff]
        %v2833 = vld [vmem:[#allocation2 + $0x1e4] sm:$0xff]
        %v2834 = vld [vmem:[#allocation2 + $0x1ec] sm:$0xff]
        %v2835 = vld [vmem:[#allocation2 + $0x1f4] sm:$0xf]
        %v2836 = vld [vmem:[#allocation2 + $0x1f8] sm:$0xff]
        %v2837 = vld [vmem:[#allocation2 + $0x200] sm:$0xff]
        %v2838 = vld [vmem:[#allocation2 + $0x208] sm:$0xff]
        %v2839 = vld [vmem:[#allocation2 + $0x210] sm:$0xf]
        %v2840 = vld [vmem:[#allocation2 + $0x214] sm:$0xff]
        %v2841 = vld [vmem:[#allocation2 + $0x21c] sm:$0xff]
        %v2842 = vld [vmem:[#allocation2 + $0x224] sm:$0xff]
        %v2843 = vld [vmem:[#allocation2 + $0x22c] sm:$0xf]
        %v2844 = vld [vmem:[#allocation2 + $0x230] sm:$0xff]
        %v2845 = vld [vmem:[#allocation2 + $0x238] sm:$0xff]
        %v2846 = vld [vmem:[#allocation2 + $0x240] sm:$0xff]
        %v2847 = vld [vmem:[#allocation2 + $0x248] sm:$0xf]
        %v2848 = vld [vmem:[#allocation2 + $0x24c] sm:$0xff]
        %v2849 = vld [vmem:[#allocation2 + $0x254] sm:$0xff]
        %v2850 = vld [vmem:[#allocation2 + $0x25c] sm:$0xff]
        %v2851 = vld [vmem:[#allocation2 + $0x264] sm:$0xf]
        %v2852 = vld [vmem:[#allocation2 + $0x268] sm:$0xff]
        %v2853 = vld [vmem:[#allocation2 + $0x270] sm:$0xff]
        %v2854 = vld [vmem:[#allocation2 + $0x278] sm:$0xff]
        %v2855 = vld [vmem:[#allocation2 + $0x280] sm:$0xf]
        %v2856 = vld [vmem:[#allocation2 + $0x284] sm:$0xff]
        %v2857 = vld [vmem:[#allocation2 + $0x28c] sm:$0xff]
        %v2858 = vld [vmem:[#allocation2 + $0x294] sm:$0xff]
        %v2859 = vld [vmem:[#allocation2 + $0x29c] sm:$0xf]
        %v2860 = vld [vmem:[#allocation2 + $0x2a0] sm:$0xff]
        %v2861 = vld [vmem:[#allocation2 + $0x2a8] sm:$0xff]
        %v2862 = vld [vmem:[#allocation2 + $0x2b0] sm:$0xff]
        %v2863 = vld [vmem:[#allocation2 + $0x2b8] sm:$0xf]
        %v2864 = vld [vmem:[#allocation2 + $0x2bc] sm:$0xff]
        %v2865 = vld [vmem:[#allocation2 + $0x2c4] sm:$0xff]
        %v2866 = vld [vmem:[#allocation2 + $0x2cc] sm:$0xff]
        %v2867 = vld [vmem:[#allocation2 + $0x2d4] sm:$0xf]
        %v2868 = vld [vmem:[#allocation2 + $0x2d8] sm:$0xff]
        %v2869 = vld [vmem:[#allocation2 + $0x2e0] sm:$0xff]
        %v2870 = vld [vmem:[#allocation2 + $0x2e8] sm:$0xff]
        %v2871 = vld [vmem:[#allocation2 + $0x2f0] sm:$0xf]
        %v2872 = vld [vmem:[#allocation2 + $0x2f4] sm:$0xff]
        %v2873 = vld [vmem:[#allocation2 + $0x2fc] sm:$0xff]
        %v2874 = vld [vmem:[#allocation2 + $0x304] sm:$0xff]
        %v2875 = vld [vmem:[#allocation2 + $0x30c] sm:$0xf]
        %v2876 = vld [vmem:[#allocation2 + $0x310] sm:$0xff]
        %v2877 = vld [vmem:[#allocation2 + $0x318] sm:$0xff]
        %v2878 = vld [vmem:[#allocation2 + $0x320] sm:$0xff]
        %v2879 = vld [vmem:[#allocation2 + $0x328] sm:$0xf]
        %v2880 = vld [vmem:[#allocation2 + $0x32c] sm:$0xff]
        %v2881 = vld [vmem:[#allocation2 + $0x334] sm:$0xff]
        %v2882 = vld [vmem:[#allocation2 + $0x33c] sm:$0xff]
        %v2883 = vld [vmem:[#allocation2 + $0x344] sm:$0xf]
        %v2884 = vld [vmem:[#allocation2 + $0x348] sm:$0xff]
        %v2885 = vld [vmem:[#allocation2 + $0x350] sm:$0xff]
        %v2886 = vld [vmem:[#allocation2 + $0x358] sm:$0xff]
        %v2887 = vld [vmem:[#allocation2 + $0x360] sm:$0xf]
        %v2888 = vld [vmem:[#allocation2 + $0x364] sm:$0xff]
        %v2889 = vld [vmem:[#allocation2 + $0x36c] sm:$0xff]
        %v2890 = vld [vmem:[#allocation2 + $0x374] sm:$0xff]
        %v2891 = vld [vmem:[#allocation2 + $0x37c] sm:$0xf]
        %v2892 = vld [vmem:[#allocation2 + $0x380] sm:$0xff]
        %v2893 = vld [vmem:[#allocation2 + $0x388] sm:$0xff]
        %v2894 = vld [vmem:[#allocation2 + $0x390] sm:$0xff]
        %v2895 = vld [vmem:[#allocation2 + $0x398] sm:$0xf]
        %v2896 = vld [vmem:[#allocation2 + $0x39c] sm:$0xff]
        %v2897 = vld [vmem:[#allocation2 + $0x3a4] sm:$0xff]
        %v2898 = vld [vmem:[#allocation2 + $0x3ac] sm:$0xff]
        %v2899 = vld [vmem:[#allocation2 + $0x3b4] sm:$0xf]
        %v2900 = vld [vmem:[#allocation2 + $0x3b8] sm:$0xff]
        %v2901 = vld [vmem:[#allocation2 + $0x3c0] sm:$0xff]
        %v2902 = vld [vmem:[#allocation2 + $0x3c8] sm:$0xff]
        %v2903 = vld [vmem:[#allocation2 + $0x3d0] sm:$0xf]
        %v2904 = vld [vmem:[#allocation2 + $0x3d4] sm:$0xff]
        %v2905 = vld [vmem:[#allocation2 + $0x3dc] sm:$0xff]
        %v2906 = vld [vmem:[#allocation2 + $0x3e4] sm:$0xff]
        %v2907 = vld [vmem:[#allocation2 + $0x3ec] sm:$0xf]
        %v2908 = vld [vmem:[#allocation2 + $0x3f0] sm:$0xff]
        %v2909 = vld [vmem:[#allocation2 + $0x3f8] sm:$0xff]
        %v2910 = vld [vmem:[#allocation2 + $0x400] sm:$0xff]
        %v2911 = vld [vmem:[#allocation2 + $0x408] sm:$0xf]
        %v2912 = vld [vmem:[#allocation2 + $0x40c] sm:$0xff]
        %v2913 = vld [vmem:[#allocation2 + $0x414] sm:$0xff]
        %v2914 = vld [vmem:[#allocation2 + $0x41c] sm:$0xff]
        %v2915 = vld [vmem:[#allocation2 + $0x424] sm:$0xf]
        %v2916 = vld [vmem:[#allocation2 + $0x428] sm:$0xff]
        %v2917 = vld [vmem:[#allocation2 + $0x430] sm:$0xff]
        %v2918 = vld [vmem:[#allocation2 + $0x438] sm:$0xff]
        %v2919 = vld [vmem:[#allocation2 + $0x440] sm:$0xf]
        %v2920 = vld [vmem:[#allocation2 + $0x444] sm:$0xff]
        %v2921 = vld [vmem:[#allocation2 + $0x44c] sm:$0xff]
        %v2922 = vld [vmem:[#allocation2 + $0x454] sm:$0xff]
        %v2923 = vld [vmem:[#allocation2 + $0x45c] sm:$0xf]
        %v2924 = vld [vmem:[#allocation2 + $0x460] sm:$0xff]
        %v2925 = vld [vmem:[#allocation2 + $0x468] sm:$0xff]
        %v2926 = vld [vmem:[#allocation2 + $0x470] sm:$0xff]
        %v2927 = vld [vmem:[#allocation2 + $0x478] sm:$0xf]
        %v2928 = vld [vmem:[#allocation2 + $0x47c] sm:$0xff]
        %v2929 = vld [vmem:[#allocation2 + $0x484] sm:$0xff]
        %v2930 = vld [vmem:[#allocation2 + $0x48c] sm:$0xff]
        %v2931 = vld [vmem:[#allocation2 + $0x494] sm:$0xf]
        %v2932 = vld [vmem:[#allocation2 + $0x498] sm:$0xff]
        %v2933 = vld [vmem:[#allocation2 + $0x4a0] sm:$0xff]
        %v2934 = vld [vmem:[#allocation2 + $0x4a8] sm:$0xff]
        %v2935 = vld [vmem:[#allocation2 + $0x4b0] sm:$0xf]
        %v2936 = vld [vmem:[#allocation2 + $0x4b4] sm:$0xff]
        %v2937 = vld [vmem:[#allocation2 + $0x4bc] sm:$0xff]
        %v2938 = vld [vmem:[#allocation2 + $0x4c4] sm:$0xff]
        %v2939 = vld [vmem:[#allocation2 + $0x4cc] sm:$0xf]
        %v2940 = vld [vmem:[#allocation2 + $0x4d0] sm:$0xff]
        %v2941 = vld [vmem:[#allocation2 + $0x4d8] sm:$0xff]
        %v2942 = vld [vmem:[#allocation2 + $0x4e0] sm:$0xff]
        %v2943 = vld [vmem:[#allocation2 + $0x4e8] sm:$0xf]
        %v2944 = vld [vmem:[#allocation2 + $0x4ec] sm:$0xff]
        %v2945 = vld [vmem:[#allocation2 + $0x4f4] sm:$0xff]
        %v2946 = vld [vmem:[#allocation2 + $0x4fc] sm:$0xff]
        %v2947 = vld [vmem:[#allocation2 + $0x504] sm:$0xf]
        %v2948 = vld [vmem:[#allocation2 + $0x508] sm:$0xff]
        %v2949 = vld [vmem:[#allocation2 + $0x510] sm:$0xff]
        %v2950 = vld [vmem:[#allocation2 + $0x518] sm:$0xff]
        %v2951 = vld [vmem:[#allocation2 + $0x520] sm:$0xf]
        %v2952 = vld [vmem:[#allocation2 + $0x524] sm:$0xff]
        %v2953 = vld [vmem:[#allocation2 + $0x52c] sm:$0xff]
        %v2954 = vld [vmem:[#allocation2 + $0x534] sm:$0xff]
        %v2955 = vld [vmem:[#allocation2 + $0x53c] sm:$0xf]
        %v2956 = vld [vmem:[#allocation2 + $0x540] sm:$0xff]
        %v2957 = vld [vmem:[#allocation2 + $0x548] sm:$0xff]
        %v2958 = vld [vmem:[#allocation2 + $0x550] sm:$0xff]
        %v2959 = vld [vmem:[#allocation2 + $0x558] sm:$0xf]
        %v2960 = vld [vmem:[#allocation2 + $0x55c] sm:$0xff]
        %v2961 = vld [vmem:[#allocation2 + $0x564] sm:$0xff]
        %v2962 = vld [vmem:[#allocation2 + $0x56c] sm:$0xff]
        %v2963 = vld [vmem:[#allocation2 + $0x574] sm:$0xf]
        %v2964 = vld [vmem:[#allocation2 + $0x578] sm:$0xff]
        %v2965 = vld [vmem:[#allocation2 + $0x580] sm:$0xff]
        %v2966 = vld [vmem:[#allocation2 + $0x588] sm:$0xff]
        %v2967 = vld [vmem:[#allocation2 + $0x590] sm:$0xf]
        %v2968 = vld [vmem:[#allocation2 + $0x594] sm:$0xff]
        %v2969 = vld [vmem:[#allocation2 + $0x59c] sm:$0xff]
        %v2970 = vld [vmem:[#allocation2 + $0x5a4] sm:$0xff]
        %v2971 = vld [vmem:[#allocation2 + $0x5ac] sm:$0xf]
        %v2972 = vld [vmem:[#allocation2 + $0x5b0] sm:$0xff]
        %v2973 = vld [vmem:[#allocation2 + $0x5b8] sm:$0xff]
        %v2974 = vld [vmem:[#allocation2 + $0x5c0] sm:$0xff]
        %v2975 = vld [vmem:[#allocation2 + $0x5c8] sm:$0xf]
        %v2976 = vld [vmem:[#allocation2 + $0x5cc] sm:$0xff]
        %v2977 = vld [vmem:[#allocation2 + $0x5d4] sm:$0xff]
        %v2978 = vld [vmem:[#allocation2 + $0x5dc] sm:$0xff]
        %v2979 = vld [vmem:[#allocation2 + $0x5e4] sm:$0xf]
        %v2980 = vld [vmem:[#allocation2 + $0x5e8] sm:$0xff]
        %v2981 = vld [vmem:[#allocation2 + $0x5f0] sm:$0xff]
        %v2982 = vld [vmem:[#allocation2 + $0x5f8] sm:$0xff]
        %v2983 = vld [vmem:[#allocation2 + $0x600] sm:$0xf]
        %v2984 = vld [vmem:[#allocation2 + $0x604] sm:$0xff]
        %v2985 = vld [vmem:[#allocation2 + $0x60c] sm:$0xff]
        %v2986 = vld [vmem:[#allocation2 + $0x614] sm:$0xff]
        %v2987 = vld [vmem:[#allocation2 + $0x61c] sm:$0xf]
        %v2988 = vld [vmem:[#allocation2 + $0x620] sm:$0xff]
        %v2989 = vld [vmem:[#allocation2 + $0x628] sm:$0xff]
        %v2990 = vld [vmem:[#allocation2 + $0x630] sm:$0xff]
        %v2991 = vld [vmem:[#allocation2 + $0x638] sm:$0xf]
        %v2992 = vld [vmem:[#allocation2 + $0x63c] sm:$0xff]
        %v2993 = vld [vmem:[#allocation2 + $0x644] sm:$0xff]
        %v2994 = vld [vmem:[#allocation2 + $0x64c] sm:$0xff]
        %v2995 = vld [vmem:[#allocation2 + $0x654] sm:$0xf]
        %v2996 = vld [vmem:[#allocation2 + $0x658] sm:$0xff]
        %v2997 = vld [vmem:[#allocation2 + $0x660] sm:$0xff]
        %v2998 = vld [vmem:[#allocation2 + $0x668] sm:$0xff]
        %v2999 = vld [vmem:[#allocation2 + $0x670] sm:$0xf]
        %v3000 = vld [vmem:[#allocation2 + $0x674] sm:$0xff]
        %v3001 = vld [vmem:[#allocation2 + $0x67c] sm:$0xff]
        %v3002 = vld [vmem:[#allocation2 + $0x684] sm:$0xff]
        %v3003 = vld [vmem:[#allocation2 + $0x68c] sm:$0xf]
        %v3004 = vld [vmem:[#allocation2 + $0x690] sm:$0xff]
        %v3005 = vld [vmem:[#allocation2 + $0x698] sm:$0xff]
        %v3006 = vld [vmem:[#allocation2 + $0x6a0] sm:$0xff]
        %v3007 = vld [vmem:[#allocation2 + $0x6a8] sm:$0xf]
        %v3008 = vld [vmem:[#allocation2 + $0x6ac] sm:$0xff]
        %v3009 = vld [vmem:[#allocation2 + $0x6b4] sm:$0xff]
        %v3010 = vld [vmem:[#allocation2 + $0x6bc] sm:$0xff]
        %v3011 = vld [vmem:[#allocation2 + $0x6c4] sm:$0xf]
        %v3012 = vld [vmem:[#allocation2 + $0x6c8] sm:$0xff]
        %v3013 = vld [vmem:[#allocation2 + $0x6d0] sm:$0xff]
        %v3014 = vld [vmem:[#allocation2 + $0x6d8] sm:$0xff]
        %v3015 = vld [vmem:[#allocation2 + $0x6e0] sm:$0xf]
        %v3016 = vld [vmem:[#allocation2 + $0x6e4] sm:$0xff]
        %v3017 = vld [vmem:[#allocation2 + $0x6ec] sm:$0xff]
        %v3018 = vld [vmem:[#allocation2 + $0x6f4] sm:$0xff]
        %v3019 = vld [vmem:[#allocation2 + $0x6fc] sm:$0xf]
        %v3020 = vld [vmem:[%s9] sm:$0xff]
        %v3022 = vperm.slane %v3020, 0
        %v3023 = vperm.slane %v3020, 1
        %v3024 = vperm.slane %v3020, 2
        %v3025 = vperm.slane %v3020, 3
        %v3026 = vperm.slane %v3020, 4
        %v3027 = vperm.slane %v3020, 5
        %v3028 = vperm.slane %v3020, 6
        %v3292 = vunpack.c.l.b16 %v2764
        %v3293 = vunpack.c.h.b16 %v2764
        %v3294 = vunpack.c.l.b16 %v2765
        %v3295 = vunpack.c.h.b16 %v2765
        %v3296 = vunpack.c.l.b16 %v2766
        %v3297 = vunpack.c.h.b16 %v2766
        %v3298 = vunpack.c.l.b16 %v2767
        %v3299 = vunpack.c.l.b16 %v2768
        %v3300 = vunpack.c.h.b16 %v2768
        %v3301 = vunpack.c.l.b16 %v2769
        %v3302 = vunpack.c.h.b16 %v2769
        %v3303 = vunpack.c.l.b16 %v2770
        %v3304 = vunpack.c.h.b16 %v2770
        %v3305 = vunpack.c.l.b16 %v2771
        %v3306 = vunpack.c.l.b16 %v2772
        %v3307 = vunpack.c.h.b16 %v2772
        %v3308 = vunpack.c.l.b16 %v2773
        %v3309 = vunpack.c.h.b16 %v2773
        %v3310 = vunpack.c.l.b16 %v2774
        %v3311 = vunpack.c.h.b16 %v2774
        %v3312 = vunpack.c.l.b16 %v2775
        %v3313 = vunpack.c.l.b16 %v2776
        %v3314 = vunpack.c.h.b16 %v2776
        %v3315 = vunpack.c.l.b16 %v2777
        %v3316 = vunpack.c.h.b16 %v2777
        %v3317 = vunpack.c.l.b16 %v2778
        %v3318 = vunpack.c.h.b16 %v2778
        %v3319 = vunpack.c.l.b16 %v2779
        %v3320 = vunpack.c.l.b16 %v2780
        %v3321 = vunpack.c.h.b16 %v2780
        %v3322 = vunpack.c.l.b16 %v2781
        %v3323 = vunpack.c.h.b16 %v2781
        %v3324 = vunpack.c.l.b16 %v2782
        %v3325 = vunpack.c.h.b16 %v2782
        %v3326 = vunpack.c.l.b16 %v2783
        %v3327 = vunpack.c.l.b16 %v2784
        %v3328 = vunpack.c.h.b16 %v2784
        %v3329 = vunpack.c.l.b16 %v2785
        %v3330 = vunpack.c.h.b16 %v2785
        %v3331 = vunpack.c.l.b16 %v2786
        %v3332 = vunpack.c.h.b16 %v2786
        %v3333 = vunpack.c.l.b16 %v2787
        %v3334 = vunpack.c.l.b16 %v2788
        %v3335 = vunpack.c.h.b16 %v2788
        %v3336 = vunpack.c.l.b16 %v2789
        %v3337 = vunpack.c.h.b16 %v2789
        %v3338 = vunpack.c.l.b16 %v2790
        %v3339 = vunpack.c.h.b16 %v2790
        %v3340 = vunpack.c.l.b16 %v2791
        %v3341 = vunpack.c.l.b16 %v2792
        %v3342 = vunpack.c.h.b16 %v2792
        %v3343 = vunpack.c.l.b16 %v2793
        %v3344 = vunpack.c.h.b16 %v2793
        %v3345 = vunpack.c.l.b16 %v2794
        %v3346 = vunpack.c.h.b16 %v2794
        %v3347 = vunpack.c.l.b16 %v2795
        %v3348 = vunpack.c.l.b16 %v2796
        %v3349 = vunpack.c.h.b16 %v2796
        %v3350 = vunpack.c.l.b16 %v2797
        %v3351 = vunpack.c.h.b16 %v2797
        %v3352 = vunpack.c.l.b16 %v2798
        %v3353 = vunpack.c.h.b16 %v2798
        %v3354 = vunpack.c.l.b16 %v2799
        %v3355 = vunpack.c.l.b16 %v2800
        %v3356 = vunpack.c.h.b16 %v2800
        %v3357 = vunpack.c.l.b16 %v2801
        %v3358 = vunpack.c.h.b16 %v2801
        %v3359 = vunpack.c.l.b16 %v2802
        %v3360 = vunpack.c.h.b16 %v2802
        %v3361 = vunpack.c.l.b16 %v2803
        %v3362 = vunpack.c.l.b16 %v2804
        %v3363 = vunpack.c.h.b16 %v2804
        %v3364 = vunpack.c.l.b16 %v2805
        %v3365 = vunpack.c.h.b16 %v2805
        %v3366 = vunpack.c.l.b16 %v2806
        %v3367 = vunpack.c.h.b16 %v2806
        %v3368 = vunpack.c.l.b16 %v2807
        %v3369 = vunpack.c.l.b16 %v2808
        %v3370 = vunpack.c.h.b16 %v2808
        %v3371 = vunpack.c.l.b16 %v2809
        %v3372 = vunpack.c.h.b16 %v2809
        %v3373 = vunpack.c.l.b16 %v2810
        %v3374 = vunpack.c.h.b16 %v2810
        %v3375 = vunpack.c.l.b16 %v2811
        %v3376 = vunpack.c.l.b16 %v2812
        %v3377 = vunpack.c.h.b16 %v2812
        %v3378 = vunpack.c.l.b16 %v2813
        %v3379 = vunpack.c.h.b16 %v2813
        %v3380 = vunpack.c.l.b16 %v2814
        %v3381 = vunpack.c.h.b16 %v2814
        %v3382 = vunpack.c.l.b16 %v2815
        %v3383 = vunpack.c.l.b16 %v2816
        %v3384 = vunpack.c.h.b16 %v2816
        %v3385 = vunpack.c.l.b16 %v2817
        %v3386 = vunpack.c.h.b16 %v2817
        %v3387 = vunpack.c.l.b16 %v2818
        %v3388 = vunpack.c.h.b16 %v2818
        %v3389 = vunpack.c.l.b16 %v2819
        %v3390 = vunpack.c.l.b16 %v2820
        %v3391 = vunpack.c.h.b16 %v2820
        %v3392 = vunpack.c.l.b16 %v2821
        %v3393 = vunpack.c.h.b16 %v2821
        %v3394 = vunpack.c.l.b16 %v2822
        %v3395 = vunpack.c.h.b16 %v2822
        %v3396 = vunpack.c.l.b16 %v2823
        %v3397 = vunpack.c.l.b16 %v2824
        %v3398 = vunpack.c.h.b16 %v2824
        %v3399 = vunpack.c.l.b16 %v2825
        %v3400 = vunpack.c.h.b16 %v2825
        %v3401 = vunpack.c.l.b16 %v2826
        %v3402 = vunpack.c.h.b16 %v2826
        %v3403 = vunpack.c.l.b16 %v2827
        %v3404 = vunpack.c.l.b16 %v2828
        %v3405 = vunpack.c.h.b16 %v2828
        %v3406 = vunpack.c.l.b16 %v2829
        %v3407 = vunpack.c.h.b16 %v2829
        %v3408 = vunpack.c.l.b16 %v2830
        %v3409 = vunpack.c.h.b16 %v2830
        %v3410 = vunpack.c.l.b16 %v2831
        %v3411 = vunpack.c.l.b16 %v2832
        %v3412 = vunpack.c.h.b16 %v2832
        %v3413 = vunpack.c.l.b16 %v2833
        %v3414 = vunpack.c.h.b16 %v2833
        %v3415 = vunpack.c.l.b16 %v2834
        %v3416 = vunpack.c.h.b16 %v2834
        %v3417 = vunpack.c.l.b16 %v2835
        %v3418 = vunpack.c.l.b16 %v2836
        %v3419 = vunpack.c.h.b16 %v2836
        %v3420 = vunpack.c.l.b16 %v2837
        %v3421 = vunpack.c.h.b16 %v2837
        %v3422 = vunpack.c.l.b16 %v2838
        %v3423 = vunpack.c.h.b16 %v2838
        %v3424 = vunpack.c.l.b16 %v2839
        %v3425 = vunpack.c.l.b16 %v2840
        %v3426 = vunpack.c.h.b16 %v2840
        %v3427 = vunpack.c.l.b16 %v2841
        %v3428 = vunpack.c.h.b16 %v2841
        %v3429 = vunpack.c.l.b16 %v2842
        %v3430 = vunpack.c.h.b16 %v2842
        %v3431 = vunpack.c.l.b16 %v2843
        %v3432 = vunpack.c.l.b16 %v2844
        %v3433 = vunpack.c.h.b16 %v2844
        %v3434 = vunpack.c.l.b16 %v2845
        %v3435 = vunpack.c.h.b16 %v2845
        %v3436 = vunpack.c.l.b16 %v2846
        %v3437 = vunpack.c.h.b16 %v2846
        %v3438 = vunpack.c.l.b16 %v2847
        %v3439 = vunpack.c.l.b16 %v2848
        %v3440 = vunpack.c.h.b16 %v2848
        %v3441 = vunpack.c.l.b16 %v2849
        %v3442 = vunpack.c.h.b16 %v2849
        %v3443 = vunpack.c.l.b16 %v2850
        %v3444 = vunpack.c.h.b16 %v2850
        %v3445 = vunpack.c.l.b16 %v2851
        %v3446 = vunpack.c.l.b16 %v2852
        %v3447 = vunpack.c.h.b16 %v2852
        %v3448 = vunpack.c.l.b16 %v2853
        %v3449 = vunpack.c.h.b16 %v2853
        %v3450 = vunpack.c.l.b16 %v2854
        %v3451 = vunpack.c.h.b16 %v2854
        %v3452 = vunpack.c.l.b16 %v2855
        %v3453 = vunpack.c.l.b16 %v2856
        %v3454 = vunpack.c.h.b16 %v2856
        %v3455 = vunpack.c.l.b16 %v2857
        %v3456 = vunpack.c.h.b16 %v2857
        %v3457 = vunpack.c.l.b16 %v2858
        %v3458 = vunpack.c.h.b16 %v2858
        %v3459 = vunpack.c.l.b16 %v2859
        %v3460 = vunpack.c.l.b16 %v2860
        %v3461 = vunpack.c.h.b16 %v2860
        %v3462 = vunpack.c.l.b16 %v2861
        %v3463 = vunpack.c.h.b16 %v2861
        %v3464 = vunpack.c.l.b16 %v2862
        %v3465 = vunpack.c.h.b16 %v2862
        %v3466 = vunpack.c.l.b16 %v2863
        %v3467 = vunpack.c.l.b16 %v2864
        %v3468 = vunpack.c.h.b16 %v2864
        %v3469 = vunpack.c.l.b16 %v2865
        %v3470 = vunpack.c.h.b16 %v2865
        %v3471 = vunpack.c.l.b16 %v2866
        %v3472 = vunpack.c.h.b16 %v2866
        %v3473 = vunpack.c.l.b16 %v2867
        %v3474 = vunpack.c.l.b16 %v2868
        %v3475 = vunpack.c.h.b16 %v2868
        %v3476 = vunpack.c.l.b16 %v2869
        %v3477 = vunpack.c.h.b16 %v2869
        %v3478 = vunpack.c.l.b16 %v2870
        %v3479 = vunpack.c.h.b16 %v2870
        %v3480 = vunpack.c.l.b16 %v2871
        %v3481 = vunpack.c.l.b16 %v2872
        %v3482 = vunpack.c.h.b16 %v2872
        %v3483 = vunpack.c.l.b16 %v2873
        %v3484 = vunpack.c.h.b16 %v2873
        %v3485 = vunpack.c.l.b16 %v2874
        %v3486 = vunpack.c.h.b16 %v2874
        %v3487 = vunpack.c.l.b16 %v2875
        %v3488 = vunpack.c.l.b16 %v2876
        %v3489 = vunpack.c.h.b16 %v2876
        %v3490 = vunpack.c.l.b16 %v2877
        %v3491 = vunpack.c.h.b16 %v2877
        %v3492 = vunpack.c.l.b16 %v2878
        %v3493 = vunpack.c.h.b16 %v2878
        %v3494 = vunpack.c.l.b16 %v2879
        %v3495 = vunpack.c.l.b16 %v2880
        %v3496 = vunpack.c.h.b16 %v2880
        %v3497 = vunpack.c.l.b16 %v2881
        %v3498 = vunpack.c.h.b16 %v2881
        %v3499 = vunpack.c.l.b16 %v2882
        %v3500 = vunpack.c.h.b16 %v2882
        %v3501 = vunpack.c.l.b16 %v2883
        %v3502 = vunpack.c.l.b16 %v2884
        %v3503 = vunpack.c.h.b16 %v2884
        %v3504 = vunpack.c.l.b16 %v2885
        %v3505 = vunpack.c.h.b16 %v2885
        %v3506 = vunpack.c.l.b16 %v2886
        %v3507 = vunpack.c.h.b16 %v2886
        %v3508 = vunpack.c.l.b16 %v2887
        %v3509 = vunpack.c.l.b16 %v2888
        %v3510 = vunpack.c.h.b16 %v2888
        %v3511 = vunpack.c.l.b16 %v2889
        %v3512 = vunpack.c.h.b16 %v2889
        %v3513 = vunpack.c.l.b16 %v2890
        %v3514 = vunpack.c.h.b16 %v2890
        %v3515 = vunpack.c.l.b16 %v2891
        %v3516 = vunpack.c.l.b16 %v2892
        %v3517 = vunpack.c.h.b16 %v2892
        %v3518 = vunpack.c.l.b16 %v2893
        %v3519 = vunpack.c.h.b16 %v2893
        %v3520 = vunpack.c.l.b16 %v2894
        %v3521 = vunpack.c.h.b16 %v2894
        %v3522 = vunpack.c.l.b16 %v2895
        %v3523 = vunpack.c.l.b16 %v2896
        %v3524 = vunpack.c.h.b16 %v2896
        %v3525 = vunpack.c.l.b16 %v2897
        %v3526 = vunpack.c.h.b16 %v2897
        %v3527 = vunpack.c.l.b16 %v2898
        %v3528 = vunpack.c.h.b16 %v2898
        %v3529 = vunpack.c.l.b16 %v2899
        %v3530 = vunpack.c.l.b16 %v2900
        %v3531 = vunpack.c.h.b16 %v2900
        %v3532 = vunpack.c.l.b16 %v2901
        %v3533 = vunpack.c.h.b16 %v2901
        %v3534 = vunpack.c.l.b16 %v2902
        %v3535 = vunpack.c.h.b16 %v2902
        %v3536 = vunpack.c.l.b16 %v2903
        %v3537 = vunpack.c.l.b16 %v2904
        %v3538 = vunpack.c.h.b16 %v2904
        %v3539 = vunpack.c.l.b16 %v2905
        %v3540 = vunpack.c.h.b16 %v2905
        %v3541 = vunpack.c.l.b16 %v2906
        %v3542 = vunpack.c.h.b16 %v2906
        %v3543 = vunpack.c.l.b16 %v2907
        %v3544 = vunpack.c.l.b16 %v2908
        %v3545 = vunpack.c.h.b16 %v2908
        %v3546 = vunpack.c.l.b16 %v2909
        %v3547 = vunpack.c.h.b16 %v2909
        %v3548 = vunpack.c.l.b16 %v2910
        %v3549 = vunpack.c.h.b16 %v2910
        %v3550 = vunpack.c.l.b16 %v2911
        %v3551 = vunpack.c.l.b16 %v2912
        %v3552 = vunpack.c.h.b16 %v2912
        %v3553 = vunpack.c.l.b16 %v2913
        %v3554 = vunpack.c.h.b16 %v2913
        %v3555 = vunpack.c.l.b16 %v2914
        %v3556 = vunpack.c.h.b16 %v2914
        %v3557 = vunpack.c.l.b16 %v2915
        %v3558 = vunpack.c.l.b16 %v2916
        %v3559 = vunpack.c.h.b16 %v2916
        %v3560 = vunpack.c.l.b16 %v2917
        %v3561 = vunpack.c.h.b16 %v2917
        %v3562 = vunpack.c.l.b16 %v2918
        %v3563 = vunpack.c.h.b16 %v2918
        %v3564 = vunpack.c.l.b16 %v2919
        %v3565 = vunpack.c.l.b16 %v2920
        %v3566 = vunpack.c.h.b16 %v2920
        %v3567 = vunpack.c.l.b16 %v2921
        %v3568 = vunpack.c.h.b16 %v2921
        %v3569 = vunpack.c.l.b16 %v2922
        %v3570 = vunpack.c.h.b16 %v2922
        %v3571 = vunpack.c.l.b16 %v2923
        %v3572 = vunpack.c.l.b16 %v2924
        %v3573 = vunpack.c.h.b16 %v2924
        %v3574 = vunpack.c.l.b16 %v2925
        %v3575 = vunpack.c.h.b16 %v2925
        %v3576 = vunpack.c.l.b16 %v2926
        %v3577 = vunpack.c.h.b16 %v2926
        %v3578 = vunpack.c.l.b16 %v2927
        %v3579 = vunpack.c.l.b16 %v2928
        %v3580 = vunpack.c.h.b16 %v2928
        %v3581 = vunpack.c.l.b16 %v2929
        %v3582 = vunpack.c.h.b16 %v2929
        %v3583 = vunpack.c.l.b16 %v2930
        %v3584 = vunpack.c.h.b16 %v2930
        %v3585 = vunpack.c.l.b16 %v2931
        %v3586 = vunpack.c.l.b16 %v2932
        %v3587 = vunpack.c.h.b16 %v2932
        %v3588 = vunpack.c.l.b16 %v2933
        %v3589 = vunpack.c.h.b16 %v2933
        %v3590 = vunpack.c.l.b16 %v2934
        %v3591 = vunpack.c.h.b16 %v2934
        %v3592 = vunpack.c.l.b16 %v2935
        %v3593 = vunpack.c.l.b16 %v2936
        %v3594 = vunpack.c.h.b16 %v2936
        %v3595 = vunpack.c.l.b16 %v2937
        %v3596 = vunpack.c.h.b16 %v2937
        %v3597 = vunpack.c.l.b16 %v2938
        %v3598 = vunpack.c.h.b16 %v2938
        %v3599 = vunpack.c.l.b16 %v2939
        %v3600 = vunpack.c.l.b16 %v2940
        %v3601 = vunpack.c.h.b16 %v2940
        %v3602 = vunpack.c.l.b16 %v2941
        %v3603 = vunpack.c.h.b16 %v2941
        %v3604 = vunpack.c.l.b16 %v2942
        %v3605 = vunpack.c.h.b16 %v2942
        %v3606 = vunpack.c.l.b16 %v2943
        %v3607 = vunpack.c.l.b16 %v2944
        %v3608 = vunpack.c.h.b16 %v2944
        %v3609 = vunpack.c.l.b16 %v2945
        %v3610 = vunpack.c.h.b16 %v2945
        %v3611 = vunpack.c.l.b16 %v2946
        %v3612 = vunpack.c.h.b16 %v2946
        %v3613 = vunpack.c.l.b16 %v2947
        %v3614 = vunpack.c.l.b16 %v2948
        %v3615 = vunpack.c.h.b16 %v2948
        %v3616 = vunpack.c.l.b16 %v2949
        %v3617 = vunpack.c.h.b16 %v2949
        %v3618 = vunpack.c.l.b16 %v2950
        %v3619 = vunpack.c.h.b16 %v2950
        %v3620 = vunpack.c.l.b16 %v2951
        %v3621 = vunpack.c.l.b16 %v2952
        %v3622 = vunpack.c.h.b16 %v2952
        %v3623 = vunpack.c.l.b16 %v2953
        %v3624 = vunpack.c.h.b16 %v2953
        %v3625 = vunpack.c.l.b16 %v2954
        %v3626 = vunpack.c.h.b16 %v2954
        %v3627 = vunpack.c.l.b16 %v2955
        %v3628 = vunpack.c.l.b16 %v2956
        %v3629 = vunpack.c.h.b16 %v2956
        %v3630 = vunpack.c.l.b16 %v2957
        %v3631 = vunpack.c.h.b16 %v2957
        %v3632 = vunpack.c.l.b16 %v2958
        %v3633 = vunpack.c.h.b16 %v2958
        %v3634 = vunpack.c.l.b16 %v2959
        %v3635 = vunpack.c.l.b16 %v2960
        %v3636 = vunpack.c.h.b16 %v2960
        %v3637 = vunpack.c.l.b16 %v2961
        %v3638 = vunpack.c.h.b16 %v2961
        %v3639 = vunpack.c.l.b16 %v2962
        %v3640 = vunpack.c.h.b16 %v2962
        %v3641 = vunpack.c.l.b16 %v2963
        %v3642 = vunpack.c.l.b16 %v2964
        %v3643 = vunpack.c.h.b16 %v2964
        %v3644 = vunpack.c.l.b16 %v2965
        %v3645 = vunpack.c.h.b16 %v2965
        %v3646 = vunpack.c.l.b16 %v2966
        %v3647 = vunpack.c.h.b16 %v2966
        %v3648 = vunpack.c.l.b16 %v2967
        %v3649 = vunpack.c.l.b16 %v2968
        %v3650 = vunpack.c.h.b16 %v2968
        %v3651 = vunpack.c.l.b16 %v2969
        %v3652 = vunpack.c.h.b16 %v2969
        %v3653 = vunpack.c.l.b16 %v2970
        %v3654 = vunpack.c.h.b16 %v2970
        %v3655 = vunpack.c.l.b16 %v2971
        %v3656 = vunpack.c.l.b16 %v2972
        %v3657 = vunpack.c.h.b16 %v2972
        %v3658 = vunpack.c.l.b16 %v2973
        %v3659 = vunpack.c.h.b16 %v2973
        %v3660 = vunpack.c.l.b16 %v2974
        %v3661 = vunpack.c.h.b16 %v2974
        %v3662 = vunpack.c.l.b16 %v2975
        %v3663 = vunpack.c.l.b16 %v2976
        %v3664 = vunpack.c.h.b16 %v2976
        %v3665 = vunpack.c.l.b16 %v2977
        %v3666 = vunpack.c.h.b16 %v2977
        %v3667 = vunpack.c.l.b16 %v2978
        %v3668 = vunpack.c.h.b16 %v2978
        %v3669 = vunpack.c.l.b16 %v2979
        %v3670 = vunpack.c.l.b16 %v2980
        %v3671 = vunpack.c.h.b16 %v2980
        %v3672 = vunpack.c.l.b16 %v2981
        %v3673 = vunpack.c.h.b16 %v2981
        %v3674 = vunpack.c.l.b16 %v2982
        %v3675 = vunpack.c.h.b16 %v2982
        %v3676 = vunpack.c.l.b16 %v2983
        %v3677 = vunpack.c.l.b16 %v2984
        %v3678 = vunpack.c.h.b16 %v2984
        %v3679 = vunpack.c.l.b16 %v2985
        %v3680 = vunpack.c.h.b16 %v2985
        %v3681 = vunpack.c.l.b16 %v2986
        %v3682 = vunpack.c.h.b16 %v2986
        %v3683 = vunpack.c.l.b16 %v2987
        %v3684 = vunpack.c.l.b16 %v2988
        %v3685 = vunpack.c.h.b16 %v2988
        %v3686 = vunpack.c.l.b16 %v2989
        %v3687 = vunpack.c.h.b16 %v2989
        %v3688 = vunpack.c.l.b16 %v2990
        %v3689 = vunpack.c.h.b16 %v2990
        %v3690 = vunpack.c.l.b16 %v2991
        %v3691 = vunpack.c.l.b16 %v2992
        %v3692 = vunpack.c.h.b16 %v2992
        %v3693 = vunpack.c.l.b16 %v2993
        %v3694 = vunpack.c.h.b16 %v2993
        %v3695 = vunpack.c.l.b16 %v2994
        %v3696 = vunpack.c.h.b16 %v2994
        %v3697 = vunpack.c.l.b16 %v2995
        %v3698 = vunpack.c.l.b16 %v2996
        %v3699 = vunpack.c.h.b16 %v2996
        %v3700 = vunpack.c.l.b16 %v2997
        %v3701 = vunpack.c.h.b16 %v2997
        %v3702 = vunpack.c.l.b16 %v2998
        %v3703 = vunpack.c.h.b16 %v2998
        %v3704 = vunpack.c.l.b16 %v2999
        %v3705 = vunpack.c.l.b16 %v3000
        %v3706 = vunpack.c.h.b16 %v3000
        %v3707 = vunpack.c.l.b16 %v3001
        %v3708 = vunpack.c.h.b16 %v3001
        %v3709 = vunpack.c.l.b16 %v3002
        %v3710 = vunpack.c.h.b16 %v3002
        %v3711 = vunpack.c.l.b16 %v3003
        %v3712 = vunpack.c.l.b16 %v3004
        %v3713 = vunpack.c.h.b16 %v3004
        %v3714 = vunpack.c.l.b16 %v3005
        %v3715 = vunpack.c.h.b16 %v3005
        %v3716 = vunpack.c.l.b16 %v3006
        %v3717 = vunpack.c.h.b16 %v3006
        %v3718 = vunpack.c.l.b16 %v3007
        %v3719 = vunpack.c.l.b16 %v3008
        %v3720 = vunpack.c.h.b16 %v3008
        %v3721 = vunpack.c.l.b16 %v3009
        %v3722 = vunpack.c.h.b16 %v3009
        %v3723 = vunpack.c.l.b16 %v3010
        %v3724 = vunpack.c.h.b16 %v3010
        %v3725 = vunpack.c.l.b16 %v3011
        %v3726 = vunpack.c.l.b16 %v3012
        %v3727 = vunpack.c.h.b16 %v3012
        %v3728 = vunpack.c.l.b16 %v3013
        %v3729 = vunpack.c.h.b16 %v3013
        %v3730 = vunpack.c.l.b16 %v3014
        %v3731 = vunpack.c.h.b16 %v3014
        %v3732 = vunpack.c.l.b16 %v3015
        %v3733 = vunpack.c.l.b16 %v3016
        %v3734 = vunpack.c.h.b16 %v3016
        %v3735 = vunpack.c.l.b16 %v3017
        %v3736 = vunpack.c.h.b16 %v3017
        %v3737 = vunpack.c.l.b16 %v3018
        %v3738 = vunpack.c.h.b16 %v3018
        %v3739 = vunpack.c.l.b16 %v3019
        %v3740 = vpack.c.b16 %v3299, %v3292
        %v3741 = vpack.c.b16 %v3300, %v3293
        %v3742 = vpack.c.b16 %v3301, %v3294
        %v3743 = vpack.c.b16 %v3302, %v3295
        %v3744 = vpack.c.b16 %v3303, %v3296
        %v3745 = vpack.c.b16 %v3304, %v3297
        %v3746 = vpack.c.b16 %v3305, %v3298
        %v3747 = vpack.c.b16 %v3313, %v3306
        %v3748 = vpack.c.b16 %v3314, %v3307
        %v3749 = vpack.c.b16 %v3315, %v3308
        %v3750 = vpack.c.b16 %v3316, %v3309
        %v3751 = vpack.c.b16 %v3317, %v3310
        %v3752 = vpack.c.b16 %v3318, %v3311
        %v3753 = vpack.c.b16 %v3319, %v3312
        %v3754 = vpack.c.b16 %v3327, %v3320
        %v3755 = vpack.c.b16 %v3328, %v3321
        %v3756 = vpack.c.b16 %v3329, %v3322
        %v3757 = vpack.c.b16 %v3330, %v3323
        %v3758 = vpack.c.b16 %v3331, %v3324
        %v3759 = vpack.c.b16 %v3332, %v3325
        %v3760 = vpack.c.b16 %v3333, %v3326
        %v3761 = vpack.c.b16 %v3341, %v3334
        %v3762 = vpack.c.b16 %v3342, %v3335
        %v3763 = vpack.c.b16 %v3343, %v3336
        %v3764 = vpack.c.b16 %v3344, %v3337
        %v3765 = vpack.c.b16 %v3345, %v3338
        %v3766 = vpack.c.b16 %v3346, %v3339
        %v3767 = vpack.c.b16 %v3347, %v3340
        %v3768 = vpack.c.b16 %v3355, %v3348
        %v3769 = vpack.c.b16 %v3356, %v3349
        %v3770 = vpack.c.b16 %v3357, %v3350
        %v3771 = vpack.c.b16 %v3358, %v3351
        %v3772 = vpack.c.b16 %v3359, %v3352
        %v3773 = vpack.c.b16 %v3360, %v3353
        %v3774 = vpack.c.b16 %v3361, %v3354
        %v3775 = vpack.c.b16 %v3369, %v3362
        %v3776 = vpack.c.b16 %v3370, %v3363
        %v3777 = vpack.c.b16 %v3371, %v3364
        %v3778 = vpack.c.b16 %v3372, %v3365
        %v3779 = vpack.c.b16 %v3373, %v3366
        %v3780 = vpack.c.b16 %v3374, %v3367
        %v3781 = vpack.c.b16 %v3375, %v3368
        %v3782 = vpack.c.b16 %v3383, %v3376
        %v3783 = vpack.c.b16 %v3384, %v3377
        %v3784 = vpack.c.b16 %v3385, %v3378
        %v3785 = vpack.c.b16 %v3386, %v3379
        %v3786 = vpack.c.b16 %v3387, %v3380
        %v3787 = vpack.c.b16 %v3388, %v3381
        %v3788 = vpack.c.b16 %v3389, %v3382
        %v3789 = vpack.c.b16 %v3397, %v3390
        %v3790 = vpack.c.b16 %v3398, %v3391
        %v3791 = vpack.c.b16 %v3399, %v3392
        %v3792 = vpack.c.b16 %v3400, %v3393
        %v3793 = vpack.c.b16 %v3401, %v3394
        %v3794 = vpack.c.b16 %v3402, %v3395
        %v3795 = vpack.c.b16 %v3403, %v3396
        %v3796 = vpack.c.b16 %v3411, %v3404
        %v3797 = vpack.c.b16 %v3412, %v3405
        %v3798 = vpack.c.b16 %v3413, %v3406
        %v3799 = vpack.c.b16 %v3414, %v3407
        %v3800 = vpack.c.b16 %v3415, %v3408
        %v3801 = vpack.c.b16 %v3416, %v3409
        %v3802 = vpack.c.b16 %v3417, %v3410
        %v3803 = vpack.c.b16 %v3425, %v3418
        %v3804 = vpack.c.b16 %v3426, %v3419
        %v3805 = vpack.c.b16 %v3427, %v3420
        %v3806 = vpack.c.b16 %v3428, %v3421
        %v3807 = vpack.c.b16 %v3429, %v3422
        %v3808 = vpack.c.b16 %v3430, %v3423
        %v3809 = vpack.c.b16 %v3431, %v3424
        %v3810 = vpack.c.b16 %v3439, %v3432
        %v3811 = vpack.c.b16 %v3440, %v3433
        %v3812 = vpack.c.b16 %v3441, %v3434
        %v3813 = vpack.c.b16 %v3442, %v3435
        %v3814 = vpack.c.b16 %v3443, %v3436
        %v3815 = vpack.c.b16 %v3444, %v3437
        %v3816 = vpack.c.b16 %v3445, %v3438
        %v3817 = vpack.c.b16 %v3453, %v3446
        %v3818 = vpack.c.b16 %v3454, %v3447
        %v3819 = vpack.c.b16 %v3455, %v3448
        %v3820 = vpack.c.b16 %v3456, %v3449
        %v3821 = vpack.c.b16 %v3457, %v3450
        %v3822 = vpack.c.b16 %v3458, %v3451
        %v3823 = vpack.c.b16 %v3459, %v3452
        %v3824 = vpack.c.b16 %v3467, %v3460
        %v3825 = vpack.c.b16 %v3468, %v3461
        %v3826 = vpack.c.b16 %v3469, %v3462
        %v3827 = vpack.c.b16 %v3470, %v3463
        %v3828 = vpack.c.b16 %v3471, %v3464
        %v3829 = vpack.c.b16 %v3472, %v3465
        %v3830 = vpack.c.b16 %v3473, %v3466
        %v3831 = vpack.c.b16 %v3481, %v3474
        %v3832 = vpack.c.b16 %v3482, %v3475
        %v3833 = vpack.c.b16 %v3483, %v3476
        %v3834 = vpack.c.b16 %v3484, %v3477
        %v3835 = vpack.c.b16 %v3485, %v3478
        %v3836 = vpack.c.b16 %v3486, %v3479
        %v3837 = vpack.c.b16 %v3487, %v3480
        %v3838 = vpack.c.b16 %v3495, %v3488
        %v3839 = vpack.c.b16 %v3496, %v3489
        %v3840 = vpack.c.b16 %v3497, %v3490
        %v3841 = vpack.c.b16 %v3498, %v3491
        %v3842 = vpack.c.b16 %v3499, %v3492
        %v3843 = vpack.c.b16 %v3500, %v3493
        %v3844 = vpack.c.b16 %v3501, %v3494
        %v3845 = vpack.c.b16 %v3509, %v3502
        %v3846 = vpack.c.b16 %v3510, %v3503
        %v3847 = vpack.c.b16 %v3511, %v3504
        %v3848 = vpack.c.b16 %v3512, %v3505
        %v3849 = vpack.c.b16 %v3513, %v3506
        %v3850 = vpack.c.b16 %v3514, %v3507
        %v3851 = vpack.c.b16 %v3515, %v3508
        %v3852 = vpack.c.b16 %v3523, %v3516
        %v3853 = vpack.c.b16 %v3524, %v3517
        %v3854 = vpack.c.b16 %v3525, %v3518
        %v3855 = vpack.c.b16 %v3526, %v3519
        %v3856 = vpack.c.b16 %v3527, %v3520
        %v3857 = vpack.c.b16 %v3528, %v3521
        %v3858 = vpack.c.b16 %v3529, %v3522
        %v3859 = vpack.c.b16 %v3537, %v3530
        %v3860 = vpack.c.b16 %v3538, %v3531
        %v3861 = vpack.c.b16 %v3539, %v3532
        %v3862 = vpack.c.b16 %v3540, %v3533
        %v3863 = vpack.c.b16 %v3541, %v3534
        %v3864 = vpack.c.b16 %v3542, %v3535
        %v3865 = vpack.c.b16 %v3543, %v3536
        %v3866 = vpack.c.b16 %v3551, %v3544
        %v3867 = vpack.c.b16 %v3552, %v3545
        %v3868 = vpack.c.b16 %v3553, %v3546
        %v3869 = vpack.c.b16 %v3554, %v3547
        %v3870 = vpack.c.b16 %v3555, %v3548
        %v3871 = vpack.c.b16 %v3556, %v3549
        %v3872 = vpack.c.b16 %v3557, %v3550
        %v3873 = vpack.c.b16 %v3565, %v3558
        %v3874 = vpack.c.b16 %v3566, %v3559
        %v3875 = vpack.c.b16 %v3567, %v3560
        %v3876 = vpack.c.b16 %v3568, %v3561
        %v3877 = vpack.c.b16 %v3569, %v3562
        %v3878 = vpack.c.b16 %v3570, %v3563
        %v3879 = vpack.c.b16 %v3571, %v3564
        %v3880 = vpack.c.b16 %v3579, %v3572
        %v3881 = vpack.c.b16 %v3580, %v3573
        %v3882 = vpack.c.b16 %v3581, %v3574
        %v3883 = vpack.c.b16 %v3582, %v3575
        %v3884 = vpack.c.b16 %v3583, %v3576
        %v3885 = vpack.c.b16 %v3584, %v3577
        %v3886 = vpack.c.b16 %v3585, %v3578
        %v3887 = vpack.c.b16 %v3593, %v3586
        %v3888 = vpack.c.b16 %v3594, %v3587
        %v3889 = vpack.c.b16 %v3595, %v3588
        %v3890 = vpack.c.b16 %v3596, %v3589
        %v3891 = vpack.c.b16 %v3597, %v3590
        %v3892 = vpack.c.b16 %v3598, %v3591
        %v3893 = vpack.c.b16 %v3599, %v3592
        %v3894 = vpack.c.b16 %v3607, %v3600
        %v3895 = vpack.c.b16 %v3608, %v3601
        %v3896 = vpack.c.b16 %v3609, %v3602
        %v3897 = vpack.c.b16 %v3610, %v3603
        %v3898 = vpack.c.b16 %v3611, %v3604
        %v3899 = vpack.c.b16 %v3612, %v3605
        %v3900 = vpack.c.b16 %v3613, %v3606
        %v3901 = vpack.c.b16 %v3621, %v3614
        %v3902 = vpack.c.b16 %v3622, %v3615
        %v3903 = vpack.c.b16 %v3623, %v3616
        %v3904 = vpack.c.b16 %v3624, %v3617
        %v3905 = vpack.c.b16 %v3625, %v3618
        %v3906 = vpack.c.b16 %v3626, %v3619
        %v3907 = vpack.c.b16 %v3627, %v3620
        %v3908 = vpack.c.b16 %v3635, %v3628
        %v3909 = vpack.c.b16 %v3636, %v3629
        %v3910 = vpack.c.b16 %v3637, %v3630
        %v3911 = vpack.c.b16 %v3638, %v3631
        %v3912 = vpack.c.b16 %v3639, %v3632
        %v3913 = vpack.c.b16 %v3640, %v3633
        %v3914 = vpack.c.b16 %v3641, %v3634
        %v3915 = vpack.c.b16 %v3649, %v3642
        %v3916 = vpack.c.b16 %v3650, %v3643
        %v3917 = vpack.c.b16 %v3651, %v3644
        %v3918 = vpack.c.b16 %v3652, %v3645
        %v3919 = vpack.c.b16 %v3653, %v3646
        %v3920 = vpack.c.b16 %v3654, %v3647
        %v3921 = vpack.c.b16 %v3655, %v3648
        %v3922 = vpack.c.b16 %v3663, %v3656
        %v3923 = vpack.c.b16 %v3664, %v3657
        %v3924 = vpack.c.b16 %v3665, %v3658
        %v3925 = vpack.c.b16 %v3666, %v3659
        %v3926 = vpack.c.b16 %v3667, %v3660
        %v3927 = vpack.c.b16 %v3668, %v3661
        %v3928 = vpack.c.b16 %v3669, %v3662
        %v3929 = vpack.c.b16 %v3677, %v3670
        %v3930 = vpack.c.b16 %v3678, %v3671
        %v3931 = vpack.c.b16 %v3679, %v3672
        %v3932 = vpack.c.b16 %v3680, %v3673
        %v3933 = vpack.c.b16 %v3681, %v3674
        %v3934 = vpack.c.b16 %v3682, %v3675
        %v3935 = vpack.c.b16 %v3683, %v3676
        %v3936 = vpack.c.b16 %v3691, %v3684
        %v3937 = vpack.c.b16 %v3692, %v3685
        %v3938 = vpack.c.b16 %v3693, %v3686
        %v3939 = vpack.c.b16 %v3694, %v3687
        %v3940 = vpack.c.b16 %v3695, %v3688
        %v3941 = vpack.c.b16 %v3696, %v3689
        %v3942 = vpack.c.b16 %v3697, %v3690
        %v3943 = vpack.c.b16 %v3705, %v3698
        %v3944 = vpack.c.b16 %v3706, %v3699
        %v3945 = vpack.c.b16 %v3707, %v3700
        %v3946 = vpack.c.b16 %v3708, %v3701
        %v3947 = vpack.c.b16 %v3709, %v3702
        %v3948 = vpack.c.b16 %v3710, %v3703
        %v3949 = vpack.c.b16 %v3711, %v3704
        %v3950 = vpack.c.b16 %v3719, %v3712
        %v3951 = vpack.c.b16 %v3720, %v3713
        %v3952 = vpack.c.b16 %v3721, %v3714
        %v3953 = vpack.c.b16 %v3722, %v3715
        %v3954 = vpack.c.b16 %v3723, %v3716
        %v3955 = vpack.c.b16 %v3724, %v3717
        %v3956 = vpack.c.b16 %v3725, %v3718
        %v3957 = vpack.c.b16 %v3733, %v3726
        %v3958 = vpack.c.b16 %v3734, %v3727
        %v3959 = vpack.c.b16 %v3735, %v3728
        %v3960 = vpack.c.b16 %v3736, %v3729
        %v3961 = vpack.c.b16 %v3737, %v3730
        %v3962 = vpack.c.b16 %v3738, %v3731
        %v3963 = vpack.c.b16 %v3739, %v3732
        %4188 = vmatpush.bf16.msra.mxu0 %v3789
        %4189 = vmatpush.bf16.msra.mxu0 %v3782
        %4190 = vmatpush.bf16.msra.mxu0 %v3775
        %4191 = vmatpush.bf16.msra.mxu0 %v3768
        %4192 = vmatpush.bf16.msra.mxu0 %v3761
        %4193 = vmatpush.bf16.msra.mxu0 %v3754
        %4194 = vmatpush.bf16.msra.mxu0 %v3747
        %4195 = vmatpush.bf16.msra.mxu0 %v3740
        %4196 = vmatmul.bf16.gmra.mxu0 %v2760
        %v4197 = vpop.f32.mrf.mxu0
        %v4198 = vadd.f32 %v3022, %v4197
        %v4199 = vpop.f32.mrf.mxu0
        %v4200 = vadd.f32 %v3022, %v4199
        %4201 = vdwg.mxu0
        %4202 = vmatpush.bf16.msra.mxu0 %v3845
        %4203 = vmatpush.bf16.msra.mxu0 %v3838
        %4204 = vmatpush.bf16.msra.mxu0 %v3831
        %4205 = vmatpush.bf16.msra.mxu0 %v3824
        %4206 = vmatpush.bf16.msra.mxu0 %v3817
        %4207 = vmatpush.bf16.msra.mxu0 %v3810
        %4208 = vmatpush.bf16.msra.mxu0 %v3803
        %4209 = vmatpush.bf16.msra.mxu0 %v3796
        %4210 = vmatmul.bf16.gmra.mxu0 %v2761
        %v4211 = vpop.f32.mrf.mxu0
        %v4212 = vadd.f32 %v4198, %v4211
        %v4213 = vpop.f32.mrf.mxu0
        %v4214 = vadd.f32 %v4200, %v4213
        %4215 = vdwg.mxu0
        %4216 = vmatpush.bf16.msra.mxu0 %v3901
        %4217 = vmatpush.bf16.msra.mxu0 %v3894
        %4218 = vmatpush.bf16.msra.mxu0 %v3887
        %4219 = vmatpush.bf16.msra.mxu0 %v3880
        %4220 = vmatpush.bf16.msra.mxu0 %v3873
        %4221 = vmatpush.bf16.msra.mxu0 %v3866
        %4222 = vmatpush.bf16.msra.mxu0 %v3859
        %4223 = vmatpush.bf16.msra.mxu0 %v3852
        %4224 = vmatmul.bf16.gmra.mxu0 %v2762
        %v4225 = vpop.f32.mrf.mxu0
        %v4226 = vadd.f32 %v4212, %v4225
        %v4227 = vpop.f32.mrf.mxu0
        %v4228 = vadd.f32 %v4214, %v4227
        %4229 = vdwg.mxu0
        %4230 = vmatpush.bf16.msra.mxu0 %v3957
        %4231 = vmatpush.bf16.msra.mxu0 %v3950
        %4232 = vmatpush.bf16.msra.mxu0 %v3943
        %4233 = vmatpush.bf16.msra.mxu0 %v3936
        %4234 = vmatpush.bf16.msra.mxu0 %v3929
        %4235 = vmatpush.bf16.msra.mxu0 %v3922
        %4236 = vmatpush.bf16.msra.mxu0 %v3915
        %4237 = vmatpush.bf16.msra.mxu0 %v3908
        %4238 = vmatmul.bf16.gmra.mxu0 %v2763
        %v4239 = vpop.f32.mrf.mxu0
        %v4240 = vadd.f32 %v4226, %v4239
        %v4241 = vpop.f32.mrf.mxu0
        %v4242 = vadd.f32 %v4228, %v4241
        %4243 = vdwg.mxu0
        %4244 = vmatpush.bf16.msra.mxu0 %v3790
        %4245 = vmatpush.bf16.msra.mxu0 %v3783
        %4246 = vmatpush.bf16.msra.mxu0 %v3776
        %4247 = vmatpush.bf16.msra.mxu0 %v3769
        %4248 = vmatpush.bf16.msra.mxu0 %v3762
        %4249 = vmatpush.bf16.msra.mxu0 %v3755
        %4250 = vmatpush.bf16.msra.mxu0 %v3748
        %4251 = vmatpush.bf16.msra.mxu0 %v3741
        %4252 = vmatmul.bf16.gmra.mxu0 %v2760
        %v4253 = vpop.f32.mrf.mxu0
        %v4254 = vadd.f32 %v3023, %v4253
        %v4255 = vpop.f32.mrf.mxu0
        %v4256 = vadd.f32 %v3023, %v4255
        %4257 = vdwg.mxu0
        %4258 = vmatpush.bf16.msra.mxu0 %v3846
        %4259 = vmatpush.bf16.msra.mxu0 %v3839
        %4260 = vmatpush.bf16.msra.mxu0 %v3832
        %4261 = vmatpush.bf16.msra.mxu0 %v3825
        %4262 = vmatpush.bf16.msra.mxu0 %v3818
        %4263 = vmatpush.bf16.msra.mxu0 %v3811
        %4264 = vmatpush.bf16.msra.mxu0 %v3804
        %4265 = vmatpush.bf16.msra.mxu0 %v3797
        %4266 = vmatmul.bf16.gmra.mxu0 %v2761
        %v4267 = vpop.f32.mrf.mxu0
        %v4268 = vadd.f32 %v4254, %v4267
        %v4269 = vpop.f32.mrf.mxu0
        %v4270 = vadd.f32 %v4256, %v4269
        %4271 = vdwg.mxu0
        %4272 = vmatpush.bf16.msra.mxu0 %v3902
        %4273 = vmatpush.bf16.msra.mxu0 %v3895
        %4274 = vmatpush.bf16.msra.mxu0 %v3888
        %4275 = vmatpush.bf16.msra.mxu0 %v3881
        %4276 = vmatpush.bf16.msra.mxu0 %v3874
        %4277 = vmatpush.bf16.msra.mxu0 %v3867
        %4278 = vmatpush.bf16.msra.mxu0 %v3860
        %4279 = vmatpush.bf16.msra.mxu0 %v3853
        %4280 = vmatmul.bf16.gmra.mxu0 %v2762
        %v4281 = vpop.f32.mrf.mxu0
        %v4282 = vadd.f32 %v4268, %v4281
        %v4283 = vpop.f32.mrf.mxu0
        %v4284 = vadd.f32 %v4270, %v4283
        %4285 = vdwg.mxu0
        %4286 = vmatpush.bf16.msra.mxu0 %v3958
        %4287 = vmatpush.bf16.msra.mxu0 %v3951
        %4288 = vmatpush.bf16.msra.mxu0 %v3944
        %4289 = vmatpush.bf16.msra.mxu0 %v3937
        %4290 = vmatpush.bf16.msra.mxu0 %v3930
        %4291 = vmatpush.bf16.msra.mxu0 %v3923
        %4292 = vmatpush.bf16.msra.mxu0 %v3916
        %4293 = vmatpush.bf16.msra.mxu0 %v3909
        %4294 = vmatmul.bf16.gmra.mxu0 %v2763
        %v4295 = vpop.f32.mrf.mxu0
        %v4296 = vadd.f32 %v4282, %v4295
        %v4297 = vpop.f32.mrf.mxu0
        %v4298 = vadd.f32 %v4284, %v4297
        %4299 = vdwg.mxu0
        %4300 = vmatpush.bf16.msra.mxu0 %v3791
        %4301 = vmatpush.bf16.msra.mxu0 %v3784
        %4302 = vmatpush.bf16.msra.mxu0 %v3777
        %4303 = vmatpush.bf16.msra.mxu0 %v3770
        %4304 = vmatpush.bf16.msra.mxu0 %v3763
        %4305 = vmatpush.bf16.msra.mxu0 %v3756
        %4306 = vmatpush.bf16.msra.mxu0 %v3749
        %4307 = vmatpush.bf16.msra.mxu0 %v3742
        %4308 = vmatmul.bf16.gmra.mxu0 %v2760
        %v4309 = vpop.f32.mrf.mxu0
        %v4310 = vadd.f32 %v3024, %v4309
        %v4311 = vpop.f32.mrf.mxu0
        %v4312 = vadd.f32 %v3024, %v4311
        %4313 = vdwg.mxu0
        %4314 = vmatpush.bf16.msra.mxu0 %v3847
        %4315 = vmatpush.bf16.msra.mxu0 %v3840
        %4316 = vmatpush.bf16.msra.mxu0 %v3833
        %4317 = vmatpush.bf16.msra.mxu0 %v3826
        %4318 = vmatpush.bf16.msra.mxu0 %v3819
        %4319 = vmatpush.bf16.msra.mxu0 %v3812
        %4320 = vmatpush.bf16.msra.mxu0 %v3805
        %4321 = vmatpush.bf16.msra.mxu0 %v3798
        %4322 = vmatmul.bf16.gmra.mxu0 %v2761
        %v4323 = vpop.f32.mrf.mxu0
        %v4324 = vadd.f32 %v4310, %v4323
        %v4325 = vpop.f32.mrf.mxu0
        %v4326 = vadd.f32 %v4312, %v4325
        %4327 = vdwg.mxu0
        %4328 = vmatpush.bf16.msra.mxu0 %v3903
        %4329 = vmatpush.bf16.msra.mxu0 %v3896
        %4330 = vmatpush.bf16.msra.mxu0 %v3889
        %4331 = vmatpush.bf16.msra.mxu0 %v3882
        %4332 = vmatpush.bf16.msra.mxu0 %v3875
        %4333 = vmatpush.bf16.msra.mxu0 %v3868
        %4334 = vmatpush.bf16.msra.mxu0 %v3861
        %4335 = vmatpush.bf16.msra.mxu0 %v3854
        %4336 = vmatmul.bf16.gmra.mxu0 %v2762
        %v4337 = vpop.f32.mrf.mxu0
        %v4338 = vadd.f32 %v4324, %v4337
        %v4339 = vpop.f32.mrf.mxu0
        %v4340 = vadd.f32 %v4326, %v4339
        %4341 = vdwg.mxu0
        %4342 = vmatpush.bf16.msra.mxu0 %v3959
        %4343 = vmatpush.bf16.msra.mxu0 %v3952
        %4344 = vmatpush.bf16.msra.mxu0 %v3945
        %4345 = vmatpush.bf16.msra.mxu0 %v3938
        %4346 = vmatpush.bf16.msra.mxu0 %v3931
        %4347 = vmatpush.bf16.msra.mxu0 %v3924
        %4348 = vmatpush.bf16.msra.mxu0 %v3917
        %4349 = vmatpush.bf16.msra.mxu0 %v3910
        %4350 = vmatmul.bf16.gmra.mxu0 %v2763
        %v4351 = vpop.f32.mrf.mxu0
        %v4352 = vadd.f32 %v4338, %v4351
        %v4353 = vpop.f32.mrf.mxu0
        %v4354 = vadd.f32 %v4340, %v4353
        %4355 = vdwg.mxu0
        %4356 = vmatpush.bf16.msra.mxu0 %v3792
        %4357 = vmatpush.bf16.msra.mxu0 %v3785
        %4358 = vmatpush.bf16.msra.mxu0 %v3778
        %4359 = vmatpush.bf16.msra.mxu0 %v3771
        %4360 = vmatpush.bf16.msra.mxu0 %v3764
        %4361 = vmatpush.bf16.msra.mxu0 %v3757
        %4362 = vmatpush.bf16.msra.mxu0 %v3750
        %4363 = vmatpush.bf16.msra.mxu0 %v3743
        %4364 = vmatmul.bf16.gmra.mxu0 %v2760
        %v4365 = vpop.f32.mrf.mxu0
        %v4366 = vadd.f32 %v3025, %v4365
        %v4367 = vpop.f32.mrf.mxu0
        %v4368 = vadd.f32 %v3025, %v4367
        %4369 = vdwg.mxu0
        %4370 = vmatpush.bf16.msra.mxu0 %v3848
        %4371 = vmatpush.bf16.msra.mxu0 %v3841
        %4372 = vmatpush.bf16.msra.mxu0 %v3834
        %4373 = vmatpush.bf16.msra.mxu0 %v3827
        %4374 = vmatpush.bf16.msra.mxu0 %v3820
        %4375 = vmatpush.bf16.msra.mxu0 %v3813
        %4376 = vmatpush.bf16.msra.mxu0 %v3806
        %4377 = vmatpush.bf16.msra.mxu0 %v3799
        %4378 = vmatmul.bf16.gmra.mxu0 %v2761
        %v4379 = vpop.f32.mrf.mxu0
        %v4380 = vadd.f32 %v4366, %v4379
        %v4381 = vpop.f32.mrf.mxu0
        %v4382 = vadd.f32 %v4368, %v4381
        %4383 = vdwg.mxu0
        %4384 = vmatpush.bf16.msra.mxu0 %v3904
        %4385 = vmatpush.bf16.msra.mxu0 %v3897
        %4386 = vmatpush.bf16.msra.mxu0 %v3890
        %4387 = vmatpush.bf16.msra.mxu0 %v3883
        %4388 = vmatpush.bf16.msra.mxu0 %v3876
        %4389 = vmatpush.bf16.msra.mxu0 %v3869
        %4390 = vmatpush.bf16.msra.mxu0 %v3862
        %4391 = vmatpush.bf16.msra.mxu0 %v3855
        %4392 = vmatmul.bf16.gmra.mxu0 %v2762
        %v4393 = vpop.f32.mrf.mxu0
        %v4394 = vadd.f32 %v4380, %v4393
        %v4395 = vpop.f32.mrf.mxu0
        %v4396 = vadd.f32 %v4382, %v4395
        %4397 = vdwg.mxu0
        %4398 = vmatpush.bf16.msra.mxu0 %v3960
        %4399 = vmatpush.bf16.msra.mxu0 %v3953
        %4400 = vmatpush.bf16.msra.mxu0 %v3946
        %4401 = vmatpush.bf16.msra.mxu0 %v3939
        %4402 = vmatpush.bf16.msra.mxu0 %v3932
        %4403 = vmatpush.bf16.msra.mxu0 %v3925
        %4404 = vmatpush.bf16.msra.mxu0 %v3918
        %4405 = vmatpush.bf16.msra.mxu0 %v3911
        %4406 = vmatmul.bf16.gmra.mxu0 %v2763
        %v4407 = vpop.f32.mrf.mxu0
        %v4408 = vadd.f32 %v4394, %v4407
        %v4409 = vpop.f32.mrf.mxu0
        %v4410 = vadd.f32 %v4396, %v4409
        %4411 = vdwg.mxu0
        %4412 = vmatpush.bf16.msra.mxu0 %v3793
        %4413 = vmatpush.bf16.msra.mxu0 %v3786
        %4414 = vmatpush.bf16.msra.mxu0 %v3779
        %4415 = vmatpush.bf16.msra.mxu0 %v3772
        %4416 = vmatpush.bf16.msra.mxu0 %v3765
        %4417 = vmatpush.bf16.msra.mxu0 %v3758
        %4418 = vmatpush.bf16.msra.mxu0 %v3751
        %4419 = vmatpush.bf16.msra.mxu0 %v3744
        %4420 = vmatmul.bf16.gmra.mxu0 %v2760
        %v4421 = vpop.f32.mrf.mxu0
        %v4422 = vadd.f32 %v3026, %v4421
        %v4423 = vpop.f32.mrf.mxu0
        %v4424 = vadd.f32 %v3026, %v4423
        %4425 = vdwg.mxu0
        %4426 = vmatpush.bf16.msra.mxu0 %v3849
        %4427 = vmatpush.bf16.msra.mxu0 %v3842
        %4428 = vmatpush.bf16.msra.mxu0 %v3835
        %4429 = vmatpush.bf16.msra.mxu0 %v3828
        %4430 = vmatpush.bf16.msra.mxu0 %v3821
        %4431 = vmatpush.bf16.msra.mxu0 %v3814
        %4432 = vmatpush.bf16.msra.mxu0 %v3807
        %4433 = vmatpush.bf16.msra.mxu0 %v3800
        %4434 = vmatmul.bf16.gmra.mxu0 %v2761
        %v4435 = vpop.f32.mrf.mxu0
        %v4436 = vadd.f32 %v4422, %v4435
        %v4437 = vpop.f32.mrf.mxu0
        %v4438 = vadd.f32 %v4424, %v4437
        %4439 = vdwg.mxu0
        %4440 = vmatpush.bf16.msra.mxu0 %v3905
        %4441 = vmatpush.bf16.msra.mxu0 %v3898
        %4442 = vmatpush.bf16.msra.mxu0 %v3891
        %4443 = vmatpush.bf16.msra.mxu0 %v3884
        %4444 = vmatpush.bf16.msra.mxu0 %v3877
        %4445 = vmatpush.bf16.msra.mxu0 %v3870
        %4446 = vmatpush.bf16.msra.mxu0 %v3863
        %4447 = vmatpush.bf16.msra.mxu0 %v3856
        %4448 = vmatmul.bf16.gmra.mxu0 %v2762
        %v4449 = vpop.f32.mrf.mxu0
        %v4450 = vadd.f32 %v4436, %v4449
        %v4451 = vpop.f32.mrf.mxu0
        %v4452 = vadd.f32 %v4438, %v4451
        %4453 = vdwg.mxu0
        %4454 = vmatpush.bf16.msra.mxu0 %v3961
        %4455 = vmatpush.bf16.msra.mxu0 %v3954
        %4456 = vmatpush.bf16.msra.mxu0 %v3947
        %4457 = vmatpush.bf16.msra.mxu0 %v3940
        %4458 = vmatpush.bf16.msra.mxu0 %v3933
        %4459 = vmatpush.bf16.msra.mxu0 %v3926
        %4460 = vmatpush.bf16.msra.mxu0 %v3919
        %4461 = vmatpush.bf16.msra.mxu0 %v3912
        %4462 = vmatmul.bf16.gmra.mxu0 %v2763
        %v4463 = vpop.f32.mrf.mxu0
        %v4464 = vadd.f32 %v4450, %v4463
        %v4465 = vpop.f32.mrf.mxu0
        %v4466 = vadd.f32 %v4452, %v4465
        %4467 = vdwg.mxu0
        %4468 = vmatpush.bf16.msra.mxu0 %v3794
        %4469 = vmatpush.bf16.msra.mxu0 %v3787
        %4470 = vmatpush.bf16.msra.mxu0 %v3780
        %4471 = vmatpush.bf16.msra.mxu0 %v3773
        %4472 = vmatpush.bf16.msra.mxu0 %v3766
        %4473 = vmatpush.bf16.msra.mxu0 %v3759
        %4474 = vmatpush.bf16.msra.mxu0 %v3752
        %4475 = vmatpush.bf16.msra.mxu0 %v3745
        %4476 = vmatmul.bf16.gmra.mxu0 %v2760
        %v4477 = vpop.f32.mrf.mxu0
        %v4478 = vadd.f32 %v3027, %v4477
        %v4479 = vpop.f32.mrf.mxu0
        %v4480 = vadd.f32 %v3027, %v4479
        %4481 = vdwg.mxu0
        %4482 = vmatpush.bf16.msra.mxu0 %v3850
        %4483 = vmatpush.bf16.msra.mxu0 %v3843
        %4484 = vmatpush.bf16.msra.mxu0 %v3836
        %4485 = vmatpush.bf16.msra.mxu0 %v3829
        %4486 = vmatpush.bf16.msra.mxu0 %v3822
        %4487 = vmatpush.bf16.msra.mxu0 %v3815
        %4488 = vmatpush.bf16.msra.mxu0 %v3808
        %4489 = vmatpush.bf16.msra.mxu0 %v3801
        %4490 = vmatmul.bf16.gmra.mxu0 %v2761
        %v4491 = vpop.f32.mrf.mxu0
        %v4492 = vadd.f32 %v4478, %v4491
        %v4493 = vpop.f32.mrf.mxu0
        %v4494 = vadd.f32 %v4480, %v4493
        %4495 = vdwg.mxu0
        %4496 = vmatpush.bf16.msra.mxu0 %v3906
        %4497 = vmatpush.bf16.msra.mxu0 %v3899
        %4498 = vmatpush.bf16.msra.mxu0 %v3892
        %4499 = vmatpush.bf16.msra.mxu0 %v3885
        %4500 = vmatpush.bf16.msra.mxu0 %v3878
        %4501 = vmatpush.bf16.msra.mxu0 %v3871
        %4502 = vmatpush.bf16.msra.mxu0 %v3864
        %4503 = vmatpush.bf16.msra.mxu0 %v3857
        %4504 = vmatmul.bf16.gmra.mxu0 %v2762
        %v4505 = vpop.f32.mrf.mxu0
        %v4506 = vadd.f32 %v4492, %v4505
        %v4507 = vpop.f32.mrf.mxu0
        %v4508 = vadd.f32 %v4494, %v4507
        %4509 = vdwg.mxu0
        %4510 = vmatpush.bf16.msra.mxu0 %v3962
        %4511 = vmatpush.bf16.msra.mxu0 %v3955
        %4512 = vmatpush.bf16.msra.mxu0 %v3948
        %4513 = vmatpush.bf16.msra.mxu0 %v3941
        %4514 = vmatpush.bf16.msra.mxu0 %v3934
        %4515 = vmatpush.bf16.msra.mxu0 %v3927
        %4516 = vmatpush.bf16.msra.mxu0 %v3920
        %4517 = vmatpush.bf16.msra.mxu0 %v3913
        %4518 = vmatmul.bf16.gmra.mxu0 %v2763
        %v4519 = vpop.f32.mrf.mxu0
        %v4520 = vadd.f32 %v4506, %v4519
        %v4521 = vpop.f32.mrf.mxu0
        %v4522 = vadd.f32 %v4508, %v4521
        %4523 = vdwg.mxu0
        %4524 = vmatpush.bf16.msra.mxu0 %v3795
        %4525 = vmatpush.bf16.msra.mxu0 %v3788
        %4526 = vmatpush.bf16.msra.mxu0 %v3781
        %4527 = vmatpush.bf16.msra.mxu0 %v3774
        %4528 = vmatpush.bf16.msra.mxu0 %v3767
        %4529 = vmatpush.bf16.msra.mxu0 %v3760
        %4530 = vmatpush.bf16.msra.mxu0 %v3753
        %4531 = vmatpush.bf16.msra.mxu0 %v3746
        %4532 = vmatmul.bf16.gmra.mxu0 %v2760
        %v4533 = vpop.f32.mrf.mxu0
        %v4534 = vadd.f32 %v3028, %v4533
        %v4535 = vpop.f32.mrf.mxu0
        %v4536 = vadd.f32 %v3028, %v4535
        %4537 = vdwg.mxu0
        %4538 = vmatpush.bf16.msra.mxu0 %v3851
        %4539 = vmatpush.bf16.msra.mxu0 %v3844
        %4540 = vmatpush.bf16.msra.mxu0 %v3837
        %4541 = vmatpush.bf16.msra.mxu0 %v3830
        %4542 = vmatpush.bf16.msra.mxu0 %v3823
        %4543 = vmatpush.bf16.msra.mxu0 %v3816
        %4544 = vmatpush.bf16.msra.mxu0 %v3809
        %4545 = vmatpush.bf16.msra.mxu0 %v3802
        %4546 = vmatmul.bf16.gmra.mxu0 %v2761
        %v4547 = vpop.f32.mrf.mxu0
        %v4548 = vadd.f32 %v4534, %v4547
        %v4549 = vpop.f32.mrf.mxu0
        %v4550 = vadd.f32 %v4536, %v4549
        %4551 = vdwg.mxu0
        %4552 = vmatpush.bf16.msra.mxu0 %v3907
        %4553 = vmatpush.bf16.msra.mxu0 %v3900
        %4554 = vmatpush.bf16.msra.mxu0 %v3893
        %4555 = vmatpush.bf16.msra.mxu0 %v3886
        %4556 = vmatpush.bf16.msra.mxu0 %v3879
        %4557 = vmatpush.bf16.msra.mxu0 %v3872
        %4558 = vmatpush.bf16.msra.mxu0 %v3865
        %4559 = vmatpush.bf16.msra.mxu0 %v3858
        %4560 = vmatmul.bf16.gmra.mxu0 %v2762
        %v4561 = vpop.f32.mrf.mxu0
        %v4562 = vadd.f32 %v4548, %v4561
        %v4563 = vpop.f32.mrf.mxu0
        %v4564 = vadd.f32 %v4550, %v4563
        %4565 = vdwg.mxu0
        %4566 = vmatpush.bf16.msra.mxu0 %v3963
        %4567 = vmatpush.bf16.msra.mxu0 %v3956
        %4568 = vmatpush.bf16.msra.mxu0 %v3949
        %4569 = vmatpush.bf16.msra.mxu0 %v3942
        %4570 = vmatpush.bf16.msra.mxu0 %v3935
        %4571 = vmatpush.bf16.msra.mxu0 %v3928
        %4572 = vmatpush.bf16.msra.mxu0 %v3921
        %4573 = vmatpush.bf16.msra.mxu0 %v3914
        %4574 = vmatmul.bf16.gmra.mxu0 %v2763
        %v4575 = vpop.f32.mrf.mxu0
        %v4576 = vadd.f32 %v4562, %v4575
        %v4577 = vpop.f32.mrf.mxu0
        %v4578 = vadd.f32 %v4564, %v4577
        %4579 = vdwg.mxu0
        %v4580 = vxor.u32 %v4240, 2147483648
        %v4581 = vxor.u32 %v4296, 2147483648
        %v4582 = vxor.u32 %v4352, 2147483648
        %v4583 = vxor.u32 %v4408, 2147483648
        %v4584 = vxor.u32 %v4464, 2147483648
        %v4585 = vxor.u32 %v4520, 2147483648
        %v4586 = vxor.u32 %v4576, 2147483648
        %v4587 = vxor.u32 %v4242, 2147483648
        %v4588 = vxor.u32 %v4298, 2147483648
        %v4589 = vxor.u32 %v4354, 2147483648
        %v4590 = vxor.u32 %v4410, 2147483648
        %v4591 = vxor.u32 %v4466, 2147483648
        %v4592 = vxor.u32 %v4522, 2147483648
        %v4593 = vxor.u32 %v4578, 2147483648
        %v4594 = vmul.f32 %v4580, 1.442695
        %v4595 = vpow.pop %v4594
        %v4596 = vmul.f32 %v4581, 1.442695
        %v4597 = vpow.pop %v4596
        %v4598 = vmul.f32 %v4582, 1.442695
        %v4599 = vpow.pop %v4598
        %v4600 = vmul.f32 %v4583, 1.442695
        %v4601 = vpow.pop %v4600
        %v4602 = vmul.f32 %v4584, 1.442695
        %v4603 = vpow.pop %v4602
        %v4604 = vmul.f32 %v4585, 1.442695
        %v4605 = vpow.pop %v4604
        %v4606 = vmul.f32 %v4586, 1.442695
        %v4607 = vpow.pop %v4606
        %v4608 = vmul.f32 %v4587, 1.442695
        %v4609 = vpow.pop %v4608
        %v4610 = vmul.f32 %v4588, 1.442695
        %v4611 = vpow.pop %v4610
        %v4612 = vmul.f32 %v4589, 1.442695
        %v4613 = vpow.pop %v4612
        %v4614 = vmul.f32 %v4590, 1.442695
        %v4615 = vpow.pop %v4614
        %v4616 = vmul.f32 %v4591, 1.442695
        %v4617 = vpow.pop %v4616
        %v4618 = vmul.f32 %v4592, 1.442695
        %v4619 = vpow.pop %v4618
        %v4620 = vmul.f32 %v4593, 1.442695
        %v4621 = vpow.pop %v4620
        %v4622 = vadd.f32 %v4595, 1.0
        %v4623 = vadd.f32 %v4597, 1.0
        %v4624 = vadd.f32 %v4599, 1.0
        %v4625 = vadd.f32 %v4601, 1.0
        %v4626 = vadd.f32 %v4603, 1.0
        %v4627 = vadd.f32 %v4605, 1.0
        %v4628 = vadd.f32 %v4607, 1.0
        %v4629 = vadd.f32 %v4609, 1.0
        %v4630 = vadd.f32 %v4611, 1.0
        %v4631 = vadd.f32 %v4613, 1.0
        %v4632 = vadd.f32 %v4615, 1.0
        %v4633 = vadd.f32 %v4617, 1.0
        %v4634 = vadd.f32 %v4619, 1.0
        %v4635 = vadd.f32 %v4621, 1.0
        %v4636 = vrcp.pop %v4622
        %v4637 = vmul.f32 %v4622, %v4636
        %v4638 = vsub.f32 1.0, %v4637
        %v4639 = vmul.f32 %v4636, %v4638
        %v4640 = vadd.f32 %v4636, %v4639
        %vm4641 = vweird.f32 %v4622
        %vm4642 = vweird.f32 %v4636
        %vm4643 = vmor %vm4641, %vm4642
        %v4644 = vsel %vm4643, %v4636, %v4640
        %v4645 = vand.u32 2147483647, %v4622
        %vm4646 = vcmp.eq.f32.partialorder %v4645, 8.507059e+37
        %v4647 = vand.u32 %v4622, 2147483648
        %v4648 = vor.u32 1.1754944e-38, %v4647
        %v4649 = vsel %vm4646, %v4648, %v4644
        %v4650 = vmul.f32 1.0, %v4649
        %v4651 = vrcp.pop %v4623
        %v4652 = vmul.f32 %v4623, %v4651
        %v4653 = vsub.f32 1.0, %v4652
        %v4654 = vmul.f32 %v4651, %v4653
        %v4655 = vadd.f32 %v4651, %v4654
        %vm4656 = vweird.f32 %v4623
        %vm4657 = vweird.f32 %v4651
        %vm4658 = vmor %vm4656, %vm4657
        %v4659 = vsel %vm4658, %v4651, %v4655
        %v4660 = vand.u32 2147483647, %v4623
        %vm4661 = vcmp.eq.f32.partialorder %v4660, 8.507059e+37
        %v4662 = vand.u32 %v4623, 2147483648
        %v4663 = vor.u32 1.1754944e-38, %v4662
        %v4664 = vsel %vm4661, %v4663, %v4659
        %v4665 = vmul.f32 1.0, %v4664
        %v4666 = vrcp.pop %v4624
        %v4667 = vmul.f32 %v4624, %v4666
        %v4668 = vsub.f32 1.0, %v4667
        %v4669 = vmul.f32 %v4666, %v4668
        %v4670 = vadd.f32 %v4666, %v4669
        %vm4671 = vweird.f32 %v4624
        %vm4672 = vweird.f32 %v4666
        %vm4673 = vmor %vm4671, %vm4672
        %v4674 = vsel %vm4673, %v4666, %v4670
        %v4675 = vand.u32 2147483647, %v4624
        %vm4676 = vcmp.eq.f32.partialorder %v4675, 8.507059e+37
        %v4677 = vand.u32 %v4624, 2147483648
        %v4678 = vor.u32 1.1754944e-38, %v4677
        %v4679 = vsel %vm4676, %v4678, %v4674
        %v4680 = vmul.f32 1.0, %v4679
        %v4681 = vrcp.pop %v4625
        %v4682 = vmul.f32 %v4625, %v4681
        %v4683 = vsub.f32 1.0, %v4682
        %v4684 = vmul.f32 %v4681, %v4683
        %v4685 = vadd.f32 %v4681, %v4684
        %vm4686 = vweird.f32 %v4625
        %vm4687 = vweird.f32 %v4681
        %vm4688 = vmor %vm4686, %vm4687
        %v4689 = vsel %vm4688, %v4681, %v4685
        %v4690 = vand.u32 2147483647, %v4625
        %vm4691 = vcmp.eq.f32.partialorder %v4690, 8.507059e+37
        %v4692 = vand.u32 %v4625, 2147483648
        %v4693 = vor.u32 1.1754944e-38, %v4692
        %v4694 = vsel %vm4691, %v4693, %v4689
        %v4695 = vmul.f32 1.0, %v4694
        %v4696 = vrcp.pop %v4626
        %v4697 = vmul.f32 %v4626, %v4696
        %v4698 = vsub.f32 1.0, %v4697
        %v4699 = vmul.f32 %v4696, %v4698
        %v4700 = vadd.f32 %v4696, %v4699
        %vm4701 = vweird.f32 %v4626
        %vm4702 = vweird.f32 %v4696
        %vm4703 = vmor %vm4701, %vm4702
        %v4704 = vsel %vm4703, %v4696, %v4700
        %v4705 = vand.u32 2147483647, %v4626
        %vm4706 = vcmp.eq.f32.partialorder %v4705, 8.507059e+37
        %v4707 = vand.u32 %v4626, 2147483648
        %v4708 = vor.u32 1.1754944e-38, %v4707
        %v4709 = vsel %vm4706, %v4708, %v4704
        %v4710 = vmul.f32 1.0, %v4709
        %v4711 = vrcp.pop %v4627
        %v4712 = vmul.f32 %v4627, %v4711
        %v4713 = vsub.f32 1.0, %v4712
        %v4714 = vmul.f32 %v4711, %v4713
        %v4715 = vadd.f32 %v4711, %v4714
        %vm4716 = vweird.f32 %v4627
        %vm4717 = vweird.f32 %v4711
        %vm4718 = vmor %vm4716, %vm4717
        %v4719 = vsel %vm4718, %v4711, %v4715
        %v4720 = vand.u32 2147483647, %v4627
        %vm4721 = vcmp.eq.f32.partialorder %v4720, 8.507059e+37
        %v4722 = vand.u32 %v4627, 2147483648
        %v4723 = vor.u32 1.1754944e-38, %v4722
        %v4724 = vsel %vm4721, %v4723, %v4719
        %v4725 = vmul.f32 1.0, %v4724
        %v4726 = vrcp.pop %v4628
        %v4727 = vmul.f32 %v4628, %v4726
        %v4728 = vsub.f32 1.0, %v4727
        %v4729 = vmul.f32 %v4726, %v4728
        %v4730 = vadd.f32 %v4726, %v4729
        %vm4731 = vweird.f32 %v4628
        %vm4732 = vweird.f32 %v4726
        %vm4733 = vmor %vm4731, %vm4732
        %v4734 = vsel %vm4733, %v4726, %v4730
        %v4735 = vand.u32 2147483647, %v4628
        %vm4736 = vcmp.eq.f32.partialorder %v4735, 8.507059e+37
        %v4737 = vand.u32 %v4628, 2147483648
        %v4738 = vor.u32 1.1754944e-38, %v4737
        %v4739 = vsel %vm4736, %v4738, %v4734
        %v4740 = vmul.f32 1.0, %v4739
        %v4741 = vrcp.pop %v4629
        %v4742 = vmul.f32 %v4629, %v4741
        %v4743 = vsub.f32 1.0, %v4742
        %v4744 = vmul.f32 %v4741, %v4743
        %v4745 = vadd.f32 %v4741, %v4744
        %vm4746 = vweird.f32 %v4629
        %vm4747 = vweird.f32 %v4741
        %vm4748 = vmor %vm4746, %vm4747
        %v4749 = vsel %vm4748, %v4741, %v4745
        %v4750 = vand.u32 2147483647, %v4629
        %vm4751 = vcmp.eq.f32.partialorder %v4750, 8.507059e+37
        %v4752 = vand.u32 %v4629, 2147483648
        %v4753 = vor.u32 1.1754944e-38, %v4752
        %v4754 = vsel %vm4751, %v4753, %v4749
        %v4755 = vmul.f32 1.0, %v4754
        %v4756 = vrcp.pop %v4630
        %v4757 = vmul.f32 %v4630, %v4756
        %v4758 = vsub.f32 1.0, %v4757
        %v4759 = vmul.f32 %v4756, %v4758
        %v4760 = vadd.f32 %v4756, %v4759
        %vm4761 = vweird.f32 %v4630
        %vm4762 = vweird.f32 %v4756
        %vm4763 = vmor %vm4761, %vm4762
        %v4764 = vsel %vm4763, %v4756, %v4760
        %v4765 = vand.u32 2147483647, %v4630
        %vm4766 = vcmp.eq.f32.partialorder %v4765, 8.507059e+37
        %v4767 = vand.u32 %v4630, 2147483648
        %v4768 = vor.u32 1.1754944e-38, %v4767
        %v4769 = vsel %vm4766, %v4768, %v4764
        %v4770 = vmul.f32 1.0, %v4769
        %v4771 = vrcp.pop %v4631
        %v4772 = vmul.f32 %v4631, %v4771
        %v4773 = vsub.f32 1.0, %v4772
        %v4774 = vmul.f32 %v4771, %v4773
        %v4775 = vadd.f32 %v4771, %v4774
        %vm4776 = vweird.f32 %v4631
        %vm4777 = vweird.f32 %v4771
        %vm4778 = vmor %vm4776, %vm4777
        %v4779 = vsel %vm4778, %v4771, %v4775
        %v4780 = vand.u32 2147483647, %v4631
        %vm4781 = vcmp.eq.f32.partialorder %v4780, 8.507059e+37
        %v4782 = vand.u32 %v4631, 2147483648
        %v4783 = vor.u32 1.1754944e-38, %v4782
        %v4784 = vsel %vm4781, %v4783, %v4779
        %v4785 = vmul.f32 1.0, %v4784
        %v4786 = vrcp.pop %v4632
        %v4787 = vmul.f32 %v4632, %v4786
        %v4788 = vsub.f32 1.0, %v4787
        %v4789 = vmul.f32 %v4786, %v4788
        %v4790 = vadd.f32 %v4786, %v4789
        %vm4791 = vweird.f32 %v4632
        %vm4792 = vweird.f32 %v4786
        %vm4793 = vmor %vm4791, %vm4792
        %v4794 = vsel %vm4793, %v4786, %v4790
        %v4795 = vand.u32 2147483647, %v4632
        %vm4796 = vcmp.eq.f32.partialorder %v4795, 8.507059e+37
        %v4797 = vand.u32 %v4632, 2147483648
        %v4798 = vor.u32 1.1754944e-38, %v4797
        %v4799 = vsel %vm4796, %v4798, %v4794
        %v4800 = vmul.f32 1.0, %v4799
        %v4801 = vrcp.pop %v4633
        %v4802 = vmul.f32 %v4633, %v4801
        %v4803 = vsub.f32 1.0, %v4802
        %v4804 = vmul.f32 %v4801, %v4803
        %v4805 = vadd.f32 %v4801, %v4804
        %vm4806 = vweird.f32 %v4633
        %vm4807 = vweird.f32 %v4801
        %vm4808 = vmor %vm4806, %vm4807
        %v4809 = vsel %vm4808, %v4801, %v4805
        %v4810 = vand.u32 2147483647, %v4633
        %vm4811 = vcmp.eq.f32.partialorder %v4810, 8.507059e+37
        %v4812 = vand.u32 %v4633, 2147483648
        %v4813 = vor.u32 1.1754944e-38, %v4812
        %v4814 = vsel %vm4811, %v4813, %v4809
        %v4815 = vmul.f32 1.0, %v4814
        %v4816 = vrcp.pop %v4634
        %v4817 = vmul.f32 %v4634, %v4816
        %v4818 = vsub.f32 1.0, %v4817
        %v4819 = vmul.f32 %v4816, %v4818
        %v4820 = vadd.f32 %v4816, %v4819
        %vm4821 = vweird.f32 %v4634
        %vm4822 = vweird.f32 %v4816
        %vm4823 = vmor %vm4821, %vm4822
        %v4824 = vsel %vm4823, %v4816, %v4820
        %v4825 = vand.u32 2147483647, %v4634
        %vm4826 = vcmp.eq.f32.partialorder %v4825, 8.507059e+37
        %v4827 = vand.u32 %v4634, 2147483648
        %v4828 = vor.u32 1.1754944e-38, %v4827
        %v4829 = vsel %vm4826, %v4828, %v4824
        %v4830 = vmul.f32 1.0, %v4829
        %v4831 = vrcp.pop %v4635
        %v4832 = vmul.f32 %v4635, %v4831
        %v4833 = vsub.f32 1.0, %v4832
        %v4834 = vmul.f32 %v4831, %v4833
        %v4835 = vadd.f32 %v4831, %v4834
        %vm4836 = vweird.f32 %v4635
        %vm4837 = vweird.f32 %v4831
        %vm4838 = vmor %vm4836, %vm4837
        %v4839 = vsel %vm4838, %v4831, %v4835
        %v4840 = vand.u32 2147483647, %v4635
        %vm4841 = vcmp.eq.f32.partialorder %v4840, 8.507059e+37
        %v4842 = vand.u32 %v4635, 2147483648
        %v4843 = vor.u32 1.1754944e-38, %v4842
        %v4844 = vsel %vm4841, %v4843, %v4839
        %v4845 = vmul.f32 1.0, %v4844
        %v4846 = vpack.c.bf16 %v4665, %v4650
        %v4847 = vpack.c.bf16 %v4695, %v4680
        %v4848 = vpack.c.bf16 %v4725, %v4710
        %v4849 = vpack.c.bf16 %v4740, %v4740
        %v4850 = vpack.c.bf16 %v4770, %v4755
        %v4851 = vpack.c.bf16 %v4800, %v4785
        %v4852 = vpack.c.bf16 %v4830, %v4815
        %v4853 = vpack.c.bf16 %v4845, %v4845
        %4854 = vst [vmem:[%s416] sm:$0xff] %v4846
        %4855 = vst [vmem:[%s416 + $0x8] sm:$0xff] %v4847
        %4856 = vst [vmem:[%s416 + $0x10] sm:$0xff] %v4848
        %4857 = vst [vmem:[%s416 + $0x18] sm:$0xf] %v4849
        %4858 = vst [vmem:[%s416 + $0x1c] sm:$0xff] %v4850
        %4859 = vst [vmem:[%s416 + $0x24] sm:$0xff] %v4851
        %4860 = vst [vmem:[%s416 + $0x2c] sm:$0xff] %v4852
        %4861 = vst [vmem:[%s416 + $0x34] sm:$0xf] %v4853
        %4862 = vst [vmem:[%s442] sm:$0xff] %v2559
        %4863 = vst [vmem:[%s442 + $0x8] sm:$0xff] %v2561
        %s4864 = sand.u32 %s255, 1
        %s4865 = scalar_lea.sflag [#allocation4], %s4864
        %s4866 = sand.u32 %s255, 1
        %s4867 = smul.addr %s4866, 56
        %s4868 = scalar_lea.vmem [#allocation5], %s4867
        %s4869 = smul.u32 2, %s27
        %p4870 = scmp.lt.s32.totalorder %s4869, 3
        %s4871 = scalar_select %p4870, %s4869, 3
        %s4872 = smul.addr %s4871, 8
        %s4873 = scalar_lea.vmem %s11, %s4872
        // Predicated region
        $region65: #{vae_forward.1} parent=59 // pred_check
          %p4874 = pneg %p265
        $region66: #{vae_forward.1} parent=59 // pred_check_branch
          %4876 = sbr.rel (%p4874) target = $region68
        $region67: #{vae_forward.1} parent=59 // pred_region
          %s4877 = smul.u32 2, %s27
          %4879 = vsyncadd %s4865, 0
          %s4880 = smul.addr %s4877, 7
          %s4881 = smul.addr %s4880, 4
          %s4882 = scalar_lea.hbm %s10, %s4881
          %s4883 = sshll.u32 %s4868, 4
          %s4884 = int_to_ptr.vmem [resolvable:$true] %s4883
          %s4885 = sshll.u32 %s4882, 4
          %s4886 = int_to_ptr.hbm [resolvable:$true] %s4885
          %4891 = dma.vmem_to_hbm [thread:$0]  %s4884, 896, %s4886, %s4865, 448, 448, 28
        $region68: #{vae_forward.1} parent=59 // pred_fallthru
          _
        // Predicated region
        $region69: #{vae_forward.1} parent=59 // pred_check
          %p4892 = pneg %p291
        $region70: #{vae_forward.1} parent=59 // pred_check_branch
          %4894 = sbr.rel (%p4892) target = $region72
        $region71: #{vae_forward.1} parent=59 // pred_region
          %s4895 = smul.u32 2, %s27
        $region72: #{vae_forward.1} parent=59 // pred_fallthru
          _
      $region60: #{vae_forward.1} parent=5 // pred_fallthru
        _
      %p4896 = scmp.le.s32.totalorder 2, %s22
      // Predicated region
      $region73: #{vae_forward.1} parent=5 // pred_check
        %p4897 = pneg %p4896
      $region74: #{vae_forward.1} parent=5 // pred_check_branch
        %4899 = sbr.rel (%p4897) target = $region76
      $region75: #{vae_forward.1} parent=5 // pred_region
        %s4900 = ssub.s32 %s22, 2
        // Predicated region
        $region77: #{vae_forward.1} parent=75 // pred_check
          %p4901 = pneg %p271
        $region78: #{vae_forward.1} parent=75 // pred_check_branch
          %4903 = sbr.rel (%p4901) target = $region80
        $region79: #{vae_forward.1} parent=75 // pred_region
          %s4904 = sand.u32 %s256, 1
          %s4905 = scalar_lea.sflag [#allocation4], %s4904
          %s4906 = sand.u32 %s256, 1
          %s4907 = smul.addr %s4906, 56
          %s4908 = scalar_lea.vmem [#allocation5], %s4907
          %4910 = dma.done %s4905, 896
        $region80: #{vae_forward.1} parent=75 // pred_fallthru
          _
        // Predicated region
        $region81: #{vae_forward.1} parent=75 // pred_check
          %p4911 = pneg %p297
        $region82: #{vae_forward.1} parent=75 // pred_check_branch
          %4913 = sbr.rel (%p4911) target = $region84
        $region83: #{vae_forward.1} parent=75 // pred_region
          %s4914 = smul.u32 2, %s28
          %p4915 = scmp.lt.s32.totalorder %s4914, 3
          %s4916 = scalar_select %p4915, %s4914, 3
          %s4917 = smul.addr %s4916, 8
          %s4918 = scalar_lea.vmem %s11, %s4917
        $region84: #{vae_forward.1} parent=75 // pred_fallthru
          _
      $region76: #{vae_forward.1} parent=5 // pred_fallthru
        _
    $region6: #{vae_forward.1} parent=1 // loop_footer
      %s26 = sadd.s32 1, %s22
    $region7: #{vae_forward.1} parent=1 // loop_footer_branch
      %21 = sbr.rel target = $region3
    $region8: #{vae_forward.1} parent=1 // loop_exit
      _
    %4919 = vsyncpa [#allocation3], 1
    %s4920 = scalar_lea.sflag [#allocation3], 1
    %4921 = vsyncpa %s4920, 1
    %4922 = vsyncpa [#allocation4], 1
    %s4923 = scalar_lea.sflag [#allocation4], 1
    %4924 = vsyncpa %s4923, 1

</llo_original>
